<compile_context>
chip_gen: v7x
topology: tpu7x:2x2x1
jax: 0.10.0
libtpu: 0.0.40
codegen_flags: <defaults>
</compile_context>

<pallas_src>
import functools

import jax
import jax.numpy as jnp
from jax.experimental import pallas as pl
from jax.experimental.pallas import tpu as pltpu

LANE = 128


def _round_up(x, m):
    return ((x + m - 1) // m) * m


# ----------------------------------------------------------------------------
# Kernel 1: K-accumulated (A @ B) + bias [+ residual] [ReLU]  (all 1x1 convs)
# ----------------------------------------------------------------------------
def _mm_kernel(*refs, relu, add_res):
    if add_res:
        a_ref, b_ref, bias_ref, r_ref, o_ref, acc_ref = refs
    else:
        a_ref, b_ref, bias_ref, o_ref, acc_ref = refs
        r_ref = None
    k = pl.program_id(2)

    @pl.when(k == 0)
    def _():
        if add_res:
            # Residual (bf16) seeds the f32 accumulator -> no epilogue add, no
            # extra f32 residual slab.
            acc_ref[...] = r_ref[...].astype(jnp.float32)
        else:
            acc_ref[...] = jnp.zeros_like(acc_ref)

    # bf16 x bf16 -> f32 accumulate on the MXU.
    acc_ref[...] += jnp.dot(a_ref[...], b_ref[...],
                            preferred_element_type=jnp.float32)

    @pl.when(k == pl.num_programs(2) - 1)
    def _():
        out = acc_ref[...] + bias_ref[...]
        if relu:
            out = jnp.maximum(out, 0.0)
        o_ref[...] = out.astype(o_ref.dtype)


def _tile_sublane(dim, max_tile):
    """Block size for a sublane-class dim: full extent, or a multiple of 8 dividing dim."""
    if dim <= max_tile:
        return dim, dim
    t = (max_tile // 8) * 8
    while t >= 8:
        if dim % t == 0:
            return t, dim
        t -= 8
    return max_tile, _round_up(dim, max_tile)


def _tile_lane(dim, max_tile):
    """Block size for a lane-class dim: full extent, or a multiple of 128 dividing dim."""
    if dim <= max_tile:
        return dim, dim
    t = (max_tile // LANE) * LANE
    while t >= LANE:
        if dim % t == 0:
            return t, dim
        t -= LANE
    return max_tile, _round_up(dim, max_tile)


def fused_matmul(a, b, bias, residual=None, relu=False, out_dtype=jnp.bfloat16,
                 tm_max=256, tn_max=256, tk_max=512):
    """a: (M,K) bf16 activations; b: (K,N) bf16 prepped weights (N % 128 == 0);
    bias: (1,N) f32; residual: optional (M,N) bf16."""
    M, K = a.shape
    Kb, N = b.shape
    assert K == Kb and bias.shape == (1, N)

    tm, Mp = _tile_sublane(M, tm_max)
    tn, Np = _tile_lane(N, tn_max)
    tk, Kp = _tile_lane(K, tk_max)

    # Weights/bias are prepped (padded) offline; only rare ragged M/K fall back here.
    if Mp != M:
        a = jnp.pad(a, ((0, Mp - M), (0, 0)))
        if residual is not None:
            residual = jnp.pad(residual, ((0, Mp - M), (0, 0)))
    if Kp != K:
        a = jnp.pad(a, ((0, 0), (0, Kp - K)))
        b = jnp.pad(b, ((0, Kp - K), (0, 0)))
    if Np != N:
        b = jnp.pad(b, ((0, 0), (0, Np - N)))
        bias = jnp.pad(bias, ((0, 0), (0, Np - N)))
        if residual is not None:
            residual = jnp.pad(residual, ((0, 0), (0, Np - N)))

    add_res = residual is not None
    in_specs = [
        pl.BlockSpec((tm, tk), lambda i, j, k: (i, k)),   # A tile
        pl.BlockSpec((tk, tn), lambda i, j, k: (k, j)),   # B tile (K-streamed)
        pl.BlockSpec((1, tn), lambda i, j, k: (0, j)),    # bias (resident)
    ]
    args = [a, b, bias]
    if add_res:
        in_specs.append(pl.BlockSpec((tm, tn), lambda i, j, k: (i, j)))  # residual
        args.append(residual)

    kernel = functools.partial(_mm_kernel, relu=relu, add_res=add_res)
    out = pl.pallas_call(
        kernel,
        out_shape=jax.ShapeDtypeStruct((Mp, Np), out_dtype),
        grid=(Mp // tm, Np // tn, Kp // tk),
        in_specs=in_specs,
        out_specs=pl.BlockSpec((tm, tn), lambda i, j, k: (i, j)),
        scratch_shapes=[pltpu.VMEM((tm, tn), jnp.float32)],
        compiler_params=pltpu.CompilerParams(
            dimension_semantics=("parallel", "parallel", "arbitrary")),
    )(*args)
    if (Mp, Np) != (M, N):
        out = out[:M, :N]
    return out


def conv1x1_bn(x, p, stride=1, relu=False, residual=None, out_dtype=jnp.bfloat16):
    """x: (N,H,W,Cin) bf16 NHWC; p: {'w': (Cin_eff, CoutP) bf16, 'b': (1, CoutP) f32}."""
    if stride > 1:
        # TODO(synk): fold this subsample into the A index_map (scalar-prefetch row
        # offsets) instead of a strided-slice copy; traffic here is small (1/4 of x).
        x = x[:, ::stride, ::stride, :]
    n, h, w, cin = x.shape
    coutp = p["w"].shape[-1]
    a = x.reshape(n * h * w, cin)
    res = residual.reshape(n * h * w, coutp) if residual is not None else None
    out = fused_matmul(a, p["w"], p["b"], residual=res, relu=relu, out_dtype=out_dtype)
    return out.reshape(n, h, w, coutp)


# ----------------------------------------------------------------------------
# Kernel 2: fused 3x3 conv + BN + ReLU (no materialized im2col)
# ----------------------------------------------------------------------------
def _conv3x3_kernel(x_ref, w_ref, b_ref, o_ref, *, s, ho, wo, relu):
    # x_ref: (1, s*s, ph, pw, Cin) parity planes of the padded image (resident)
    # w_ref: (9, Cin, tCout) BN-folded taps; b_ref: (1, tCout) f32
    cin = x_ref.shape[-1]
    tcout = o_ref.shape[-1]
    acc = jnp.zeros((ho * wo, tcout), jnp.float32)
    for di in range(3):
        for dj in range(3):
            plane = (di % s) * s + (dj % s)
            r0, c0 = di // s, dj // s
            # contiguous static window of one parity plane -> (ho, wo, cin)
            win = x_ref[0, plane, r0:r0 + ho, c0:c0 + wo, :]
            acc = acc + jnp.dot(win.reshape(ho * wo, cin), w_ref[di * 3 + dj],
                                preferred_element_type=jnp.float32)
    out = acc + b_ref[...]
    if relu:
        out = jnp.maximum(out, 0.0)
    o_ref[...] = out.reshape(1, ho, wo, tcout).astype(o_ref.dtype)


def conv3x3_bn(x, p, stride, relu=True, out_dtype=jnp.bfloat16, tcout_max=256):
    """x: (N,H,W,Cin) bf16; p['w']: (9, Cin, CoutP) bf16; p['b']: (1, CoutP) f32."""
    n, h, w, cin = x.shape
    s = stride
    hp, wp = h + 2, w + 2
    ho = (hp - 3) // s + 1
    wo = (wp - 3) // s + 1

    xpad = jnp.pad(x, ((0, 0), (1, 1), (1, 1), (0, 0)))
    if s == 1:
        planes = xpad[:, None]                              # (n, 1, hp, wp, cin)
        ph, pw = hp, wp
    else:
        # Row/col parity decomposition: every 3x3 tap becomes a *contiguous*
        # static window of one parity plane (no strided loads inside the kernel).
        ph, pw = -(-hp // s), -(-wp // s)
        xpad = jnp.pad(xpad, ((0, 0), (0, ph * s - hp), (0, pw * s - wp), (0, 0)))
        planes = xpad.reshape(n, ph, s, pw, s, cin)
        planes = planes.transpose(0, 2, 4, 1, 3, 5).reshape(n, s * s, ph, pw, cin)

    coutp = p["w"].shape[-1]
    tcout, _ = _tile_lane(coutp, tcout_max)
    kernel = functools.partial(_conv3x3_kernel, s=s, ho=ho, wo=wo, relu=relu)
    return pl.pallas_call(
        kernel,
        out_shape=jax.ShapeDtypeStruct((n, ho, wo, coutp), out_dtype),
        grid=(n, coutp // tcout),
        in_specs=[
            pl.BlockSpec((1, s * s, ph, pw, cin), lambda b, j: (b, 0, 0, 0, 0)),
            pl.BlockSpec((9, cin, tcout), lambda b, j: (0, 0, j)),
            pl.BlockSpec((1, tcout), lambda b, j: (0, j)),
        ],
        out_specs=pl.BlockSpec((1, ho, wo, tcout), lambda b, j: (b, 0, 0, j)),
        compiler_params=pltpu.CompilerParams(
            dimension_semantics=("parallel", "parallel")),
    )(planes, p["w"], p["b"])


# ----------------------------------------------------------------------------
# One-time parameter preprocessing (BN fold, layout, bf16, lane padding)
# ----------------------------------------------------------------------------
def _fold_bn(bn):
    gamma, beta, mean, var = bn
    scale = gamma / jnp.sqrt(var + 1e-5)
    return scale, beta - mean * scale


def _pad_last(a, to):
    if a.shape[-1] == to:
        return a
    pad = [(0, 0)] * a.ndim
    pad[-1] = (0, to - a.shape[-1])
    return jnp.pad(a, pad)


def prep_conv1x1(w, bn, k_pad=None):
    """w: (Cout,Cin,1,1) PyTorch layout -> {'w': (Cin_eff, CoutP) bf16, 'b': (1, CoutP) f32}."""
    cout, cin = w.shape[:2]
    scale, bias = _fold_bn(bn)
    w2 = w.reshape(cout, cin).T * scale[None, :]
    coutp = _round_up(cout, LANE)
    w2 = _pad_last(w2, coutp)
    if k_pad is not None and k_pad != cin:
        w2 = jnp.pad(w2, ((0, k_pad - cin), (0, 0)))
    b = _pad_last(bias.reshape(1, cout), coutp).astype(jnp.float32)
    return {"w": w2.astype(jnp.bfloat16), "b": b}


def prep_conv3x3(w, bn, k_pad=None):
    """w: (Cout,Cin,3,3) -> {'w': (9, Cin_eff, CoutP) bf16, 'b': (1, CoutP) f32}."""
    cout, cin = w.shape[:2]
    scale, bias = _fold_bn(bn)
    w2 = jnp.transpose(w, (2, 3, 1, 0)).reshape(9, cin, cout) * scale[None, None, :]
    coutp = _round_up(cout, LANE)
    w2 = _pad_last(w2, coutp)
    if k_pad is not None and k_pad != cin:
        w2 = jnp.pad(w2, ((0, 0), (0, k_pad - cin), (0, 0)))
    b = _pad_last(bias.reshape(1, cout), coutp).astype(jnp.float32)
    return {"w": w2.astype(jnp.bfloat16), "b": b}


def prep_bottleneck_params(params, stride):
    pp = {"conv1": prep_conv1x1(params["conv1"], params["bn1"])}
    c1p = pp["conv1"]["w"].shape[-1]
    pp["conv2"] = prep_conv3x3(params["conv2"], params["bn2"], k_pad=c1p)
    c2p = pp["conv2"]["w"].shape[-1]
    pp["conv3"] = prep_conv1x1(params["conv3"], params["bn3"], k_pad=c2p)
    if "sc_conv" in params:
        pp["sc"] = prep_conv1x1(params["sc_conv"], params["sc_bn"])
    return pp


# ----------------------------------------------------------------------------
# Bottleneck forward (matches the PyTorch module, eval-mode BN)
# ----------------------------------------------------------------------------
def bottleneck_forward(x_nchw, pp, stride, out_channels):
    x = jnp.transpose(x_nchw, (0, 2, 3, 1)).astype(jnp.bfloat16)     # NCHW -> NHWC bf16
    out = conv1x1_bn(x, pp["conv1"], stride=1, relu=True)            # bf16, CoutP channels
    out = conv3x3_bn(out, pp["conv2"], stride, relu=True)            # bf16, CoutP channels
    coutp = pp["conv3"]["w"].shape[-1]
    if "sc" in pp:
        sc = conv1x1_bn(x, pp["sc"], stride=stride, relu=False)      # bf16 residual
    else:
        sc = x                                                        # identity shortcut
        if sc.shape[-1] != coutp:
            sc = _pad_last(sc, coutp)
    # out = relu(bn3(conv3(out)) + shortcut(x)); residual seeds the accumulator.
    out = conv1x1_bn(out, pp["conv3"], stride=1, relu=True, residual=sc,
                     out_dtype=jnp.float32)
    out = out[..., :out_channels]                                     # drop lane padding
    return jnp.transpose(out, (0, 3, 1, 2))                           # NHWC -> NCHW


# ----------------------------------------------------------------------------
# pure-JAX reference (f32 XLA convs) for a correctness check
# ----------------------------------------------------------------------------
def _ref_conv(x_nhwc, w, stride, padding):
    return jax.lax.conv_general_dilated(
        x_nhwc, jnp.transpose(w, (2, 3, 1, 0)),
        window_strides=(stride, stride),
        padding=((padding, padding), (padding, padding)),
        dimension_numbers=("NHWC", "HWIO", "NHWC"))


def _ref_bn(x, bn):
    gamma, beta, mean, var = bn
    return (x - mean) / jnp.sqrt(var + 1e-5) * gamma + beta


def bottleneck_ref(x_nchw, p, stride):
    x = jnp.transpose(x_nchw, (0, 2, 3, 1))
    out = jax.nn.relu(_ref_bn(_ref_conv(x, p["conv1"], 1, 0), p["bn1"]))
    out = jax.nn.relu(_ref_bn(_ref_conv(out, p["conv2"], stride, 1), p["bn2"]))
    out = _ref_bn(_ref_conv(out, p["conv3"], 1, 0), p["bn3"])
    if "sc_conv" in p:
        sc = _ref_bn(_ref_conv(x, p["sc_conv"], stride, 0), p["sc_bn"])
    else:
        sc = x
    out = jax.nn.relu(out + sc)
    return jnp.transpose(out, (0, 3, 1, 2))


# ----------------------------------------------------------------------------
# deterministic parameter init (matches nn.Module shapes for Bottleneck)
# ----------------------------------------------------------------------------
def _conv_w(key, cout, cin, k):
    return jax.random.normal(key, (cout, cin, k, k), jnp.float32) * 0.05


def _bn_p(key, c):
    k1, k2, k3, k4 = jax.random.split(key, 4)
    gamma = 1.0 + 0.1 * jax.random.normal(k1, (c,), jnp.float32)
    beta = 0.1 * jax.random.normal(k2, (c,), jnp.float32)
    mean = 0.1 * jax.random.normal(k3, (c,), jnp.float32)
    var = 1.0 + 0.1 * jnp.abs(jax.random.normal(k4, (c,), jnp.float32))
    return (gamma, beta, mean, var)


def init_bottleneck_params(key, in_planes, planes, stride, expansion=4):
    keys = iter(jax.random.split(key, 16))
    p = {
        "conv1": _conv_w(next(keys), planes, in_planes, 1),
        "bn1": _bn_p(next(keys), planes),
        "conv2": _conv_w(next(keys), planes, planes, 3),
        "bn2": _bn_p(next(keys), planes),
        "conv3": _conv_w(next(keys), expansion * planes, planes, 1),
        "bn3": _bn_p(next(keys), expansion * planes),
    }
    if stride != 1 or in_planes != expansion * planes:
        p["sc_conv"] = _conv_w(next(keys), expansion * planes, in_planes, 1)
        p["sc_bn"] = _bn_p(next(keys), expansion * planes)
    return p


if __name__ == "__main__":
    key = jax.random.PRNGKey(0)
    k_param, k_x = jax.random.split(key)

    # small Bottleneck: in_planes=16, planes=16 (-> 64 out channels), stride=2
    in_planes, planes, stride, expansion = 16, 16, 2, 4
    params = init_bottleneck_params(k_param, in_planes, planes, stride, expansion)
    x = jax.random.normal(k_x, (2, in_planes, 16, 16), jnp.float32)   # NCHW

    prepped = prep_bottleneck_params(params, stride)                  # one-time weight prep
    fwd = jax.jit(bottleneck_forward, static_argnames=("stride", "out_channels"))
    out = fwd(x, prepped, stride=stride, out_channels=expansion * planes)
    out = jax.block_until_ready(out)

    assert out.shape == (2, expansion * planes, 8, 8) and out.dtype == jnp.float32
    assert bool(jnp.all(jnp.isfinite(out)))

    # correctness vs. f32 XLA reference (loose tolerance: bf16 MXU operands/activations)
    ref = bottleneck_ref(x, params, stride)
    rel_err = float(jnp.max(jnp.abs(out - ref)) / (jnp.max(jnp.abs(ref)) + 1e-6))
    assert rel_err < 5e-2, f"relative error too large: {rel_err}"

    print("KERNEL_OK")
</pallas_src>

<mosaic_0001>
module attributes {stable_mosaic.version = 11 : i64} {
  func.func @_mm_kernel(%arg0: i32, %arg1: i32, %arg2: i32, %arg3: memref<128x16xbf16, #tpu.memory_space<vmem>>, %arg4: memref<16x128xbf16, #tpu.memory_space<vmem>>, %arg5: memref<1x128xf32, #tpu.memory_space<vmem>>, %arg6: memref<128x128xbf16, #tpu.memory_space<vmem>>, %arg7: memref<128x128xf32, #tpu.memory_space<vmem>>) attributes {dimension_semantics = [#tpu.dimension_semantics<parallel>, #tpu.dimension_semantics<parallel>, #tpu.dimension_semantics<arbitrary>], iteration_bounds = array<i64: 1, 1, 1>, scalar_prefetch = 0 : i64, scratch_operands = 1 : i64, tpu.core_type = #tpu.core_type<tc>, window_params = [{transform_indices = @transform_0, window_bounds = array<i64: 128, 16>}, {transform_indices = @transform_1, window_bounds = array<i64: 16, 128>}, {transform_indices = @transform_2, window_bounds = array<i64: 1, 128>}, {transform_indices = @transform_3, window_bounds = array<i64: 128, 128>}]} {
    %c0_i32 = arith.constant 0 : i32
    %0 = arith.cmpi eq, %arg2, %c0_i32 : i32
    %1 = arith.extui %0 : i1 to i32
    %c0_i32_0 = arith.constant 0 : i32
    %2 = arith.cmpi ne, %1, %c0_i32_0 : i32
    scf.if %2 {
      %cst_10 = arith.constant 0.000000e+00 : f32
      %12 = vector.broadcast %cst_10 : f32 to vector<128x128xf32>
      %c0_11 = arith.constant 0 : index
      %c0_12 = arith.constant 0 : index
      %13 = vector.load %arg7[%c0_11, %c0_12] : memref<128x128xf32, #tpu.memory_space<vmem>>, vector<128x128xf32>
      tpu.vector_store %arg7[%c0_11, %c0_12], %12 {strides = array<i32>} : memref<128x128xf32, #tpu.memory_space<vmem>>, vector<128x128xf32>,
    } else {
    }
    %c0 = arith.constant 0 : index
    %c0_1 = arith.constant 0 : index
    %3 = vector.load %arg7[%c0, %c0_1] : memref<128x128xf32, #tpu.memory_space<vmem>>, vector<128x128xf32>
    %c0_2 = arith.constant 0 : index
    %c0_3 = arith.constant 0 : index
    %4 = vector.load %arg3[%c0_2, %c0_3] : memref<128x16xbf16, #tpu.memory_space<vmem>>, vector<128x16xbf16>
    %c0_4 = arith.constant 0 : index
    %c0_5 = arith.constant 0 : index
    %5 = vector.load %arg4[%c0_4, %c0_5] : memref<16x128xbf16, #tpu.memory_space<vmem>>, vector<16x128xbf16>
    %cst = arith.constant dense<0.000000e+00> : vector<128x128xf32>
    %6 = tpu.matmul %4, %5, %cst {dimension_numbers = #tpu.dot_dimension_numbers<[1], [0], [0], [1], [0, 0, 1, 1], [], []>} : vector<128x16xbf16>, vector<16x128xbf16>, vector<128x128xf32> -> vector<128x128xf32>
    %7 = arith.addf %3, %6 : vector<128x128xf32>
    %c0_6 = arith.constant 0 : index
    %c0_7 = arith.constant 0 : index
    %8 = vector.load %arg7[%c0_6, %c0_7] : memref<128x128xf32, #tpu.memory_space<vmem>>, vector<128x128xf32>
    tpu.vector_store %arg7[%c0_6, %c0_7], %7 {strides = array<i32>} : memref<128x128xf32, #tpu.memory_space<vmem>>, vector<128x128xf32>,
    %c0_i32_8 = arith.constant 0 : i32
    %9 = arith.cmpi eq, %arg2, %c0_i32_8 : i32
    %10 = arith.extui %9 : i1 to i32
    %c0_i32_9 = arith.constant 0 : i32
    %11 = arith.cmpi ne, %10, %c0_i32_9 : i32
    scf.if %11 {
      %c0_10 = arith.constant 0 : index
      %c0_11 = arith.constant 0 : index
      %12 = vector.load %arg7[%c0_10, %c0_11] : memref<128x128xf32, #tpu.memory_space<vmem>>, vector<128x128xf32>
      %c0_12 = arith.constant 0 : index
      %c0_13 = arith.constant 0 : index
      %13 = vector.load %arg5[%c0_12, %c0_13] : memref<1x128xf32, #tpu.memory_space<vmem>>, vector<1x128xf32>
      %14 = vector.broadcast %13 : vector<1x128xf32> to vector<128x128xf32>
      %15 = arith.addf %12, %14 : vector<128x128xf32>
      %16 = arith.truncf %15 : vector<128x128xf32> to vector<128x128xbf16>
      %c0_14 = arith.constant 0 : index
      %c0_15 = arith.constant 0 : index
      %17 = vector.load %arg6[%c0_14, %c0_15] : memref<128x128xbf16, #tpu.memory_space<vmem>>, vector<128x128xbf16>
      tpu.vector_store %arg6[%c0_14, %c0_15], %16 {strides = array<i32>} : memref<128x128xbf16, #tpu.memory_space<vmem>>, vector<128x128xbf16>,
    } else {
    }
    return
  }
  func.func @transform_0(%arg0: i32, %arg1: i32, %arg2: i32) -> (i32, i32) {
    %c0_i32 = arith.constant 0 : i32
    return %arg0, %arg2 : i32, i32
  }
  func.func @transform_1(%arg0: i32, %arg1: i32, %arg2: i32) -> (i32, i32) {
    %c0_i32 = arith.constant 0 : i32
    return %arg2, %arg1 : i32, i32
  }
  func.func @transform_2(%arg0: i32, %arg1: i32, %arg2: i32) -> (i32, i32) {
    %c0_i32 = arith.constant 0 : i32
    %c0_i32_0 = arith.constant 0 : i32
    return %c0_i32, %arg1 : i32, i32
  }
  func.func @transform_3(%arg0: i32, %arg1: i32, %arg2: i32) -> (i32, i32) {
    %c0_i32 = arith.constant 0 : i32
    return %arg0, %arg1 : i32, i32
  }
}

module attributes {stable_mosaic.version = 11 : i64} {
  func.func @_mm_kernel(%arg0: i32, %arg1: i32, %arg2: i32, %arg3: memref<256x16xbf16, #tpu.memory_space<vmem>>, %arg4: memref<16x128xbf16, #tpu.memory_space<vmem>>, %arg5: memref<1x128xf32, #tpu.memory_space<vmem>>, %arg6: memref<256x128xbf16, #tpu.memory_space<vmem>>, %arg7: memref<256x128xf32, #tpu.memory_space<vmem>>) attributes {dimension_semantics = [#tpu.dimension_semantics<parallel>, #tpu.dimension_semantics<parallel>, #tpu.dimension_semantics<arbitrary>], iteration_bounds = array<i64: 2, 1, 1>, scalar_prefetch = 0 : i64, scratch_operands = 1 : i64, tpu.core_type = #tpu.core_type<tc>, window_params = [{transform_indices = @transform_0, window_bounds = array<i64: 256, 16>}, {transform_indices = @transform_1, window_bounds = array<i64: 16, 128>}, {transform_indices = @transform_2, window_bounds = array<i64: 1, 128>}, {transform_indices = @transform_3, window_bounds = array<i64: 256, 128>}]} {
    %c0_i32 = arith.constant 0 : i32
    %0 = arith.cmpi eq, %arg2, %c0_i32 : i32
    %1 = arith.extui %0 : i1 to i32
    %c0_i32_0 = arith.constant 0 : i32
    %2 = arith.cmpi ne, %1, %c0_i32_0 : i32
    scf.if %2 {
      %cst_10 = arith.constant 0.000000e+00 : f32
      %12 = vector.broadcast %cst_10 : f32 to vector<256x128xf32>
      %c0_11 = arith.constant 0 : index
      %c0_12 = arith.constant 0 : index
      %13 = vector.load %arg7[%c0_11, %c0_12] : memref<256x128xf32, #tpu.memory_space<vmem>>, vector<256x128xf32>
      tpu.vector_store %arg7[%c0_11, %c0_12], %12 {strides = array<i32>} : memref<256x128xf32, #tpu.memory_space<vmem>>, vector<256x128xf32>,
    } else {
    }
    %c0 = arith.constant 0 : index
    %c0_1 = arith.constant 0 : index
    %3 = vector.load %arg7[%c0, %c0_1] : memref<256x128xf32, #tpu.memory_space<vmem>>, vector<256x128xf32>
    %c0_2 = arith.constant 0 : index
    %c0_3 = arith.constant 0 : index
    %4 = vector.load %arg3[%c0_2, %c0_3] : memref<256x16xbf16, #tpu.memory_space<vmem>>, vector<256x16xbf16>
    %c0_4 = arith.constant 0 : index
    %c0_5 = arith.constant 0 : index
    %5 = vector.load %arg4[%c0_4, %c0_5] : memref<16x128xbf16, #tpu.memory_space<vmem>>, vector<16x128xbf16>
    %cst = arith.constant dense<0.000000e+00> : vector<256x128xf32>
    %6 = tpu.matmul %4, %5, %cst {dimension_numbers = #tpu.dot_dimension_numbers<[1], [0], [0], [1], [0, 0, 1, 1], [], []>} : vector<256x16xbf16>, vector<16x128xbf16>, vector<256x128xf32> -> vector<256x128xf32>
    %7 = arith.addf %3, %6 : vector<256x128xf32>
    %c0_6 = arith.constant 0 : index
    %c0_7 = arith.constant 0 : index
    %8 = vector.load %arg7[%c0_6, %c0_7] : memref<256x128xf32, #tpu.memory_space<vmem>>, vector<256x128xf32>
    tpu.vector_store %arg7[%c0_6, %c0_7], %7 {strides = array<i32>} : memref<256x128xf32, #tpu.memory_space<vmem>>, vector<256x128xf32>,
    %c0_i32_8 = arith.constant 0 : i32
    %9 = arith.cmpi eq, %arg2, %c0_i32_8 : i32
    %10 = arith.extui %9 : i1 to i32
    %c0_i32_9 = arith.constant 0 : i32
    %11 = arith.cmpi ne, %10, %c0_i32_9 : i32
    scf.if %11 {
      %c0_10 = arith.constant 0 : index
      %c0_11 = arith.constant 0 : index
      %12 = vector.load %arg7[%c0_10, %c0_11] : memref<256x128xf32, #tpu.memory_space<vmem>>, vector<256x128xf32>
      %c0_12 = arith.constant 0 : index
      %c0_13 = arith.constant 0 : index
      %13 = vector.load %arg5[%c0_12, %c0_13] : memref<1x128xf32, #tpu.memory_space<vmem>>, vector<1x128xf32>
      %14 = vector.broadcast %13 : vector<1x128xf32> to vector<256x128xf32>
      %15 = arith.addf %12, %14 : vector<256x128xf32>
      %cst_14 = arith.constant 0.000000e+00 : f32
      %16 = vector.broadcast %cst_14 : f32 to vector<256x128xf32>
      %17 = arith.maximumf %15, %16 : vector<256x128xf32>
      %18 = arith.truncf %17 : vector<256x128xf32> to vector<256x128xbf16>
      %c0_15 = arith.constant 0 : index
      %c0_16 = arith.constant 0 : index
      %19 = vector.load %arg6[%c0_15, %c0_16] : memref<256x128xbf16, #tpu.memory_space<vmem>>, vector<256x128xbf16>
      tpu.vector_store %arg6[%c0_15, %c0_16], %18 {strides = array<i32>} : memref<256x128xbf16, #tpu.memory_space<vmem>>, vector<256x128xbf16>,
    } else {
    }
    return
  }
  func.func @transform_0(%arg0: i32, %arg1: i32, %arg2: i32) -> (i32, i32) {
    %c0_i32 = arith.constant 0 : i32
    return %arg0, %arg2 : i32, i32
  }
  func.func @transform_1(%arg0: i32, %arg1: i32, %arg2: i32) -> (i32, i32) {
    %c0_i32 = arith.constant 0 : i32
    return %arg2, %arg1 : i32, i32
  }
  func.func @transform_2(%arg0: i32, %arg1: i32, %arg2: i32) -> (i32, i32) {
    %c0_i32 = arith.constant 0 : i32
    %c0_i32_0 = arith.constant 0 : i32
    return %c0_i32, %arg1 : i32, i32
  }
  func.func @transform_3(%arg0: i32, %arg1: i32, %arg2: i32) -> (i32, i32) {
    %c0_i32 = arith.constant 0 : i32
    return %arg0, %arg1 : i32, i32
  }
}

module attributes {stable_mosaic.version = 11 : i64} {
  func.func @_conv3x3_kernel(%arg0: i32, %arg1: i32, %arg2: memref<1x4x9x9x128xbf16, #tpu.memory_space<vmem>>, %arg3: memref<9x128x128xbf16, #tpu.memory_space<vmem>>, %arg4: memref<1x128xf32, #tpu.memory_space<vmem>>, %arg5: memref<1x8x8x128xbf16, #tpu.memory_space<vmem>>) attributes {dimension_semantics = [#tpu.dimension_semantics<parallel>, #tpu.dimension_semantics<parallel>], iteration_bounds = array<i64: 2, 1>, scalar_prefetch = 0 : i64, scratch_operands = 0 : i64, tpu.core_type = #tpu.core_type<tc>, window_params = [{transform_indices = @transform_0, window_bounds = array<i64: 1, 4, 9, 9, 128>}, {transform_indices = @transform_1, window_bounds = array<i64: 9, 128, 128>}, {transform_indices = @transform_2, window_bounds = array<i64: 1, 128>}, {transform_indices = @transform_3, window_bounds = array<i64: 1, 8, 8, 128>}]} {
    %cst = arith.constant 0.000000e+00 : f32
    %0 = vector.broadcast %cst : f32 to vector<64x128xf32>
    %c0 = arith.constant 0 : index
    %c0_0 = arith.constant 0 : index
    %c0_1 = arith.constant 0 : index
    %c0_2 = arith.constant 0 : index
    %c0_3 = arith.constant 0 : index
    %1 = vector.load %arg2[%c0, %c0_0, %c0_1, %c0_2, %c0_3] : memref<1x4x9x9x128xbf16, #tpu.memory_space<vmem>>, vector<1x1x8x8x128xbf16>
    %2 = vector.shape_cast %1 : vector<1x1x8x8x128xbf16> to vector<8x8x128xbf16>
    %3 = vector.shape_cast %2 : vector<8x8x128xbf16> to vector<64x128xbf16>
    %c0_4 = arith.constant 0 : index
    %c0_5 = arith.constant 0 : index
    %c0_6 = arith.constant 0 : index
    %4 = vector.load %arg3[%c0_4, %c0_5, %c0_6] : memref<9x128x128xbf16, #tpu.memory_space<vmem>>, vector<1x128x128xbf16>
    %5 = vector.shape_cast %4 : vector<1x128x128xbf16> to vector<128x128xbf16>
    %cst_7 = arith.constant dense<0.000000e+00> : vector<64x128xf32>
    %6 = tpu.matmul %3, %5, %cst_7 {dimension_numbers = #tpu.dot_dimension_numbers<[1], [0], [0], [1], [0, 0, 1, 1], [], []>} : vector<64x128xbf16>, vector<128x128xbf16>, vector<64x128xf32> -> vector<64x128xf32>
    %7 = arith.addf %0, %6 : vector<64x128xf32>
    %c0_8 = arith.constant 0 : index
    %c1 = arith.constant 1 : index
    %c0_9 = arith.constant 0 : index
    %c0_10 = arith.constant 0 : index
    %c0_11 = arith.constant 0 : index
    %8 = vector.load %arg2[%c0_8, %c1, %c0_9, %c0_10, %c0_11] : memref<1x4x9x9x128xbf16, #tpu.memory_space<vmem>>, vector<1x1x8x8x128xbf16>
    %9 = vector.shape_cast %8 : vector<1x1x8x8x128xbf16> to vector<8x8x128xbf16>
    %10 = vector.shape_cast %9 : vector<8x8x128xbf16> to vector<64x128xbf16>
    %c1_12 = arith.constant 1 : index
    %c0_13 = arith.constant 0 : index
    %c0_14 = arith.constant 0 : index
    %11 = vector.load %arg3[%c1_12, %c0_13, %c0_14] : memref<9x128x128xbf16, #tpu.memory_space<vmem>>, vector<1x128x128xbf16>
    %12 = vector.shape_cast %11 : vector<1x128x128xbf16> to vector<128x128xbf16>
    %cst_15 = arith.constant dense<0.000000e+00> : vector<64x128xf32>
    %13 = tpu.matmul %10, %12, %cst_15 {dimension_numbers = #tpu.dot_dimension_numbers<[1], [0], [0], [1], [0, 0, 1, 1], [], []>} : vector<64x128xbf16>, vector<128x128xbf16>, vector<64x128xf32> -> vector<64x128xf32>
    %14 = arith.addf %7, %13 : vector<64x128xf32>
    %c0_16 = arith.constant 0 : index
    %c0_17 = arith.constant 0 : index
    %c0_18 = arith.constant 0 : index
    %c1_19 = arith.constant 1 : index
    %c0_20 = arith.constant 0 : index
    %15 = vector.load %arg2[%c0_16, %c0_17, %c0_18, %c1_19, %c0_20] : memref<1x4x9x9x128xbf16, #tpu.memory_space<vmem>>, vector<1x1x8x8x128xbf16>
    %16 = vector.shape_cast %15 : vector<1x1x8x8x128xbf16> to vector<8x8x128xbf16>
    %17 = vector.shape_cast %16 : vector<8x8x128xbf16> to vector<64x128xbf16>
    %c2 = arith.constant 2 : index
    %c0_21 = arith.constant 0 : index
    %c0_22 = arith.constant 0 : index
    %18 = vector.load %arg3[%c2, %c0_21, %c0_22] : memref<9x128x128xbf16, #tpu.memory_space<vmem>>, vector<1x128x128xbf16>
    %19 = vector.shape_cast %18 : vector<1x128x128xbf16> to vector<128x128xbf16>
    %cst_23 = arith.constant dense<0.000000e+00> : vector<64x128xf32>
    %20 = tpu.matmul %17, %19, %cst_23 {dimension_numbers = #tpu.dot_dimension_numbers<[1], [0], [0], [1], [0, 0, 1, 1], [], []>} : vector<64x128xbf16>, vector<128x128xbf16>, vector<64x128xf32> -> vector<64x128xf32>
    %21 = arith.addf %14, %20 : vector<64x128xf32>
    %c0_24 = arith.constant 0 : index
    %c2_25 = arith.constant 2 : index
    %c0_26 = arith.constant 0 : index
    %c0_27 = arith.constant 0 : index
    %c0_28 = arith.constant 0 : index
    %22 = vector.load %arg2[%c0_24, %c2_25, %c0_26, %c0_27, %c0_28] : memref<1x4x9x9x128xbf16, #tpu.memory_space<vmem>>, vector<1x1x8x8x128xbf16>
    %23 = vector.shape_cast %22 : vector<1x1x8x8x128xbf16> to vector<8x8x128xbf16>
    %24 = vector.shape_cast %23 : vector<8x8x128xbf16> to vector<64x128xbf16>
    %c3 = arith.constant 3 : index
    %c0_29 = arith.constant 0 : index
    %c0_30 = arith.constant 0 : index
    %25 = vector.load %arg3[%c3, %c0_29, %c0_30] : memref<9x128x128xbf16, #tpu.memory_space<vmem>>, vector<1x128x128xbf16>
    %26 = vector.shape_cast %25 : vector<1x128x128xbf16> to vector<128x128xbf16>
    %cst_31 = arith.constant dense<0.000000e+00> : vector<64x128xf32>
    %27 = tpu.matmul %24, %26, %cst_31 {dimension_numbers = #tpu.dot_dimension_numbers<[1], [0], [0], [1], [0, 0, 1, 1], [], []>} : vector<64x128xbf16>, vector<128x128xbf16>, vector<64x128xf32> -> vector<64x128xf32>
    %28 = arith.addf %21, %27 : vector<64x128xf32>
    %c0_32 = arith.constant 0 : index
    %c3_33 = arith.constant 3 : index
    %c0_34 = arith.constant 0 : index
    %c0_35 = arith.constant 0 : index
    %c0_36 = arith.constant 0 : index
    %29 = vector.load %arg2[%c0_32, %c3_33, %c0_34, %c0_35, %c0_36] : memref<1x4x9x9x128xbf16, #tpu.memory_space<vmem>>, vector<1x1x8x8x128xbf16>
    %30 = vector.shape_cast %29 : vector<1x1x8x8x128xbf16> to vector<8x8x128xbf16>
    %31 = vector.shape_cast %30 : vector<8x8x128xbf16> to vector<64x128xbf16>
    %c4 = arith.constant 4 : index
    %c0_37 = arith.constant 0 : index
    %c0_38 = arith.constant 0 : index
    %32 = vector.load %arg3[%c4, %c0_37, %c0_38] : memref<9x128x128xbf16, #tpu.memory_space<vmem>>, vector<1x128x128xbf16>
    %33 = vector.shape_cast %32 : vector<1x128x128xbf16> to vector<128x128xbf16>
    %cst_39 = arith.constant dense<0.000000e+00> : vector<64x128xf32>
    %34 = tpu.matmul %31, %33, %cst_39 {dimension_numbers = #tpu.dot_dimension_numbers<[1], [0], [0], [1], [0, 0, 1, 1], [], []>} : vector<64x128xbf16>, vector<128x128xbf16>, vector<64x128xf32> -> vector<64x128xf32>
    %35 = arith.addf %28, %34 : vector<64x128xf32>
    %c0_40 = arith.constant 0 : index
    %c2_41 = arith.constant 2 : index
    %c0_42 = arith.constant 0 : index
    %c1_43 = arith.constant 1 : index
    %c0_44 = arith.constant 0 : index
    %36 = vector.load %arg2[%c0_40, %c2_41, %c0_42, %c1_43, %c0_44] : memref<1x4x9x9x128xbf16, #tpu.memory_space<vmem>>, vector<1x1x8x8x128xbf16>
    %37 = vector.shape_cast %36 : vector<1x1x8x8x128xbf16> to vector<8x8x128xbf16>
    %38 = vector.shape_cast %37 : vector<8x8x128xbf16> to vector<64x128xbf16>
    %c5 = arith.constant 5 : index
    %c0_45 = arith.constant 0 : index
    %c0_46 = arith.constant 0 : index
    %39 = vector.load %arg3[%c5, %c0_45, %c0_46] : memref<9x128x128xbf16, #tpu.memory_space<vmem>>, vector<1x128x128xbf16>
    %40 = vector.shape_cast %39 : vector<1x128x128xbf16> to vector<128x128xbf16>
    %cst_47 = arith.constant dense<0.000000e+00> : vector<64x128xf32>
    %41 = tpu.matmul %38, %40, %cst_47 {dimension_numbers = #tpu.dot_dimension_numbers<[1], [0], [0], [1], [0, 0, 1, 1], [], []>} : vector<64x128xbf16>, vector<128x128xbf16>, vector<64x128xf32> -> vector<64x128xf32>
    %42 = arith.addf %35, %41 : vector<64x128xf32>
    %c0_48 = arith.constant 0 : index
    %c0_49 = arith.constant 0 : index
    %c1_50 = arith.constant 1 : index
    %c0_51 = arith.constant 0 : index
    %c0_52 = arith.constant 0 : index
    %43 = vector.load %arg2[%c0_48, %c0_49, %c1_50, %c0_51, %c0_52] : memref<1x4x9x9x128xbf16, #tpu.memory_space<vmem>>, vector<1x1x8x8x128xbf16>
    %44 = vector.shape_cast %43 : vector<1x1x8x8x128xbf16> to vector<8x8x128xbf16>
    %45 = vector.shape_cast %44 : vector<8x8x128xbf16> to vector<64x128xbf16>
    %c6 = arith.constant 6 : index
    %c0_53 = arith.constant 0 : index
    %c0_54 = arith.constant 0 : index
    %46 = vector.load %arg3[%c6, %c0_53, %c0_54] : memref<9x128x128xbf16, #tpu.memory_space<vmem>>, vector<1x128x128xbf16>
    %47 = vector.shape_cast %46 : vector<1x128x128xbf16> to vector<128x128xbf16>
    %cst_55 = arith.constant dense<0.000000e+00> : vector<64x128xf32>
    %48 = tpu.matmul %45, %47, %cst_55 {dimension_numbers = #tpu.dot_dimension_numbers<[1], [0], [0], [1], [0, 0, 1, 1], [], []>} : vector<64x128xbf16>, vector<128x128xbf16>, vector<64x128xf32> -> vector<64x128xf32>
    %49 = arith.addf %42, %48 : vector<64x128xf32>
    %c0_56 = arith.constant 0 : index
    %c1_57 = arith.constant 1 : index
    %c1_58 = arith.constant 1 : index
    %c0_59 = arith.constant 0 : index
    %c0_60 = arith.constant 0 : index
    %50 = vector.load %arg2[%c0_56, %c1_57, %c1_58, %c0_59, %c0_60] : memref<1x4x9x9x128xbf16, #tpu.memory_space<vmem>>, vector<1x1x8x8x128xbf16>
    %51 = vector.shape_cast %50 : vector<1x1x8x8x128xbf16> to vector<8x8x128xbf16>
    %52 = vector.shape_cast %51 : vector<8x8x128xbf16> to vector<64x128xbf16>
    %c7 = arith.constant 7 : index
    %c0_61 = arith.constant 0 : index
    %c0_62 = arith.constant 0 : index
    %53 = vector.load %arg3[%c7, %c0_61, %c0_62] : memref<9x128x128xbf16, #tpu.memory_space<vmem>>, vector<1x128x128xbf16>
    %54 = vector.shape_cast %53 : vector<1x128x128xbf16> to vector<128x128xbf16>
    %cst_63 = arith.constant dense<0.000000e+00> : vector<64x128xf32>
    %55 = tpu.matmul %52, %54, %cst_63 {dimension_numbers = #tpu.dot_dimension_numbers<[1], [0], [0], [1], [0, 0, 1, 1], [], []>} : vector<64x128xbf16>, vector<128x128xbf16>, vector<64x128xf32> -> vector<64x128xf32>
    %56 = arith.addf %49, %55 : vector<64x128xf32>
    %c0_64 = arith.constant 0 : index
    %c0_65 = arith.constant 0 : index
    %c1_66 = arith.constant 1 : index
    %c1_67 = arith.constant 1 : index
    %c0_68 = arith.constant 0 : index
    %57 = vector.load %arg2[%c0_64, %c0_65, %c1_66, %c1_67, %c0_68] : memref<1x4x9x9x128xbf16, #tpu.memory_space<vmem>>, vector<1x1x8x8x128xbf16>
    %58 = vector.shape_cast %57 : vector<1x1x8x8x128xbf16> to vector<8x8x128xbf16>
    %59 = vector.shape_cast %58 : vector<8x8x128xbf16> to vector<64x128xbf16>
    %c8 = arith.constant 8 : index
    %c0_69 = arith.constant 0 : index
    %c0_70 = arith.constant 0 : index
    %60 = vector.load %arg3[%c8, %c0_69, %c0_70] : memref<9x128x128xbf16, #tpu.memory_space<vmem>>, vector<1x128x128xbf16>
    %61 = vector.shape_cast %60 : vector<1x128x128xbf16> to vector<128x128xbf16>
    %cst_71 = arith.constant dense<0.000000e+00> : vector<64x128xf32>
    %62 = tpu.matmul %59, %61, %cst_71 {dimension_numbers = #tpu.dot_dimension_numbers<[1], [0], [0], [1], [0, 0, 1, 1], [], []>} : vector<64x128xbf16>, vector<128x128xbf16>, vector<64x128xf32> -> vector<64x128xf32>
    %63 = arith.addf %56, %62 : vector<64x128xf32>
    %c0_72 = arith.constant 0 : index
    %c0_73 = arith.constant 0 : index
    %64 = vector.load %arg4[%c0_72, %c0_73] : memref<1x128xf32, #tpu.memory_space<vmem>>, vector<1x128xf32>
    %65 = vector.broadcast %64 : vector<1x128xf32> to vector<64x128xf32>
    %66 = arith.addf %63, %65 : vector<64x128xf32>
    %cst_74 = arith.constant 0.000000e+00 : f32
    %67 = vector.broadcast %cst_74 : f32 to vector<64x128xf32>
    %68 = arith.maximumf %66, %67 : vector<64x128xf32>
    %69 = vector.shape_cast %68 : vector<64x128xf32> to vector<1x8x8x128xf32>
    %70 = arith.truncf %69 : vector<1x8x8x128xf32> to vector<1x8x8x128xbf16>
    %c0_75 = arith.constant 0 : index
    %c0_76 = arith.constant 0 : index
    %c0_77 = arith.constant 0 : index
    %c0_78 = arith.constant 0 : index
    %71 = vector.load %arg5[%c0_75, %c0_76, %c0_77, %c0_78] : memref<1x8x8x128xbf16, #tpu.memory_space<vmem>>, vector<1x8x8x128xbf16>
    tpu.vector_store %arg5[%c0_75, %c0_76, %c0_77, %c0_78], %70 {strides = array<i32>} : memref<1x8x8x128xbf16, #tpu.memory_space<vmem>>, vector<1x8x8x128xbf16>,
    return
  }
  func.func @transform_0(%arg0: i32, %arg1: i32) -> (i32, i32, i32, i32, i32) {
    %c0_i32 = arith.constant 0 : i32
    %c0_i32_0 = arith.constant 0 : i32
    %c0_i32_1 = arith.constant 0 : i32
    %c0_i32_2 = arith.constant 0 : i32
    %c0_i32_3 = arith.constant 0 : i32
    return %arg0, %c0_i32, %c0_i32_0, %c0_i32_1, %c0_i32_2 : i32, i32, i32, i32, i32
  }
  func.func @transform_1(%arg0: i32, %arg1: i32) -> (i32, i32, i32) {
    %c0_i32 = arith.constant 0 : i32
    %c0_i32_0 = arith.constant 0 : i32
    %c0_i32_1 = arith.constant 0 : i32
    return %c0_i32, %c0_i32_0, %arg1 : i32, i32, i32
  }
  func.func @transform_2(%arg0: i32, %arg1: i32) -> (i32, i32) {
    %c0_i32 = arith.constant 0 : i32
    %c0_i32_0 = arith.constant 0 : i32
    return %c0_i32, %arg1 : i32, i32
  }
  func.func @transform_3(%arg0: i32, %arg1: i32) -> (i32, i32, i32, i32) {
    %c0_i32 = arith.constant 0 : i32
    %c0_i32_0 = arith.constant 0 : i32
    %c0_i32_1 = arith.constant 0 : i32
    return %arg0, %c0_i32, %c0_i32_0, %arg1 : i32, i32, i32, i32
  }
}

module attributes {stable_mosaic.version = 11 : i64} {
  func.func @_mm_kernel(%arg0: i32, %arg1: i32, %arg2: i32, %arg3: memref<128x128xbf16, #tpu.memory_space<vmem>>, %arg4: memref<128x128xbf16, #tpu.memory_space<vmem>>, %arg5: memref<1x128xf32, #tpu.memory_space<vmem>>, %arg6: memref<128x128xbf16, #tpu.memory_space<vmem>>, %arg7: memref<128x128xf32, #tpu.memory_space<vmem>>, %arg8: memref<128x128xf32, #tpu.memory_space<vmem>>) attributes {dimension_semantics = [#tpu.dimension_semantics<parallel>, #tpu.dimension_semantics<parallel>, #tpu.dimension_semantics<arbitrary>], iteration_bounds = array<i64: 1, 1, 1>, scalar_prefetch = 0 : i64, scratch_operands = 1 : i64, tpu.core_type = #tpu.core_type<tc>, window_params = [{transform_indices = @transform_0, window_bounds = array<i64: 128, 128>}, {transform_indices = @transform_1, window_bounds = array<i64: 128, 128>}, {transform_indices = @transform_2, window_bounds = array<i64: 1, 128>}, {transform_indices = @transform_3, window_bounds = array<i64: 128, 128>}, {transform_indices = @transform_4, window_bounds = array<i64: 128, 128>}]} {
    %c0_i32 = arith.constant 0 : i32
    %0 = arith.cmpi eq, %arg2, %c0_i32 : i32
    %1 = arith.extui %0 : i1 to i32
    %c0_i32_0 = arith.constant 0 : i32
    %2 = arith.cmpi ne, %1, %c0_i32_0 : i32
    scf.if %2 {
      %c0_10 = arith.constant 0 : index
      %c0_11 = arith.constant 0 : index
      %12 = vector.load %arg6[%c0_10, %c0_11] : memref<128x128xbf16, #tpu.memory_space<vmem>>, vector<128x128xbf16>
      %13 = arith.extf %12 : vector<128x128xbf16> to vector<128x128xf32>
      %c0_12 = arith.constant 0 : index
      %c0_13 = arith.constant 0 : index
      %14 = vector.load %arg8[%c0_12, %c0_13] : memref<128x128xf32, #tpu.memory_space<vmem>>, vector<128x128xf32>
      tpu.vector_store %arg8[%c0_12, %c0_13], %13 {strides = array<i32>} : memref<128x128xf32, #tpu.memory_space<vmem>>, vector<128x128xf32>,
    } else {
    }
    %c0 = arith.constant 0 : index
    %c0_1 = arith.constant 0 : index
    %3 = vector.load %arg8[%c0, %c0_1] : memref<128x128xf32, #tpu.memory_space<vmem>>, vector<128x128xf32>
    %c0_2 = arith.constant 0 : index
    %c0_3 = arith.constant 0 : index
    %4 = vector.load %arg3[%c0_2, %c0_3] : memref<128x128xbf16, #tpu.memory_space<vmem>>, vector<128x128xbf16>
    %c0_4 = arith.constant 0 : index
    %c0_5 = arith.constant 0 : index
    %5 = vector.load %arg4[%c0_4, %c0_5] : memref<128x128xbf16, #tpu.memory_space<vmem>>, vector<128x128xbf16>
    %cst = arith.constant dense<0.000000e+00> : vector<128x128xf32>
    %6 = tpu.matmul %4, %5, %cst {dimension_numbers = #tpu.dot_dimension_numbers<[1], [0], [0], [1], [0, 0, 1, 1], [], []>} : vector<128x128xbf16>, vector<128x128xbf16>, vector<128x128xf32> -> vector<128x128xf32>
    %7 = arith.addf %3, %6 : vector<128x128xf32>
    %c0_6 = arith.constant 0 : index
    %c0_7 = arith.constant 0 : index
    %8 = vector.load %arg8[%c0_6, %c0_7] : memref<128x128xf32, #tpu.memory_space<vmem>>, vector<128x128xf32>
    tpu.vector_store %arg8[%c0_6, %c0_7], %7 {strides = array<i32>} : memref<128x128xf32, #tpu.memory_space<vmem>>, vector<128x128xf32>,
    %c0_i32_8 = arith.constant 0 : i32
    %9 = arith.cmpi eq, %arg2, %c0_i32_8 : i32
    %10 = arith.extui %9 : i1 to i32
    %c0_i32_9 = arith.constant 0 : i32
    %11 = arith.cmpi ne, %10, %c0_i32_9 : i32
    scf.if %11 {
      %c0_10 = arith.constant 0 : index
      %c0_11 = arith.constant 0 : index
      %12 = vector.load %arg8[%c0_10, %c0_11] : memref<128x128xf32, #tpu.memory_space<vmem>>, vector<128x128xf32>
      %c0_12 = arith.constant 0 : index
      %c0_13 = arith.constant 0 : index
      %13 = vector.load %arg5[%c0_12, %c0_13] : memref<1x128xf32, #tpu.memory_space<vmem>>, vector<1x128xf32>
      %14 = vector.broadcast %13 : vector<1x128xf32> to vector<128x128xf32>
      %15 = arith.addf %12, %14 : vector<128x128xf32>
      %cst_14 = arith.constant 0.000000e+00 : f32
      %16 = vector.broadcast %cst_14 : f32 to vector<128x128xf32>
      %17 = arith.maximumf %15, %16 : vector<128x128xf32>
      %c0_15 = arith.constant 0 : index
      %c0_16 = arith.constant 0 : index
      %18 = vector.load %arg7[%c0_15, %c0_16] : memref<128x128xf32, #tpu.memory_space<vmem>>, vector<128x128xf32>
      tpu.vector_store %arg7[%c0_15, %c0_16], %17 {strides = array<i32>} : memref<128x128xf32, #tpu.memory_space<vmem>>, vector<128x128xf32>,
    } else {
    }
    return
  }
  func.func @transform_0(%arg0: i32, %arg1: i32, %arg2: i32) -> (i32, i32) {
    %c0_i32 = arith.constant 0 : i32
    return %arg0, %arg2 : i32, i32
  }
  func.func @transform_1(%arg0: i32, %arg1: i32, %arg2: i32) -> (i32, i32) {
    %c0_i32 = arith.constant 0 : i32
    return %arg2, %arg1 : i32, i32
  }
  func.func @transform_2(%arg0: i32, %arg1: i32, %arg2: i32) -> (i32, i32) {
    %c0_i32 = arith.constant 0 : i32
    %c0_i32_0 = arith.constant 0 : i32
    return %c0_i32, %arg1 : i32, i32
  }
  func.func @transform_3(%arg0: i32, %arg1: i32, %arg2: i32) -> (i32, i32) {
    %c0_i32 = arith.constant 0 : i32
    return %arg0, %arg1 : i32, i32
  }
  func.func @transform_4(%arg0: i32, %arg1: i32, %arg2: i32) -> (i32, i32) {
    %c0_i32 = arith.constant 0 : i32
    return %arg0, %arg1 : i32, i32
  }
}

</mosaic_0001>

<llo_original>
// kernel: bottleneck_forward.6
$region0: #{bottleneck_forward.6}
  #allocation0 [shape = 'u32[]', space=smem, size = 0x4, offset = 0x4, fixed_abs, tag = 'smem constant byte address 0x4 - core index']
  #allocation1 [shape = 'u32[144,128]{1,0:T(1,128)}', space=vmem, size = 0x12000, scoped, tag = 'internal scratch']
  #allocation2 [shape = 'f32[128,128]{1,0:T(8,128)}', space=vmem, size = 0x10000, scoped, tag = 'scratch operand']
  %s0 = inlined_call_operand.vmem [shape: bf16[128,16], index: 0, kind: input, shape index: {}]
  %s1 = inlined_call_operand.vmem [shape: bf16[16,128], index: 1, kind: input, shape index: {}]
  %s2 = inlined_call_operand.vmem [shape: f32[1,128], index: 2, kind: input, shape index: {}]
  %s3 = inlined_call_operand.vmem [shape: bf16[128,128], index: 3, kind: output, shape index: {}]
  %s4 = sld [smem:[#allocation0]]
  $region30: #{bottleneck_forward.6} parent=0
    _
  %s6 = ssub.s32 1, %s4
  %s7 = scalar_select 0, %s6, %s4
  // Predicated region
  $region2: #{bottleneck_forward.6} parent=0 // pred_check
    _
  $region3: #{bottleneck_forward.6} parent=0 // pred_check_branch
    %9 = sbr.rel (0) target = $region5
  $region4: #{bottleneck_forward.6} parent=0 // pred_region
    _
  $region5: #{bottleneck_forward.6} parent=0 // pred_fallthru
    _
  // Predicated region
  $region6: #{bottleneck_forward.6} parent=0 // pred_check
    _
  $region7: #{bottleneck_forward.6} parent=0 // pred_check_branch
    %11 = sbr.rel (0) target = $region9
  $region8: #{bottleneck_forward.6} parent=0 // pred_region
    _
  $region9: #{bottleneck_forward.6} parent=0 // pred_fallthru
    _
  // Predicated region
  $region10: #{bottleneck_forward.6} parent=0 // pred_check
    _
  $region11: #{bottleneck_forward.6} parent=0 // pred_check_branch
    %13 = sbr.rel (0) target = $region13
  $region12: #{bottleneck_forward.6} parent=0 // pred_region
    _
  $region13: #{bottleneck_forward.6} parent=0 // pred_fallthru
    _
  %p15 = scmp.eq.s32.totalorder 0, 0
  // Predicated region
  $region14: #{bottleneck_forward.6} parent=0 // pred_check
    %p16 = pneg %p15
  $region15: #{bottleneck_forward.6} parent=0 // pred_check_branch
    %18 = sbr.rel (%p16) target = $region17
  $region16: #{bottleneck_forward.6} parent=0 // pred_region
    %19 = vst [vmem:[#allocation2] sm:$0xff] 0.0
    %20 = vst [vmem:[#allocation2 + $0x8] sm:$0xff] 0.0
    %21 = vst [vmem:[#allocation2 + $0x10] sm:$0xff] 0.0
    %22 = vst [vmem:[#allocation2 + $0x18] sm:$0xff] 0.0
    %23 = vst [vmem:[#allocation2 + $0x20] sm:$0xff] 0.0
    %24 = vst [vmem:[#allocation2 + $0x28] sm:$0xff] 0.0
    %25 = vst [vmem:[#allocation2 + $0x30] sm:$0xff] 0.0
    %26 = vst [vmem:[#allocation2 + $0x38] sm:$0xff] 0.0
    %27 = vst [vmem:[#allocation2 + $0x40] sm:$0xff] 0.0
    %28 = vst [vmem:[#allocation2 + $0x48] sm:$0xff] 0.0
    %29 = vst [vmem:[#allocation2 + $0x50] sm:$0xff] 0.0
    %30 = vst [vmem:[#allocation2 + $0x58] sm:$0xff] 0.0
    %31 = vst [vmem:[#allocation2 + $0x60] sm:$0xff] 0.0
    %32 = vst [vmem:[#allocation2 + $0x68] sm:$0xff] 0.0
    %33 = vst [vmem:[#allocation2 + $0x70] sm:$0xff] 0.0
    %34 = vst [vmem:[#allocation2 + $0x78] sm:$0xff] 0.0
  $region17: #{bottleneck_forward.6} parent=0 // pred_fallthru
    _
  %v35 = vld [vmem:[#allocation2] sm:$0xff]
  %v36 = vld [vmem:[#allocation2 + $0x8] sm:$0xff]
  %v37 = vld [vmem:[#allocation2 + $0x10] sm:$0xff]
  %v38 = vld [vmem:[#allocation2 + $0x18] sm:$0xff]
  %v39 = vld [vmem:[#allocation2 + $0x20] sm:$0xff]
  %v40 = vld [vmem:[#allocation2 + $0x28] sm:$0xff]
  %v41 = vld [vmem:[#allocation2 + $0x30] sm:$0xff]
  %v42 = vld [vmem:[#allocation2 + $0x38] sm:$0xff]
  %v43 = vld [vmem:[#allocation2 + $0x40] sm:$0xff]
  %v44 = vld [vmem:[#allocation2 + $0x48] sm:$0xff]
  %v45 = vld [vmem:[#allocation2 + $0x50] sm:$0xff]
  %v46 = vld [vmem:[#allocation2 + $0x58] sm:$0xff]
  %v47 = vld [vmem:[#allocation2 + $0x60] sm:$0xff]
  %v48 = vld [vmem:[#allocation2 + $0x68] sm:$0xff]
  %v49 = vld [vmem:[#allocation2 + $0x70] sm:$0xff]
  %v50 = vld [vmem:[#allocation2 + $0x78] sm:$0xff]
  %v51 = vld [vmem:[%s0] sm:$0xf]
  %v52 = vld [vmem:[%s0 + $0x4] sm:$0xf]
  %v53 = vld [vmem:[%s0 + $0x8] sm:$0xf]
  %v54 = vld [vmem:[%s0 + $0xc] sm:$0xf]
  %v55 = vld [vmem:[%s0 + $0x10] sm:$0xf]
  %v56 = vld [vmem:[%s0 + $0x14] sm:$0xf]
  %v57 = vld [vmem:[%s0 + $0x18] sm:$0xf]
  %v58 = vld [vmem:[%s0 + $0x1c] sm:$0xf]
  %v59 = vld [vmem:[%s0 + $0x20] sm:$0xf]
  %v60 = vld [vmem:[%s0 + $0x24] sm:$0xf]
  %v61 = vld [vmem:[%s0 + $0x28] sm:$0xf]
  %v62 = vld [vmem:[%s0 + $0x2c] sm:$0xf]
  %v63 = vld [vmem:[%s0 + $0x30] sm:$0xf]
  %v64 = vld [vmem:[%s0 + $0x34] sm:$0xf]
  %v65 = vld [vmem:[%s0 + $0x38] sm:$0xf]
  %v66 = vld [vmem:[%s0 + $0x3c] sm:$0xf]
  %v67 = vld [vmem:[%s1] sm:$0xf]
  %v68 = vld [vmem:[%s1 + $0x4] sm:$0xf]
  %v85 = vunpack.c.l.b16 %v51
  %v86 = vunpack.c.l.b16 %v52
  %v87 = vunpack.c.l.b16 %v53
  %v88 = vunpack.c.l.b16 %v54
  %v89 = vunpack.c.l.b16 %v55
  %v90 = vunpack.c.l.b16 %v56
  %v91 = vunpack.c.l.b16 %v57
  %v92 = vunpack.c.l.b16 %v58
  %v93 = vunpack.c.l.b16 %v59
  %v94 = vunpack.c.l.b16 %v60
  %v95 = vunpack.c.l.b16 %v61
  %v96 = vunpack.c.l.b16 %v62
  %v97 = vunpack.c.l.b16 %v63
  %v98 = vunpack.c.l.b16 %v64
  %v99 = vunpack.c.l.b16 %v65
  %v100 = vunpack.c.l.b16 %v66
  %v101 = vpack.c.b16 %v86, %v85
  %v102 = vpack.c.b16 %v88, %v87
  %v103 = vpack.c.b16 %v90, %v89
  %v104 = vpack.c.b16 %v92, %v91
  %v105 = vpack.c.b16 %v94, %v93
  %v106 = vpack.c.b16 %v96, %v95
  %v107 = vpack.c.b16 %v98, %v97
  %v108 = vpack.c.b16 %v100, %v99
  %v111 = vunpack.c.l.b16 %v67
  %v112 = vunpack.c.l.b16 %v68
  %v113 = vpack.c.b16 %v112, %v111
  %vm115 = vcmask 130048
  %v117 = vsel %vm115, %v101, 0
  %v120 = vsel %vm115, %v102, 0
  %v123 = vsel %vm115, %v103, 0
  %v126 = vsel %vm115, %v104, 0
  %v129 = vsel %vm115, %v105, 0
  %v132 = vsel %vm115, %v106, 0
  %v135 = vsel %vm115, %v107, 0
  %v138 = vsel %vm115, %v108, 0
  %140 = vmatprep.subr.bf16.mxu0 0
  %141 = vmatpush1.bf16.msra.mxu0 %v113
  %142 = vmatprep.subr.bf16.mxu0 0
  %143 = vmatpush1.bf16.msra.mxu0 0
  %144 = vmatprep.subr.bf16.mxu0 0
  %145 = vmatpush1.bf16.msra.mxu0 0
  %146 = vmatprep.subr.bf16.mxu0 0
  %147 = vmatpush1.bf16.msra.mxu0 0
  %148 = vmatprep.subr.bf16.mxu0 0
  %149 = vmatpush1.bf16.msra.mxu0 0
  %150 = vmatprep.subr.bf16.mxu0 0
  %151 = vmatpush1.bf16.msra.mxu0 0
  %152 = vmatprep.subr.bf16.mxu0 0
  %153 = vmatpush1.bf16.msra.mxu0 0
  %154 = vmatprep.subr.bf16.mxu0 0
  %155 = vmatpush1.bf16.msra.mxu0 0
  %156 = vmatprep.subr.bf16.mxu0 0
  %157 = vmatpush1.bf16.msra.mxu0 0
  %158 = vmatprep.subr.bf16.mxu0 0
  %159 = vmatpush1.bf16.msra.mxu0 0
  %160 = vmatprep.subr.bf16.mxu0 0
  %161 = vmatpush1.bf16.msra.mxu0 0
  %162 = vmatprep.subr.bf16.mxu0 0
  %163 = vmatpush1.bf16.msra.mxu0 0
  %164 = vmatprep.subr.bf16.mxu0 0
  %165 = vmatpush1.bf16.msra.mxu0 0
  %166 = vmatprep.subr.bf16.mxu0 0
  %167 = vmatpush1.bf16.msra.mxu0 0
  %168 = vmatprep.subr.bf16.mxu0 0
  %169 = vmatpush1.bf16.msra.mxu0 0
  %170 = vmatprep.subr.bf16.mxu0 0
  %171 = vmatpush1.bf16.msra.mxu0 0
  %172 = vmatprep.mubr.bf16.mxu0 0
  %173 = vmatmul.mubr.bf16.gmra.mrb[0].mxu0 %v117
  %v174 = vpop.f32.mrb[0].mxu0
  %v175 = vadd.f32 0.0, %v174
  %v176 = vpop.f32.mrb[0].mxu0
  %v177 = vpop.f32.mrb[0].mxu0
  %v178 = vadd.f32 0.0, %v177
  %v179 = vpop.f32.mrb[0].mxu0
  %180 = vmatprep.mubr.bf16.mxu0 0
  %181 = vmatmul.mubr.bf16.gmra.mrb[0].mxu0 %v120
  %v182 = vpop.f32.mrb[0].mxu0
  %v183 = vadd.f32 0.0, %v182
  %v184 = vpop.f32.mrb[0].mxu0
  %v185 = vpop.f32.mrb[0].mxu0
  %v186 = vadd.f32 0.0, %v185
  %v187 = vpop.f32.mrb[0].mxu0
  %188 = vmatprep.mubr.bf16.mxu0 0
  %189 = vmatmul.mubr.bf16.gmra.mrb[0].mxu0 %v123
  %v190 = vpop.f32.mrb[0].mxu0
  %v191 = vadd.f32 0.0, %v190
  %v192 = vpop.f32.mrb[0].mxu0
  %v193 = vpop.f32.mrb[0].mxu0
  %v194 = vadd.f32 0.0, %v193
  %v195 = vpop.f32.mrb[0].mxu0
  %196 = vmatprep.mubr.bf16.mxu0 0
  %197 = vmatmul.mubr.bf16.gmra.mrb[0].mxu0 %v126
  %v198 = vpop.f32.mrb[0].mxu0
  %v199 = vadd.f32 0.0, %v198
  %v200 = vpop.f32.mrb[0].mxu0
  %v201 = vpop.f32.mrb[0].mxu0
  %v202 = vadd.f32 0.0, %v201
  %v203 = vpop.f32.mrb[0].mxu0
  %204 = vmatprep.mubr.bf16.mxu0 0
  %205 = vmatmul.mubr.bf16.gmra.mrb[0].mxu0 %v129
  %v206 = vpop.f32.mrb[0].mxu0
  %v207 = vadd.f32 0.0, %v206
  %v208 = vpop.f32.mrb[0].mxu0
  %v209 = vpop.f32.mrb[0].mxu0
  %v210 = vadd.f32 0.0, %v209
  %v211 = vpop.f32.mrb[0].mxu0
  %212 = vmatprep.mubr.bf16.mxu0 0
  %213 = vmatmul.mubr.bf16.gmra.mrb[0].mxu0 %v132
  %v214 = vpop.f32.mrb[0].mxu0
  %v215 = vadd.f32 0.0, %v214
  %v216 = vpop.f32.mrb[0].mxu0
  %v217 = vpop.f32.mrb[0].mxu0
  %v218 = vadd.f32 0.0, %v217
  %v219 = vpop.f32.mrb[0].mxu0
  %220 = vmatprep.mubr.bf16.mxu0 0
  %221 = vmatmul.mubr.bf16.gmra.mrb[0].mxu0 %v135
  %v222 = vpop.f32.mrb[0].mxu0
  %v223 = vadd.f32 0.0, %v222
  %v224 = vpop.f32.mrb[0].mxu0
  %v225 = vpop.f32.mrb[0].mxu0
  %v226 = vadd.f32 0.0, %v225
  %v227 = vpop.f32.mrb[0].mxu0
  %228 = vmatprep.mubr.bf16.mxu0 0
  %229 = vmatmul.mubr.bf16.gmra.mrb[0].mxu0 %v138
  %v230 = vpop.f32.mrb[0].mxu0
  %v231 = vadd.f32 0.0, %v230
  %v232 = vpop.f32.mrb[0].mxu0
  %v233 = vpop.f32.mrb[0].mxu0
  %v234 = vadd.f32 0.0, %v233
  %v235 = vpop.f32.mrb[0].mxu0
  %236 = vdwg.mxu0
  %v237 = vadd.f32 %v35, %v175
  %v238 = vadd.f32 %v36, %v178
  %v239 = vadd.f32 %v37, %v183
  %v240 = vadd.f32 %v38, %v186
  %v241 = vadd.f32 %v39, %v191
  %v242 = vadd.f32 %v40, %v194
  %v243 = vadd.f32 %v41, %v199
  %v244 = vadd.f32 %v42, %v202
  %v245 = vadd.f32 %v43, %v207
  %v246 = vadd.f32 %v44, %v210
  %v247 = vadd.f32 %v45, %v215
  %v248 = vadd.f32 %v46, %v218
  %v249 = vadd.f32 %v47, %v223
  %v250 = vadd.f32 %v48, %v226
  %v251 = vadd.f32 %v49, %v231
  %v252 = vadd.f32 %v50, %v234
  %253 = vst [vmem:[#allocation2] sm:$0xff] %v237
  %254 = vst [vmem:[#allocation2 + $0x8] sm:$0xff] %v238
  %255 = vst [vmem:[#allocation2 + $0x10] sm:$0xff] %v239
  %256 = vst [vmem:[#allocation2 + $0x18] sm:$0xff] %v240
  %257 = vst [vmem:[#allocation2 + $0x20] sm:$0xff] %v241
  %258 = vst [vmem:[#allocation2 + $0x28] sm:$0xff] %v242
  %259 = vst [vmem:[#allocation2 + $0x30] sm:$0xff] %v243
  %260 = vst [vmem:[#allocation2 + $0x38] sm:$0xff] %v244
  %261 = vst [vmem:[#allocation2 + $0x40] sm:$0xff] %v245
  %262 = vst [vmem:[#allocation2 + $0x48] sm:$0xff] %v246
  %263 = vst [vmem:[#allocation2 + $0x50] sm:$0xff] %v247
  %264 = vst [vmem:[#allocation2 + $0x58] sm:$0xff] %v248
  %265 = vst [vmem:[#allocation2 + $0x60] sm:$0xff] %v249
  %266 = vst [vmem:[#allocation2 + $0x68] sm:$0xff] %v250
  %267 = vst [vmem:[#allocation2 + $0x70] sm:$0xff] %v251
  %268 = vst [vmem:[#allocation2 + $0x78] sm:$0xff] %v252
  // Predicated region
  $region18: #{bottleneck_forward.6} parent=0 // pred_check
    %p269 = pneg %p15
  $region19: #{bottleneck_forward.6} parent=0 // pred_check_branch
    %271 = sbr.rel (%p269) target = $region21
  $region20: #{bottleneck_forward.6} parent=0 // pred_region
    %v272 = vld [vmem:[#allocation2] sm:$0xff]
    %v273 = vld [vmem:[#allocation2 + $0x8] sm:$0xff]
    %v274 = vld [vmem:[#allocation2 + $0x10] sm:$0xff]
    %v275 = vld [vmem:[#allocation2 + $0x18] sm:$0xff]
    %v276 = vld [vmem:[#allocation2 + $0x20] sm:$0xff]
    %v277 = vld [vmem:[#allocation2 + $0x28] sm:$0xff]
    %v278 = vld [vmem:[#allocation2 + $0x30] sm:$0xff]
    %v279 = vld [vmem:[#allocation2 + $0x38] sm:$0xff]
    %v280 = vld [vmem:[#allocation2 + $0x40] sm:$0xff]
    %v281 = vld [vmem:[#allocation2 + $0x48] sm:$0xff]
    %v282 = vld [vmem:[#allocation2 + $0x50] sm:$0xff]
    %v283 = vld [vmem:[#allocation2 + $0x58] sm:$0xff]
    %v284 = vld [vmem:[#allocation2 + $0x60] sm:$0xff]
    %v285 = vld [vmem:[#allocation2 + $0x68] sm:$0xff]
    %v286 = vld [vmem:[#allocation2 + $0x70] sm:$0xff]
    %v287 = vld [vmem:[#allocation2 + $0x78] sm:$0xff]
    %v288 = vld [vmem:[%s2] sm:$0x1]
    %v290 = vlaneseq
    %v291 = vshrl.u32 %v290, 7
    %v292 = vsub.s32 0, %v291
    %v293 = vrot.slane %v288, %v292
    %v295 = vadd.f32 %v272, %v293
    %v296 = vadd.f32 %v273, %v293
    %v297 = vadd.f32 %v274, %v293
    %v298 = vadd.f32 %v275, %v293
    %v299 = vadd.f32 %v276, %v293
    %v300 = vadd.f32 %v277, %v293
    %v301 = vadd.f32 %v278, %v293
    %v302 = vadd.f32 %v279, %v293
    %v303 = vadd.f32 %v280, %v293
    %v304 = vadd.f32 %v281, %v293
    %v305 = vadd.f32 %v282, %v293
    %v306 = vadd.f32 %v283, %v293
    %v307 = vadd.f32 %v284, %v293
    %v308 = vadd.f32 %v285, %v293
    %v309 = vadd.f32 %v286, %v293
    %v310 = vadd.f32 %v287, %v293
    %v311 = vpack.c.bf16 %v296, %v295
    %v312 = vpack.c.bf16 %v298, %v297
    %v313 = vpack.c.bf16 %v300, %v299
    %v314 = vpack.c.bf16 %v302, %v301
    %v315 = vpack.c.bf16 %v304, %v303
    %v316 = vpack.c.bf16 %v306, %v305
    %v317 = vpack.c.bf16 %v308, %v307
    %v318 = vpack.c.bf16 %v310, %v309
    %v327 = vunpack.c.l.b16 %v311
    %v328 = vunpack.c.h.b16 %v311
    %v329 = vunpack.c.l.b16 %v312
    %v330 = vunpack.c.h.b16 %v312
    %v331 = vunpack.c.l.b16 %v313
    %v332 = vunpack.c.h.b16 %v313
    %v333 = vunpack.c.l.b16 %v314
    %v334 = vunpack.c.h.b16 %v314
    %v335 = vunpack.c.l.b16 %v315
    %v336 = vunpack.c.h.b16 %v315
    %v337 = vunpack.c.l.b16 %v316
    %v338 = vunpack.c.h.b16 %v316
    %v339 = vunpack.c.l.b16 %v317
    %v340 = vunpack.c.h.b16 %v317
    %v341 = vunpack.c.l.b16 %v318
    %v342 = vunpack.c.h.b16 %v318
    %v343 = vpack.c.b16 %v327, %v327
    %v344 = vpack.c.b16 %v328, %v328
    %v345 = vpack.c.b16 %v329, %v329
    %v346 = vpack.c.b16 %v330, %v330
    %v347 = vpack.c.b16 %v331, %v331
    %v348 = vpack.c.b16 %v332, %v332
    %v349 = vpack.c.b16 %v333, %v333
    %v350 = vpack.c.b16 %v334, %v334
    %v351 = vpack.c.b16 %v335, %v335
    %v352 = vpack.c.b16 %v336, %v336
    %v353 = vpack.c.b16 %v337, %v337
    %v354 = vpack.c.b16 %v338, %v338
    %v355 = vpack.c.b16 %v339, %v339
    %v356 = vpack.c.b16 %v340, %v340
    %v357 = vpack.c.b16 %v341, %v341
    %v358 = vpack.c.b16 %v342, %v342
    %375 = vst [vmem:[%s3] sm:$0xf] %v343
    %376 = vst [vmem:[%s3 + $0x4] sm:$0xf] %v344
    %377 = vst [vmem:[%s3 + $0x8] sm:$0xf] %v345
    %378 = vst [vmem:[%s3 + $0xc] sm:$0xf] %v346
    %379 = vst [vmem:[%s3 + $0x10] sm:$0xf] %v347
    %380 = vst [vmem:[%s3 + $0x14] sm:$0xf] %v348
    %381 = vst [vmem:[%s3 + $0x18] sm:$0xf] %v349
    %382 = vst [vmem:[%s3 + $0x1c] sm:$0xf] %v350
    %383 = vst [vmem:[%s3 + $0x20] sm:$0xf] %v351
    %384 = vst [vmem:[%s3 + $0x24] sm:$0xf] %v352
    %385 = vst [vmem:[%s3 + $0x28] sm:$0xf] %v353
    %386 = vst [vmem:[%s3 + $0x2c] sm:$0xf] %v354
    %387 = vst [vmem:[%s3 + $0x30] sm:$0xf] %v355
    %388 = vst [vmem:[%s3 + $0x34] sm:$0xf] %v356
    %389 = vst [vmem:[%s3 + $0x38] sm:$0xf] %v357
    %390 = vst [vmem:[%s3 + $0x3c] sm:$0xf] %v358
  $region21: #{bottleneck_forward.6} parent=0 // pred_fallthru
    _
  // Predicated region
  $region22: #{bottleneck_forward.6} parent=0 // pred_check
    _
  $region23: #{bottleneck_forward.6} parent=0 // pred_check_branch
    %392 = sbr.rel (0) target = $region25
  $region24: #{bottleneck_forward.6} parent=0 // pred_region
    _
  $region25: #{bottleneck_forward.6} parent=0 // pred_fallthru
    _
  // Predicated region
  $region26: #{bottleneck_forward.6} parent=0 // pred_check
    _
  $region27: #{bottleneck_forward.6} parent=0 // pred_check_branch
    %394 = sbr.rel (0) target = $region29
  $region28: #{bottleneck_forward.6} parent=0 // pred_region
    _
  $region29: #{bottleneck_forward.6} parent=0 // pred_fallthru
    _

// kernel: bottleneck_forward.4
$region0: #{bottleneck_forward.4}
  #allocation0 [shape = 'u32[]', space=smem, size = 0x4, offset = 0x4, fixed_abs, tag = 'smem constant byte address 0x4 - core index']
  #allocation1 [shape = 'u32[144,128]{1,0:T(1,128)}', space=vmem, size = 0x12000, scoped, tag = 'internal scratch']
  #allocation2 [shape = 'f32[256,128]{1,0:T(8,128)}', space=vmem, size = 0x20000, scoped, tag = 'scratch operand']
  %s0 = inlined_call_operand.vmem [shape: bf16[512,16], index: 0, kind: input, shape index: {}]
  %s1 = inlined_call_operand.vmem [shape: bf16[16,128], index: 1, kind: input, shape index: {}]
  %s2 = inlined_call_operand.vmem [shape: f32[1,128], index: 2, kind: input, shape index: {}]
  %s3 = inlined_call_operand.vmem [shape: bf16[512,128], index: 3, kind: output, shape index: {}]
  %s4 = sld [smem:[#allocation0]]
  $region53: #{bottleneck_forward.4} parent=0
    _
  %s6 = ssub.s32 1, %s4
  %s7 = scalar_select 0, %s6, %s4
  loop: start=0, step=1, limit=4
  $region2: #{bottleneck_forward.4} parent=0 // loop_pre_header
    _
  $region3: #{bottleneck_forward.4} parent=0 // loop_header
    %s9 = sphi 0, %s13
    %p10 = scmp.ge.s32.totalorder %s9, 4
    %s16 = sphi 0, %s35
    %s17 = sphi 0, %s31
    %s18 = sphi 0, %s27
    %s19 = sphi 0, %s16
    %s20 = sphi 0, %s17
    %s21 = sphi 0, %s18
    %s22 = sphi 0, %s19
    %s23 = sphi 0, %s20
    %s24 = sphi 0, %s21
    %s40 = sphi 0, %s42
    %s43 = sphi 0, %s40
    %s44 = sphi 0, %s43
    %s60 = sphi 0, %s44
    %s68 = sphi 0, %s70
    %s71 = sphi 0, %s68
    %s72 = sphi 0, %s71
    %s88 = sphi 0, %s72
    %s94 = sphi 0, %s96
    %s97 = sphi 0, %s94
    %s98 = sphi 0, %s97
    %s114 = sphi 0, %s98
    %s122 = sphi 0, %s124
    %s125 = sphi 0, %s122
    %s126 = sphi 0, %s125
    %s142 = sphi 0, %s126
  $region4: #{bottleneck_forward.4} parent=0 // loop_header_branch
    %12 = sbr.rel (%p10) target = $region8
  $region5: #{bottleneck_forward.4} parent=0 // loop_body
    %s14 = ssub.s32 %s9, 1
    %s15 = ssub.s32 %s9, 2
    %s25 = sadd.s32 1, %s18
    %p26 = scmp.ge.s32.totalorder %s25, 1
    %s27 = scalar_select %p26, 0, %s25
    %s28 = sadd.s32 1, %s17
    %s29 = scalar_select %p26, %s28, %s17
    %p30 = scmp.ge.s32.totalorder %s29, 1
    %s31 = scalar_select %p30, 0, %s29
    %s32 = sadd.s32 1, %s16
    %s33 = scalar_select %p30, %s32, %s16
    %p34 = scmp.ge.s32.totalorder %s33, 2
    %s35 = scalar_select %p34, 0, %s33
    %s36 = ssub.s32 %s16, %s35
    %s37 = ssub.s32 %s18, %s27
    %s38 = sor.u32 %s36, %s37
    %p39 = scmp.eq.s32.totalorder %s38, 0
    %s41 = sadd.s32 %s40, 1
    %s42 = scalar_select %p39, %s40, %s41
    %p45 = pneg %p39
    %p46 = scmp.eq.s32.totalorder %s9, 1
    %p47 = por %p45, %p46
    %p48 = scmp.ne.s32.totalorder %s40, %s43
    %p49 = scmp.eq.s32.totalorder %s9, 0
    %p50 = por %p48, %p49
    %p51 = scmp.ne.s32.totalorder %s40, %s43
    %p52 = scmp.eq.s32.totalorder %s14, 1
    %p53 = por %p51, %p52
    %p54 = scmp.ne.s32.totalorder %s43, %s44
    %p55 = scmp.eq.s32.totalorder %s14, 0
    %p56 = por %p54, %p55
    %p57 = scmp.ne.s32.totalorder %s43, %s44
    %p58 = scmp.eq.s32.totalorder %s15, 1
    %p59 = por %p57, %p58
    %p61 = scmp.ne.s32.totalorder %s44, %s60
    %p62 = scmp.eq.s32.totalorder %s15, 0
    %p63 = por %p61, %p62
    %s64 = ssub.s32 %s18, %s27
    %s65 = ssub.s32 %s17, %s31
    %s66 = sor.u32 %s64, %s65
    %p67 = scmp.eq.s32.totalorder %s66, 0
    %s69 = sadd.s32 %s68, 1
    %s70 = scalar_select %p67, %s68, %s69
    %p73 = pneg %p67
    %p74 = scmp.eq.s32.totalorder %s9, 1
    %p75 = por %p73, %p74
    %p76 = scmp.ne.s32.totalorder %s68, %s71
    %p77 = scmp.eq.s32.totalorder %s9, 0
    %p78 = por %p76, %p77
    %p79 = scmp.ne.s32.totalorder %s68, %s71
    %p80 = scmp.eq.s32.totalorder %s14, 1
    %p81 = por %p79, %p80
    %p82 = scmp.ne.s32.totalorder %s71, %s72
    %p83 = scmp.eq.s32.totalorder %s14, 0
    %p84 = por %p82, %p83
    %p85 = scmp.ne.s32.totalorder %s71, %s72
    %p86 = scmp.eq.s32.totalorder %s15, 1
    %p87 = por %p85, %p86
    %p89 = scmp.ne.s32.totalorder %s72, %s88
    %p90 = scmp.eq.s32.totalorder %s15, 0
    %p91 = por %p89, %p90
    %s92 = ssub.s32 %s17, %s31
    %p93 = scmp.eq.s32.totalorder %s92, 0
    %s95 = sadd.s32 %s94, 1
    %s96 = scalar_select %p93, %s94, %s95
    %p99 = pneg %p93
    %p100 = scmp.eq.s32.totalorder %s9, 1
    %p101 = por %p99, %p100
    %p102 = scmp.ne.s32.totalorder %s94, %s97
    %p103 = scmp.eq.s32.totalorder %s9, 0
    %p104 = por %p102, %p103
    %p105 = scmp.ne.s32.totalorder %s94, %s97
    %p106 = scmp.eq.s32.totalorder %s14, 1
    %p107 = por %p105, %p106
    %p108 = scmp.ne.s32.totalorder %s97, %s98
    %p109 = scmp.eq.s32.totalorder %s14, 0
    %p110 = por %p108, %p109
    %p111 = scmp.ne.s32.totalorder %s97, %s98
    %p112 = scmp.eq.s32.totalorder %s15, 1
    %p113 = por %p111, %p112
    %p115 = scmp.ne.s32.totalorder %s98, %s114
    %p116 = scmp.eq.s32.totalorder %s15, 0
    %p117 = por %p115, %p116
    %s118 = ssub.s32 %s16, %s35
    %s119 = ssub.s32 %s17, %s31
    %s120 = sor.u32 %s118, %s119
    %p121 = scmp.eq.s32.totalorder %s120, 0
    %s123 = sadd.s32 %s122, 1
    %s124 = scalar_select %p121, %s122, %s123
    %p127 = pneg %p121
    %p128 = scmp.eq.s32.totalorder %s9, 1
    %p129 = por %p127, %p128
    %p130 = scmp.ne.s32.totalorder %s122, %s125
    %p131 = scmp.eq.s32.totalorder %s9, 0
    %p132 = por %p130, %p131
    %p133 = scmp.ne.s32.totalorder %s122, %s125
    %p134 = scmp.eq.s32.totalorder %s14, 1
    %p135 = por %p133, %p134
    %p136 = scmp.ne.s32.totalorder %s125, %s126
    %p137 = scmp.eq.s32.totalorder %s14, 0
    %p138 = por %p136, %p137
    %p139 = scmp.ne.s32.totalorder %s125, %s126
    %p140 = scmp.eq.s32.totalorder %s15, 1
    %p141 = por %p139, %p140
    %p143 = scmp.ne.s32.totalorder %s126, %s142
    %p144 = scmp.eq.s32.totalorder %s15, 0
    %p145 = por %p143, %p144
    %p146 = scmp.le.s32.totalorder 1, %s9
    %p147 = scmp.lt.s32.totalorder %s9, 3
    %p148 = pnand %p146, %p147
    %p149 = pneg %p148
    // Predicated region
    $region9: #{bottleneck_forward.4} parent=5 // pred_check
      _
    $region10: #{bottleneck_forward.4} parent=5 // pred_check_branch
      %151 = sbr.rel (%p148) target = $region12
    $region11: #{bottleneck_forward.4} parent=5 // pred_region
      %s152 = ssub.s32 %s9, 1
      // Predicated region
      $region13: #{bottleneck_forward.4} parent=11 // pred_check
        %p153 = pneg %p84
      $region14: #{bottleneck_forward.4} parent=11 // pred_check_branch
        %155 = sbr.rel (%p153) target = $region16
      $region15: #{bottleneck_forward.4} parent=11 // pred_region
        %s156 = smul.u32 2, %s21
        %p157 = scmp.lt.s32.totalorder %s156, 1
        %s158 = scalar_select %p157, %s156, 1
        %p159 = scmp.lt.s32.totalorder %s20, 0
        %s160 = scalar_select %p159, %s20, 0
        %s161 = sadd.s32 %s160, %s158
        %s162 = smul.addr %s161, 4
        %s163 = scalar_lea.vmem %s1, %s162
        %s164 = smul.u32 2, %s21
      $region16: #{bottleneck_forward.4} parent=11 // pred_fallthru
        _
      // Predicated region
      $region17: #{bottleneck_forward.4} parent=11 // pred_check
        %p165 = pneg %p110
      $region18: #{bottleneck_forward.4} parent=11 // pred_check_branch
        %167 = sbr.rel (%p165) target = $region20
      $region19: #{bottleneck_forward.4} parent=11 // pred_region
        %p168 = scmp.lt.s32.totalorder %s20, 0
        %s169 = scalar_select %p168, %s20, 0
        %s170 = scalar_lea.vmem %s2, %s169
      $region20: #{bottleneck_forward.4} parent=11 // pred_fallthru
        _
    $region12: #{bottleneck_forward.4} parent=5 // pred_fallthru
      _
    %p171 = scmp.lt.s32.totalorder %s9, 2
    // Predicated region
    $region21: #{bottleneck_forward.4} parent=5 // pred_check
      %p172 = pneg %p171
    $region22: #{bottleneck_forward.4} parent=5 // pred_check_branch
      %174 = sbr.rel (%p172) target = $region24
    $region23: #{bottleneck_forward.4} parent=5 // pred_region
      // Predicated region
      $region25: #{bottleneck_forward.4} parent=23 // pred_check
        %p175 = pneg %p50
      $region26: #{bottleneck_forward.4} parent=23 // pred_check_branch
        %177 = sbr.rel (%p175) target = $region28
      $region27: #{bottleneck_forward.4} parent=23 // pred_region
        %s178 = smul.u32 32, %s16
        %p179 = scmp.lt.s32.totalorder %s178, 63
        %s180 = scalar_select %p179, %s178, 63
        %p181 = scmp.lt.s32.totalorder %s18, 0
        %s182 = scalar_select %p181, %s18, 0
        %s183 = sadd.s32 %s182, %s180
        %s184 = smul.addr %s183, 4
        %s185 = scalar_lea.vmem %s0, %s184
        %s186 = smul.u32 32, %s16
      $region28: #{bottleneck_forward.4} parent=23 // pred_fallthru
        _
    $region24: #{bottleneck_forward.4} parent=5 // pred_fallthru
      _
    %p187 = scmp.le.s32.totalorder 1, %s9
    %p188 = scmp.lt.s32.totalorder %s9, 3
    %p189 = pnand %p187, %p188
    %p190 = pneg %p189
    // Predicated region
    $region29: #{bottleneck_forward.4} parent=5 // pred_check
      _
    $region30: #{bottleneck_forward.4} parent=5 // pred_check_branch
      %192 = sbr.rel (%p189) target = $region32
    $region31: #{bottleneck_forward.4} parent=5 // pred_region
      %s193 = ssub.s32 %s9, 1
      %s194 = smul.u32 32, %s19
      %p195 = scmp.lt.s32.totalorder %s194, 63
      %s196 = scalar_select %p195, %s194, 63
      %p197 = scmp.lt.s32.totalorder %s21, 0
      %s198 = scalar_select %p197, %s21, 0
      %s199 = sadd.s32 %s198, %s196
      %s200 = smul.addr %s199, 4
      %s201 = scalar_lea.vmem %s0, %s200
      %p202 = pneg %p56
      %p203 = pneg %p53
      %s204 = smul.u32 2, %s21
      %p205 = scmp.lt.s32.totalorder %s204, 1
      %s206 = scalar_select %p205, %s204, 1
      %p207 = scmp.lt.s32.totalorder %s20, 0
      %s208 = scalar_select %p207, %s20, 0
      %s209 = sadd.s32 %s208, %s206
      %s210 = smul.addr %s209, 4
      %s211 = scalar_lea.vmem %s1, %s210
      %p212 = pneg %p84
      %p213 = pneg %p81
      %p214 = scmp.lt.s32.totalorder %s20, 0
      %s215 = scalar_select %p214, %s20, 0
      %s216 = scalar_lea.vmem %s2, %s215
      %p217 = pneg %p110
      %p218 = pneg %p107
      %p219 = pneg %p138
      %p220 = pneg %p135
      %s221 = smul.u32 32, %s19
      %p222 = scmp.lt.s32.totalorder %s221, 63
      %s223 = scalar_select %p222, %s221, 63
      %p224 = scmp.lt.s32.totalorder %s20, 0
      %s225 = scalar_select %p224, %s20, 0
      %s226 = sadd.s32 %s225, %s223
      %s227 = smul.addr %s226, 4
      %s228 = scalar_lea.vmem %s3, %s227
      %s229 = smul.u32 32, %s19
      %p230 = scmp.lt.s32.totalorder %s229, 63
      %s231 = scalar_select %p230, %s229, 63
      %p232 = scmp.lt.s32.totalorder %s21, 0
      %s233 = scalar_select %p232, %s21, 0
      %s234 = sadd.s32 %s233, %s231
      %s235 = smul.addr %s234, 4
      %s236 = scalar_lea.vmem %s0, %s235
      %s237 = smul.u32 32, %s19
      %s238 = smul.u32 2, %s21
      %p239 = scmp.lt.s32.totalorder %s238, 1
      %s240 = scalar_select %p239, %s238, 1
      %p241 = scmp.lt.s32.totalorder %s20, 0
      %s242 = scalar_select %p241, %s20, 0
      %s243 = sadd.s32 %s242, %s240
      %s244 = smul.addr %s243, 4
      %s245 = scalar_lea.vmem %s1, %s244
      %s246 = smul.u32 2, %s21
      %p247 = scmp.lt.s32.totalorder %s20, 0
      %s248 = scalar_select %p247, %s20, 0
      %s249 = scalar_lea.vmem %s2, %s248
      %s250 = smul.u32 32, %s19
      %p251 = scmp.lt.s32.totalorder %s250, 63
      %s252 = scalar_select %p251, %s250, 63
      %p253 = scmp.lt.s32.totalorder %s20, 0
      %s254 = scalar_select %p253, %s20, 0
      %s255 = sadd.s32 %s254, %s252
      %s256 = smul.addr %s255, 4
      %s257 = scalar_lea.vmem %s3, %s256
      %s258 = smul.u32 32, %s19
      %p260 = scmp.eq.s32.totalorder %s21, 0
      // Predicated region
      $region33: #{bottleneck_forward.4} parent=31 // pred_check
        %p261 = pneg %p260
      $region34: #{bottleneck_forward.4} parent=31 // pred_check_branch
        %263 = sbr.rel (%p261) target = $region36
      $region35: #{bottleneck_forward.4} parent=31 // pred_region
        %264 = vst [vmem:[#allocation2] sm:$0xff] 0.0
        %265 = vst [vmem:[#allocation2 + $0x8] sm:$0xff] 0.0
        %266 = vst [vmem:[#allocation2 + $0x10] sm:$0xff] 0.0
        %267 = vst [vmem:[#allocation2 + $0x18] sm:$0xff] 0.0
        %268 = vst [vmem:[#allocation2 + $0x20] sm:$0xff] 0.0
        %269 = vst [vmem:[#allocation2 + $0x28] sm:$0xff] 0.0
        %270 = vst [vmem:[#allocation2 + $0x30] sm:$0xff] 0.0
        %271 = vst [vmem:[#allocation2 + $0x38] sm:$0xff] 0.0
        %272 = vst [vmem:[#allocation2 + $0x40] sm:$0xff] 0.0
        %273 = vst [vmem:[#allocation2 + $0x48] sm:$0xff] 0.0
        %274 = vst [vmem:[#allocation2 + $0x50] sm:$0xff] 0.0
        %275 = vst [vmem:[#allocation2 + $0x58] sm:$0xff] 0.0
        %276 = vst [vmem:[#allocation2 + $0x60] sm:$0xff] 0.0
        %277 = vst [vmem:[#allocation2 + $0x68] sm:$0xff] 0.0
        %278 = vst [vmem:[#allocation2 + $0x70] sm:$0xff] 0.0
        %279 = vst [vmem:[#allocation2 + $0x78] sm:$0xff] 0.0
        %280 = vst [vmem:[#allocation2 + $0x80] sm:$0xff] 0.0
        %281 = vst [vmem:[#allocation2 + $0x88] sm:$0xff] 0.0
        %282 = vst [vmem:[#allocation2 + $0x90] sm:$0xff] 0.0
        %283 = vst [vmem:[#allocation2 + $0x98] sm:$0xff] 0.0
        %284 = vst [vmem:[#allocation2 + $0xa0] sm:$0xff] 0.0
        %285 = vst [vmem:[#allocation2 + $0xa8] sm:$0xff] 0.0
        %286 = vst [vmem:[#allocation2 + $0xb0] sm:$0xff] 0.0
        %287 = vst [vmem:[#allocation2 + $0xb8] sm:$0xff] 0.0
        %288 = vst [vmem:[#allocation2 + $0xc0] sm:$0xff] 0.0
        %289 = vst [vmem:[#allocation2 + $0xc8] sm:$0xff] 0.0
        %290 = vst [vmem:[#allocation2 + $0xd0] sm:$0xff] 0.0
        %291 = vst [vmem:[#allocation2 + $0xd8] sm:$0xff] 0.0
        %292 = vst [vmem:[#allocation2 + $0xe0] sm:$0xff] 0.0
        %293 = vst [vmem:[#allocation2 + $0xe8] sm:$0xff] 0.0
        %294 = vst [vmem:[#allocation2 + $0xf0] sm:$0xff] 0.0
        %295 = vst [vmem:[#allocation2 + $0xf8] sm:$0xff] 0.0
      $region36: #{bottleneck_forward.4} parent=31 // pred_fallthru
        _
      %v296 = vld [vmem:[#allocation2] sm:$0xff]
      %v297 = vld [vmem:[#allocation2 + $0x8] sm:$0xff]
      %v298 = vld [vmem:[#allocation2 + $0x10] sm:$0xff]
      %v299 = vld [vmem:[#allocation2 + $0x18] sm:$0xff]
      %v300 = vld [vmem:[#allocation2 + $0x20] sm:$0xff]
      %v301 = vld [vmem:[#allocation2 + $0x28] sm:$0xff]
      %v302 = vld [vmem:[#allocation2 + $0x30] sm:$0xff]
      %v303 = vld [vmem:[#allocation2 + $0x38] sm:$0xff]
      %v304 = vld [vmem:[#allocation2 + $0x40] sm:$0xff]
      %v305 = vld [vmem:[#allocation2 + $0x48] sm:$0xff]
      %v306 = vld [vmem:[#allocation2 + $0x50] sm:$0xff]
      %v307 = vld [vmem:[#allocation2 + $0x58] sm:$0xff]
      %v308 = vld [vmem:[#allocation2 + $0x60] sm:$0xff]
      %v309 = vld [vmem:[#allocation2 + $0x68] sm:$0xff]
      %v310 = vld [vmem:[#allocation2 + $0x70] sm:$0xff]
      %v311 = vld [vmem:[#allocation2 + $0x78] sm:$0xff]
      %v312 = vld [vmem:[#allocation2 + $0x80] sm:$0xff]
      %v313 = vld [vmem:[#allocation2 + $0x88] sm:$0xff]
      %v314 = vld [vmem:[#allocation2 + $0x90] sm:$0xff]
      %v315 = vld [vmem:[#allocation2 + $0x98] sm:$0xff]
      %v316 = vld [vmem:[#allocation2 + $0xa0] sm:$0xff]
      %v317 = vld [vmem:[#allocation2 + $0xa8] sm:$0xff]
      %v318 = vld [vmem:[#allocation2 + $0xb0] sm:$0xff]
      %v319 = vld [vmem:[#allocation2 + $0xb8] sm:$0xff]
      %v320 = vld [vmem:[#allocation2 + $0xc0] sm:$0xff]
      %v321 = vld [vmem:[#allocation2 + $0xc8] sm:$0xff]
      %v322 = vld [vmem:[#allocation2 + $0xd0] sm:$0xff]
      %v323 = vld [vmem:[#allocation2 + $0xd8] sm:$0xff]
      %v324 = vld [vmem:[#allocation2 + $0xe0] sm:$0xff]
      %v325 = vld [vmem:[#allocation2 + $0xe8] sm:$0xff]
      %v326 = vld [vmem:[#allocation2 + $0xf0] sm:$0xff]
      %v327 = vld [vmem:[#allocation2 + $0xf8] sm:$0xff]
      %v328 = vld [vmem:[%s236] sm:$0xf]
      %v329 = vld [vmem:[%s236 + $0x4] sm:$0xf]
      %v330 = vld [vmem:[%s236 + $0x8] sm:$0xf]
      %v331 = vld [vmem:[%s236 + $0xc] sm:$0xf]
      %v332 = vld [vmem:[%s236 + $0x10] sm:$0xf]
      %v333 = vld [vmem:[%s236 + $0x14] sm:$0xf]
      %v334 = vld [vmem:[%s236 + $0x18] sm:$0xf]
      %v335 = vld [vmem:[%s236 + $0x1c] sm:$0xf]
      %v336 = vld [vmem:[%s236 + $0x20] sm:$0xf]
      %v337 = vld [vmem:[%s236 + $0x24] sm:$0xf]
      %v338 = vld [vmem:[%s236 + $0x28] sm:$0xf]
      %v339 = vld [vmem:[%s236 + $0x2c] sm:$0xf]
      %v340 = vld [vmem:[%s236 + $0x30] sm:$0xf]
      %v341 = vld [vmem:[%s236 + $0x34] sm:$0xf]
      %v342 = vld [vmem:[%s236 + $0x38] sm:$0xf]
      %v343 = vld [vmem:[%s236 + $0x3c] sm:$0xf]
      %v344 = vld [vmem:[%s236 + $0x40] sm:$0xf]
      %v345 = vld [vmem:[%s236 + $0x44] sm:$0xf]
      %v346 = vld [vmem:[%s236 + $0x48] sm:$0xf]
      %v347 = vld [vmem:[%s236 + $0x4c] sm:$0xf]
      %v348 = vld [vmem:[%s236 + $0x50] sm:$0xf]
      %v349 = vld [vmem:[%s236 + $0x54] sm:$0xf]
      %v350 = vld [vmem:[%s236 + $0x58] sm:$0xf]
      %v351 = vld [vmem:[%s236 + $0x5c] sm:$0xf]
      %v352 = vld [vmem:[%s236 + $0x60] sm:$0xf]
      %v353 = vld [vmem:[%s236 + $0x64] sm:$0xf]
      %v354 = vld [vmem:[%s236 + $0x68] sm:$0xf]
      %v355 = vld [vmem:[%s236 + $0x6c] sm:$0xf]
      %v356 = vld [vmem:[%s236 + $0x70] sm:$0xf]
      %v357 = vld [vmem:[%s236 + $0x74] sm:$0xf]
      %v358 = vld [vmem:[%s236 + $0x78] sm:$0xf]
      %v359 = vld [vmem:[%s236 + $0x7c] sm:$0xf]
      %v360 = vld [vmem:[%s245] sm:$0xf]
      %v361 = vld [vmem:[%s245 + $0x4] sm:$0xf]
      %v394 = vunpack.c.l.b16 %v328
      %v395 = vunpack.c.l.b16 %v329
      %v396 = vunpack.c.l.b16 %v330
      %v397 = vunpack.c.l.b16 %v331
      %v398 = vunpack.c.l.b16 %v332
      %v399 = vunpack.c.l.b16 %v333
      %v400 = vunpack.c.l.b16 %v334
      %v401 = vunpack.c.l.b16 %v335
      %v402 = vunpack.c.l.b16 %v336
      %v403 = vunpack.c.l.b16 %v337
      %v404 = vunpack.c.l.b16 %v338
      %v405 = vunpack.c.l.b16 %v339
      %v406 = vunpack.c.l.b16 %v340
      %v407 = vunpack.c.l.b16 %v341
      %v408 = vunpack.c.l.b16 %v342
      %v409 = vunpack.c.l.b16 %v343
      %v410 = vunpack.c.l.b16 %v344
      %v411 = vunpack.c.l.b16 %v345
      %v412 = vunpack.c.l.b16 %v346
      %v413 = vunpack.c.l.b16 %v347
      %v414 = vunpack.c.l.b16 %v348
      %v415 = vunpack.c.l.b16 %v349
      %v416 = vunpack.c.l.b16 %v350
      %v417 = vunpack.c.l.b16 %v351
      %v418 = vunpack.c.l.b16 %v352
      %v419 = vunpack.c.l.b16 %v353
      %v420 = vunpack.c.l.b16 %v354
      %v421 = vunpack.c.l.b16 %v355
      %v422 = vunpack.c.l.b16 %v356
      %v423 = vunpack.c.l.b16 %v357
      %v424 = vunpack.c.l.b16 %v358
      %v425 = vunpack.c.l.b16 %v359
      %v426 = vpack.c.b16 %v395, %v394
      %v427 = vpack.c.b16 %v397, %v396
      %v428 = vpack.c.b16 %v399, %v398
      %v429 = vpack.c.b16 %v401, %v400
      %v430 = vpack.c.b16 %v403, %v402
      %v431 = vpack.c.b16 %v405, %v404
      %v432 = vpack.c.b16 %v407, %v406
      %v433 = vpack.c.b16 %v409, %v408
      %v434 = vpack.c.b16 %v411, %v410
      %v435 = vpack.c.b16 %v413, %v412
      %v436 = vpack.c.b16 %v415, %v414
      %v437 = vpack.c.b16 %v417, %v416
      %v438 = vpack.c.b16 %v419, %v418
      %v439 = vpack.c.b16 %v421, %v420
      %v440 = vpack.c.b16 %v423, %v422
      %v441 = vpack.c.b16 %v425, %v424
      %v444 = vunpack.c.l.b16 %v360
      %v445 = vunpack.c.l.b16 %v361
      %v446 = vpack.c.b16 %v445, %v444
      %vm448 = vcmask 130048
      %v450 = vsel %vm448, %v426, 0
      %v453 = vsel %vm448, %v427, 0
      %v456 = vsel %vm448, %v428, 0
      %v459 = vsel %vm448, %v429, 0
      %v462 = vsel %vm448, %v430, 0
      %v465 = vsel %vm448, %v431, 0
      %v468 = vsel %vm448, %v432, 0
      %v471 = vsel %vm448, %v433, 0
      %v474 = vsel %vm448, %v434, 0
      %v477 = vsel %vm448, %v435, 0
      %v480 = vsel %vm448, %v436, 0
      %v483 = vsel %vm448, %v437, 0
      %v486 = vsel %vm448, %v438, 0
      %v489 = vsel %vm448, %v439, 0
      %v492 = vsel %vm448, %v440, 0
      %v495 = vsel %vm448, %v441, 0
      %497 = vmatprep.subr.bf16.mxu0 0
      %498 = vmatpush1.bf16.msra.mxu0 %v446
      %499 = vmatprep.subr.bf16.mxu0 0
      %500 = vmatpush1.bf16.msra.mxu0 0
      %501 = vmatprep.subr.bf16.mxu0 0
      %502 = vmatpush1.bf16.msra.mxu0 0
      %503 = vmatprep.subr.bf16.mxu0 0
      %504 = vmatpush1.bf16.msra.mxu0 0
      %505 = vmatprep.subr.bf16.mxu0 0
      %506 = vmatpush1.bf16.msra.mxu0 0
      %507 = vmatprep.subr.bf16.mxu0 0
      %508 = vmatpush1.bf16.msra.mxu0 0
      %509 = vmatprep.subr.bf16.mxu0 0
      %510 = vmatpush1.bf16.msra.mxu0 0
      %511 = vmatprep.subr.bf16.mxu0 0
      %512 = vmatpush1.bf16.msra.mxu0 0
      %513 = vmatprep.subr.bf16.mxu0 0
      %514 = vmatpush1.bf16.msra.mxu0 0
      %515 = vmatprep.subr.bf16.mxu0 0
      %516 = vmatpush1.bf16.msra.mxu0 0
      %517 = vmatprep.subr.bf16.mxu0 0
      %518 = vmatpush1.bf16.msra.mxu0 0
      %519 = vmatprep.subr.bf16.mxu0 0
      %520 = vmatpush1.bf16.msra.mxu0 0
      %521 = vmatprep.subr.bf16.mxu0 0
      %522 = vmatpush1.bf16.msra.mxu0 0
      %523 = vmatprep.subr.bf16.mxu0 0
      %524 = vmatpush1.bf16.msra.mxu0 0
      %525 = vmatprep.subr.bf16.mxu0 0
      %526 = vmatpush1.bf16.msra.mxu0 0
      %527 = vmatprep.subr.bf16.mxu0 0
      %528 = vmatpush1.bf16.msra.mxu0 0
      %529 = vmatprep.mubr.bf16.mxu0 0
      %530 = vmatmul.mubr.bf16.gmra.mrb[0].mxu0 %v450
      %v531 = vpop.f32.mrb[0].mxu0
      %v532 = vadd.f32 0.0, %v531
      %v533 = vpop.f32.mrb[0].mxu0
      %v534 = vpop.f32.mrb[0].mxu0
      %v535 = vadd.f32 0.0, %v534
      %v536 = vpop.f32.mrb[0].mxu0
      %537 = vmatprep.mubr.bf16.mxu0 0
      %538 = vmatmul.mubr.bf16.gmra.mrb[0].mxu0 %v453
      %v539 = vpop.f32.mrb[0].mxu0
      %v540 = vadd.f32 0.0, %v539
      %v541 = vpop.f32.mrb[0].mxu0
      %v542 = vpop.f32.mrb[0].mxu0
      %v543 = vadd.f32 0.0, %v542
      %v544 = vpop.f32.mrb[0].mxu0
      %545 = vmatprep.mubr.bf16.mxu0 0
      %546 = vmatmul.mubr.bf16.gmra.mrb[0].mxu0 %v456
      %v547 = vpop.f32.mrb[0].mxu0
      %v548 = vadd.f32 0.0, %v547
      %v549 = vpop.f32.mrb[0].mxu0
      %v550 = vpop.f32.mrb[0].mxu0
      %v551 = vadd.f32 0.0, %v550
      %v552 = vpop.f32.mrb[0].mxu0
      %553 = vmatprep.mubr.bf16.mxu0 0
      %554 = vmatmul.mubr.bf16.gmra.mrb[0].mxu0 %v459
      %v555 = vpop.f32.mrb[0].mxu0
      %v556 = vadd.f32 0.0, %v555
      %v557 = vpop.f32.mrb[0].mxu0
      %v558 = vpop.f32.mrb[0].mxu0
      %v559 = vadd.f32 0.0, %v558
      %v560 = vpop.f32.mrb[0].mxu0
      %561 = vmatprep.mubr.bf16.mxu0 0
      %562 = vmatmul.mubr.bf16.gmra.mrb[0].mxu0 %v462
      %v563 = vpop.f32.mrb[0].mxu0
      %v564 = vadd.f32 0.0, %v563
      %v565 = vpop.f32.mrb[0].mxu0
      %v566 = vpop.f32.mrb[0].mxu0
      %v567 = vadd.f32 0.0, %v566
      %v568 = vpop.f32.mrb[0].mxu0
      %569 = vmatprep.mubr.bf16.mxu0 0
      %570 = vmatmul.mubr.bf16.gmra.mrb[0].mxu0 %v465
      %v571 = vpop.f32.mrb[0].mxu0
      %v572 = vadd.f32 0.0, %v571
      %v573 = vpop.f32.mrb[0].mxu0
      %v574 = vpop.f32.mrb[0].mxu0
      %v575 = vadd.f32 0.0, %v574
      %v576 = vpop.f32.mrb[0].mxu0
      %577 = vmatprep.mubr.bf16.mxu0 0
      %578 = vmatmul.mubr.bf16.gmra.mrb[0].mxu0 %v468
      %v579 = vpop.f32.mrb[0].mxu0
      %v580 = vadd.f32 0.0, %v579
      %v581 = vpop.f32.mrb[0].mxu0
      %v582 = vpop.f32.mrb[0].mxu0
      %v583 = vadd.f32 0.0, %v582
      %v584 = vpop.f32.mrb[0].mxu0
      %585 = vmatprep.mubr.bf16.mxu0 0
      %586 = vmatmul.mubr.bf16.gmra.mrb[0].mxu0 %v471
      %v587 = vpop.f32.mrb[0].mxu0
      %v588 = vadd.f32 0.0, %v587
      %v589 = vpop.f32.mrb[0].mxu0
      %v590 = vpop.f32.mrb[0].mxu0
      %v591 = vadd.f32 0.0, %v590
      %v592 = vpop.f32.mrb[0].mxu0
      %593 = vmatprep.mubr.bf16.mxu0 0
      %594 = vmatmul.mubr.bf16.gmra.mrb[0].mxu0 %v474
      %v595 = vpop.f32.mrb[0].mxu0
      %v596 = vadd.f32 0.0, %v595
      %v597 = vpop.f32.mrb[0].mxu0
      %v598 = vpop.f32.mrb[0].mxu0
      %v599 = vadd.f32 0.0, %v598
      %v600 = vpop.f32.mrb[0].mxu0
      %601 = vmatprep.mubr.bf16.mxu0 0
      %602 = vmatmul.mubr.bf16.gmra.mrb[0].mxu0 %v477
      %v603 = vpop.f32.mrb[0].mxu0
      %v604 = vadd.f32 0.0, %v603
      %v605 = vpop.f32.mrb[0].mxu0
      %v606 = vpop.f32.mrb[0].mxu0
      %v607 = vadd.f32 0.0, %v606
      %v608 = vpop.f32.mrb[0].mxu0
      %609 = vmatprep.mubr.bf16.mxu0 0
      %610 = vmatmul.mubr.bf16.gmra.mrb[0].mxu0 %v480
      %v611 = vpop.f32.mrb[0].mxu0
      %v612 = vadd.f32 0.0, %v611
      %v613 = vpop.f32.mrb[0].mxu0
      %v614 = vpop.f32.mrb[0].mxu0
      %v615 = vadd.f32 0.0, %v614
      %v616 = vpop.f32.mrb[0].mxu0
      %617 = vmatprep.mubr.bf16.mxu0 0
      %618 = vmatmul.mubr.bf16.gmra.mrb[0].mxu0 %v483
      %v619 = vpop.f32.mrb[0].mxu0
      %v620 = vadd.f32 0.0, %v619
      %v621 = vpop.f32.mrb[0].mxu0
      %v622 = vpop.f32.mrb[0].mxu0
      %v623 = vadd.f32 0.0, %v622
      %v624 = vpop.f32.mrb[0].mxu0
      %625 = vmatprep.mubr.bf16.mxu0 0
      %626 = vmatmul.mubr.bf16.gmra.mrb[0].mxu0 %v486
      %v627 = vpop.f32.mrb[0].mxu0
      %v628 = vadd.f32 0.0, %v627
      %v629 = vpop.f32.mrb[0].mxu0
      %v630 = vpop.f32.mrb[0].mxu0
      %v631 = vadd.f32 0.0, %v630
      %v632 = vpop.f32.mrb[0].mxu0
      %633 = vmatprep.mubr.bf16.mxu0 0
      %634 = vmatmul.mubr.bf16.gmra.mrb[0].mxu0 %v489
      %v635 = vpop.f32.mrb[0].mxu0
      %v636 = vadd.f32 0.0, %v635
      %v637 = vpop.f32.mrb[0].mxu0
      %v638 = vpop.f32.mrb[0].mxu0
      %v639 = vadd.f32 0.0, %v638
      %v640 = vpop.f32.mrb[0].mxu0
      %641 = vmatprep.mubr.bf16.mxu0 0
      %642 = vmatmul.mubr.bf16.gmra.mrb[0].mxu0 %v492
      %v643 = vpop.f32.mrb[0].mxu0
      %v644 = vadd.f32 0.0, %v643
      %v645 = vpop.f32.mrb[0].mxu0
      %v646 = vpop.f32.mrb[0].mxu0
      %v647 = vadd.f32 0.0, %v646
      %v648 = vpop.f32.mrb[0].mxu0
      %649 = vmatprep.mubr.bf16.mxu0 0
      %650 = vmatmul.mubr.bf16.gmra.mrb[0].mxu0 %v495
      %v651 = vpop.f32.mrb[0].mxu0
      %v652 = vadd.f32 0.0, %v651
      %v653 = vpop.f32.mrb[0].mxu0
      %v654 = vpop.f32.mrb[0].mxu0
      %v655 = vadd.f32 0.0, %v654
      %v656 = vpop.f32.mrb[0].mxu0
      %657 = vdwg.mxu0
      %v658 = vadd.f32 %v296, %v532
      %v659 = vadd.f32 %v297, %v535
      %v660 = vadd.f32 %v298, %v540
      %v661 = vadd.f32 %v299, %v543
      %v662 = vadd.f32 %v300, %v548
      %v663 = vadd.f32 %v301, %v551
      %v664 = vadd.f32 %v302, %v556
      %v665 = vadd.f32 %v303, %v559
      %v666 = vadd.f32 %v304, %v564
      %v667 = vadd.f32 %v305, %v567
      %v668 = vadd.f32 %v306, %v572
      %v669 = vadd.f32 %v307, %v575
      %v670 = vadd.f32 %v308, %v580
      %v671 = vadd.f32 %v309, %v583
      %v672 = vadd.f32 %v310, %v588
      %v673 = vadd.f32 %v311, %v591
      %v674 = vadd.f32 %v312, %v596
      %v675 = vadd.f32 %v313, %v599
      %v676 = vadd.f32 %v314, %v604
      %v677 = vadd.f32 %v315, %v607
      %v678 = vadd.f32 %v316, %v612
      %v679 = vadd.f32 %v317, %v615
      %v680 = vadd.f32 %v318, %v620
      %v681 = vadd.f32 %v319, %v623
      %v682 = vadd.f32 %v320, %v628
      %v683 = vadd.f32 %v321, %v631
      %v684 = vadd.f32 %v322, %v636
      %v685 = vadd.f32 %v323, %v639
      %v686 = vadd.f32 %v324, %v644
      %v687 = vadd.f32 %v325, %v647
      %v688 = vadd.f32 %v326, %v652
      %v689 = vadd.f32 %v327, %v655
      %690 = vst [vmem:[#allocation2] sm:$0xff] %v658
      %691 = vst [vmem:[#allocation2 + $0x8] sm:$0xff] %v659
      %692 = vst [vmem:[#allocation2 + $0x10] sm:$0xff] %v660
      %693 = vst [vmem:[#allocation2 + $0x18] sm:$0xff] %v661
      %694 = vst [vmem:[#allocation2 + $0x20] sm:$0xff] %v662
      %695 = vst [vmem:[#allocation2 + $0x28] sm:$0xff] %v663
      %696 = vst [vmem:[#allocation2 + $0x30] sm:$0xff] %v664
      %697 = vst [vmem:[#allocation2 + $0x38] sm:$0xff] %v665
      %698 = vst [vmem:[#allocation2 + $0x40] sm:$0xff] %v666
      %699 = vst [vmem:[#allocation2 + $0x48] sm:$0xff] %v667
      %700 = vst [vmem:[#allocation2 + $0x50] sm:$0xff] %v668
      %701 = vst [vmem:[#allocation2 + $0x58] sm:$0xff] %v669
      %702 = vst [vmem:[#allocation2 + $0x60] sm:$0xff] %v670
      %703 = vst [vmem:[#allocation2 + $0x68] sm:$0xff] %v671
      %704 = vst [vmem:[#allocation2 + $0x70] sm:$0xff] %v672
      %705 = vst [vmem:[#allocation2 + $0x78] sm:$0xff] %v673
      %706 = vst [vmem:[#allocation2 + $0x80] sm:$0xff] %v674
      %707 = vst [vmem:[#allocation2 + $0x88] sm:$0xff] %v675
      %708 = vst [vmem:[#allocation2 + $0x90] sm:$0xff] %v676
      %709 = vst [vmem:[#allocation2 + $0x98] sm:$0xff] %v677
      %710 = vst [vmem:[#allocation2 + $0xa0] sm:$0xff] %v678
      %711 = vst [vmem:[#allocation2 + $0xa8] sm:$0xff] %v679
      %712 = vst [vmem:[#allocation2 + $0xb0] sm:$0xff] %v680
      %713 = vst [vmem:[#allocation2 + $0xb8] sm:$0xff] %v681
      %714 = vst [vmem:[#allocation2 + $0xc0] sm:$0xff] %v682
      %715 = vst [vmem:[#allocation2 + $0xc8] sm:$0xff] %v683
      %716 = vst [vmem:[#allocation2 + $0xd0] sm:$0xff] %v684
      %717 = vst [vmem:[#allocation2 + $0xd8] sm:$0xff] %v685
      %718 = vst [vmem:[#allocation2 + $0xe0] sm:$0xff] %v686
      %719 = vst [vmem:[#allocation2 + $0xe8] sm:$0xff] %v687
      %720 = vst [vmem:[#allocation2 + $0xf0] sm:$0xff] %v688
      %721 = vst [vmem:[#allocation2 + $0xf8] sm:$0xff] %v689
      // Predicated region
      $region37: #{bottleneck_forward.4} parent=31 // pred_check
        %p722 = pneg %p260
      $region38: #{bottleneck_forward.4} parent=31 // pred_check_branch
        %724 = sbr.rel (%p722) target = $region40
      $region39: #{bottleneck_forward.4} parent=31 // pred_region
        %v725 = vld [vmem:[#allocation2] sm:$0xff]
        %v726 = vld [vmem:[#allocation2 + $0x8] sm:$0xff]
        %v727 = vld [vmem:[#allocation2 + $0x10] sm:$0xff]
        %v728 = vld [vmem:[#allocation2 + $0x18] sm:$0xff]
        %v729 = vld [vmem:[#allocation2 + $0x20] sm:$0xff]
        %v730 = vld [vmem:[#allocation2 + $0x28] sm:$0xff]
        %v731 = vld [vmem:[#allocation2 + $0x30] sm:$0xff]
        %v732 = vld [vmem:[#allocation2 + $0x38] sm:$0xff]
        %v733 = vld [vmem:[#allocation2 + $0x40] sm:$0xff]
        %v734 = vld [vmem:[#allocation2 + $0x48] sm:$0xff]
        %v735 = vld [vmem:[#allocation2 + $0x50] sm:$0xff]
        %v736 = vld [vmem:[#allocation2 + $0x58] sm:$0xff]
        %v737 = vld [vmem:[#allocation2 + $0x60] sm:$0xff]
        %v738 = vld [vmem:[#allocation2 + $0x68] sm:$0xff]
        %v739 = vld [vmem:[#allocation2 + $0x70] sm:$0xff]
        %v740 = vld [vmem:[#allocation2 + $0x78] sm:$0xff]
        %v741 = vld [vmem:[#allocation2 + $0x80] sm:$0xff]
        %v742 = vld [vmem:[#allocation2 + $0x88] sm:$0xff]
        %v743 = vld [vmem:[#allocation2 + $0x90] sm:$0xff]
        %v744 = vld [vmem:[#allocation2 + $0x98] sm:$0xff]
        %v745 = vld [vmem:[#allocation2 + $0xa0] sm:$0xff]
        %v746 = vld [vmem:[#allocation2 + $0xa8] sm:$0xff]
        %v747 = vld [vmem:[#allocation2 + $0xb0] sm:$0xff]
        %v748 = vld [vmem:[#allocation2 + $0xb8] sm:$0xff]
        %v749 = vld [vmem:[#allocation2 + $0xc0] sm:$0xff]
        %v750 = vld [vmem:[#allocation2 + $0xc8] sm:$0xff]
        %v751 = vld [vmem:[#allocation2 + $0xd0] sm:$0xff]
        %v752 = vld [vmem:[#allocation2 + $0xd8] sm:$0xff]
        %v753 = vld [vmem:[#allocation2 + $0xe0] sm:$0xff]
        %v754 = vld [vmem:[#allocation2 + $0xe8] sm:$0xff]
        %v755 = vld [vmem:[#allocation2 + $0xf0] sm:$0xff]
        %v756 = vld [vmem:[#allocation2 + $0xf8] sm:$0xff]
        %v757 = vld [vmem:[%s249] sm:$0x1]
        %v759 = vlaneseq
        %v760 = vshrl.u32 %v759, 7
        %v761 = vsub.s32 0, %v760
        %v762 = vrot.slane %v757, %v761
        %v764 = vadd.f32 %v725, %v762
        %v765 = vadd.f32 %v726, %v762
        %v766 = vadd.f32 %v727, %v762
        %v767 = vadd.f32 %v728, %v762
        %v768 = vadd.f32 %v729, %v762
        %v769 = vadd.f32 %v730, %v762
        %v770 = vadd.f32 %v731, %v762
        %v771 = vadd.f32 %v732, %v762
        %v772 = vadd.f32 %v733, %v762
        %v773 = vadd.f32 %v734, %v762
        %v774 = vadd.f32 %v735, %v762
        %v775 = vadd.f32 %v736, %v762
        %v776 = vadd.f32 %v737, %v762
        %v777 = vadd.f32 %v738, %v762
        %v778 = vadd.f32 %v739, %v762
        %v779 = vadd.f32 %v740, %v762
        %v780 = vadd.f32 %v741, %v762
        %v781 = vadd.f32 %v742, %v762
        %v782 = vadd.f32 %v743, %v762
        %v783 = vadd.f32 %v744, %v762
        %v784 = vadd.f32 %v745, %v762
        %v785 = vadd.f32 %v746, %v762
        %v786 = vadd.f32 %v747, %v762
        %v787 = vadd.f32 %v748, %v762
        %v788 = vadd.f32 %v749, %v762
        %v789 = vadd.f32 %v750, %v762
        %v790 = vadd.f32 %v751, %v762
        %v791 = vadd.f32 %v752, %v762
        %v792 = vadd.f32 %v753, %v762
        %v793 = vadd.f32 %v754, %v762
        %v794 = vadd.f32 %v755, %v762
        %v795 = vadd.f32 %v756, %v762
        %v796 = vmax.f32 %v764, 0.0
        %v797 = vmax.f32 %v765, 0.0
        %v798 = vmax.f32 %v766, 0.0
        %v799 = vmax.f32 %v767, 0.0
        %v800 = vmax.f32 %v768, 0.0
        %v801 = vmax.f32 %v769, 0.0
        %v802 = vmax.f32 %v770, 0.0
        %v803 = vmax.f32 %v771, 0.0
        %v804 = vmax.f32 %v772, 0.0
        %v805 = vmax.f32 %v773, 0.0
        %v806 = vmax.f32 %v774, 0.0
        %v807 = vmax.f32 %v775, 0.0
        %v808 = vmax.f32 %v776, 0.0
        %v809 = vmax.f32 %v777, 0.0
        %v810 = vmax.f32 %v778, 0.0
        %v811 = vmax.f32 %v779, 0.0
        %v812 = vmax.f32 %v780, 0.0
        %v813 = vmax.f32 %v781, 0.0
        %v814 = vmax.f32 %v782, 0.0
        %v815 = vmax.f32 %v783, 0.0
        %v816 = vmax.f32 %v784, 0.0
        %v817 = vmax.f32 %v785, 0.0
        %v818 = vmax.f32 %v786, 0.0
        %v819 = vmax.f32 %v787, 0.0
        %v820 = vmax.f32 %v788, 0.0
        %v821 = vmax.f32 %v789, 0.0
        %v822 = vmax.f32 %v790, 0.0
        %v823 = vmax.f32 %v791, 0.0
        %v824 = vmax.f32 %v792, 0.0
        %v825 = vmax.f32 %v793, 0.0
        %v826 = vmax.f32 %v794, 0.0
        %v827 = vmax.f32 %v795, 0.0
        %v828 = vpack.c.bf16 %v797, %v796
        %v829 = vpack.c.bf16 %v799, %v798
        %v830 = vpack.c.bf16 %v801, %v800
        %v831 = vpack.c.bf16 %v803, %v802
        %v832 = vpack.c.bf16 %v805, %v804
        %v833 = vpack.c.bf16 %v807, %v806
        %v834 = vpack.c.bf16 %v809, %v808
        %v835 = vpack.c.bf16 %v811, %v810
        %v836 = vpack.c.bf16 %v813, %v812
        %v837 = vpack.c.bf16 %v815, %v814
        %v838 = vpack.c.bf16 %v817, %v816
        %v839 = vpack.c.bf16 %v819, %v818
        %v840 = vpack.c.bf16 %v821, %v820
        %v841 = vpack.c.bf16 %v823, %v822
        %v842 = vpack.c.bf16 %v825, %v824
        %v843 = vpack.c.bf16 %v827, %v826
        %v860 = vunpack.c.l.b16 %v828
        %v861 = vunpack.c.h.b16 %v828
        %v862 = vunpack.c.l.b16 %v829
        %v863 = vunpack.c.h.b16 %v829
        %v864 = vunpack.c.l.b16 %v830
        %v865 = vunpack.c.h.b16 %v830
        %v866 = vunpack.c.l.b16 %v831
        %v867 = vunpack.c.h.b16 %v831
        %v868 = vunpack.c.l.b16 %v832
        %v869 = vunpack.c.h.b16 %v832
        %v870 = vunpack.c.l.b16 %v833
        %v871 = vunpack.c.h.b16 %v833
        %v872 = vunpack.c.l.b16 %v834
        %v873 = vunpack.c.h.b16 %v834
        %v874 = vunpack.c.l.b16 %v835
        %v875 = vunpack.c.h.b16 %v835
        %v876 = vunpack.c.l.b16 %v836
        %v877 = vunpack.c.h.b16 %v836
        %v878 = vunpack.c.l.b16 %v837
        %v879 = vunpack.c.h.b16 %v837
        %v880 = vunpack.c.l.b16 %v838
        %v881 = vunpack.c.h.b16 %v838
        %v882 = vunpack.c.l.b16 %v839
        %v883 = vunpack.c.h.b16 %v839
        %v884 = vunpack.c.l.b16 %v840
        %v885 = vunpack.c.h.b16 %v840
        %v886 = vunpack.c.l.b16 %v841
        %v887 = vunpack.c.h.b16 %v841
        %v888 = vunpack.c.l.b16 %v842
        %v889 = vunpack.c.h.b16 %v842
        %v890 = vunpack.c.l.b16 %v843
        %v891 = vunpack.c.h.b16 %v843
        %v892 = vpack.c.b16 %v860, %v860
        %v893 = vpack.c.b16 %v861, %v861
        %v894 = vpack.c.b16 %v862, %v862
        %v895 = vpack.c.b16 %v863, %v863
        %v896 = vpack.c.b16 %v864, %v864
        %v897 = vpack.c.b16 %v865, %v865
        %v898 = vpack.c.b16 %v866, %v866
        %v899 = vpack.c.b16 %v867, %v867
        %v900 = vpack.c.b16 %v868, %v868
        %v901 = vpack.c.b16 %v869, %v869
        %v902 = vpack.c.b16 %v870, %v870
        %v903 = vpack.c.b16 %v871, %v871
        %v904 = vpack.c.b16 %v872, %v872
        %v905 = vpack.c.b16 %v873, %v873
        %v906 = vpack.c.b16 %v874, %v874
        %v907 = vpack.c.b16 %v875, %v875
        %v908 = vpack.c.b16 %v876, %v876
        %v909 = vpack.c.b16 %v877, %v877
        %v910 = vpack.c.b16 %v878, %v878
        %v911 = vpack.c.b16 %v879, %v879
        %v912 = vpack.c.b16 %v880, %v880
        %v913 = vpack.c.b16 %v881, %v881
        %v914 = vpack.c.b16 %v882, %v882
        %v915 = vpack.c.b16 %v883, %v883
        %v916 = vpack.c.b16 %v884, %v884
        %v917 = vpack.c.b16 %v885, %v885
        %v918 = vpack.c.b16 %v886, %v886
        %v919 = vpack.c.b16 %v887, %v887
        %v920 = vpack.c.b16 %v888, %v888
        %v921 = vpack.c.b16 %v889, %v889
        %v922 = vpack.c.b16 %v890, %v890
        %v923 = vpack.c.b16 %v891, %v891
        %956 = vst [vmem:[%s257] sm:$0xf] %v892
        %957 = vst [vmem:[%s257 + $0x4] sm:$0xf] %v893
        %958 = vst [vmem:[%s257 + $0x8] sm:$0xf] %v894
        %959 = vst [vmem:[%s257 + $0xc] sm:$0xf] %v895
        %960 = vst [vmem:[%s257 + $0x10] sm:$0xf] %v896
        %961 = vst [vmem:[%s257 + $0x14] sm:$0xf] %v897
        %962 = vst [vmem:[%s257 + $0x18] sm:$0xf] %v898
        %963 = vst [vmem:[%s257 + $0x1c] sm:$0xf] %v899
        %964 = vst [vmem:[%s257 + $0x20] sm:$0xf] %v900
        %965 = vst [vmem:[%s257 + $0x24] sm:$0xf] %v901
        %966 = vst [vmem:[%s257 + $0x28] sm:$0xf] %v902
        %967 = vst [vmem:[%s257 + $0x2c] sm:$0xf] %v903
        %968 = vst [vmem:[%s257 + $0x30] sm:$0xf] %v904
        %969 = vst [vmem:[%s257 + $0x34] sm:$0xf] %v905
        %970 = vst [vmem:[%s257 + $0x38] sm:$0xf] %v906
        %971 = vst [vmem:[%s257 + $0x3c] sm:$0xf] %v907
        %972 = vst [vmem:[%s257 + $0x40] sm:$0xf] %v908
        %973 = vst [vmem:[%s257 + $0x44] sm:$0xf] %v909
        %974 = vst [vmem:[%s257 + $0x48] sm:$0xf] %v910
        %975 = vst [vmem:[%s257 + $0x4c] sm:$0xf] %v911
        %976 = vst [vmem:[%s257 + $0x50] sm:$0xf] %v912
        %977 = vst [vmem:[%s257 + $0x54] sm:$0xf] %v913
        %978 = vst [vmem:[%s257 + $0x58] sm:$0xf] %v914
        %979 = vst [vmem:[%s257 + $0x5c] sm:$0xf] %v915
        %980 = vst [vmem:[%s257 + $0x60] sm:$0xf] %v916
        %981 = vst [vmem:[%s257 + $0x64] sm:$0xf] %v917
        %982 = vst [vmem:[%s257 + $0x68] sm:$0xf] %v918
        %983 = vst [vmem:[%s257 + $0x6c] sm:$0xf] %v919
        %984 = vst [vmem:[%s257 + $0x70] sm:$0xf] %v920
        %985 = vst [vmem:[%s257 + $0x74] sm:$0xf] %v921
        %986 = vst [vmem:[%s257 + $0x78] sm:$0xf] %v922
        %987 = vst [vmem:[%s257 + $0x7c] sm:$0xf] %v923
      $region40: #{bottleneck_forward.4} parent=31 // pred_fallthru
        _
      %s988 = smul.u32 32, %s19
      %p989 = scmp.lt.s32.totalorder %s988, 63
      %s990 = scalar_select %p989, %s988, 63
      %p991 = scmp.lt.s32.totalorder %s20, 0
      %s992 = scalar_select %p991, %s20, 0
      %s993 = sadd.s32 %s992, %s990
      %s994 = smul.addr %s993, 4
      %s995 = scalar_lea.vmem %s3, %s994
      // Predicated region
      $region41: #{bottleneck_forward.4} parent=31 // pred_check
        %p996 = pneg %p135
      $region42: #{bottleneck_forward.4} parent=31 // pred_check_branch
        %998 = sbr.rel (%p996) target = $region44
      $region43: #{bottleneck_forward.4} parent=31 // pred_region
        %s999 = smul.u32 32, %s19
      $region44: #{bottleneck_forward.4} parent=31 // pred_fallthru
        _
    $region32: #{bottleneck_forward.4} parent=5 // pred_fallthru
      _
    %p1000 = scmp.le.s32.totalorder 2, %s9
    // Predicated region
    $region45: #{bottleneck_forward.4} parent=5 // pred_check
      %p1001 = pneg %p1000
    $region46: #{bottleneck_forward.4} parent=5 // pred_check_branch
      %1003 = sbr.rel (%p1001) target = $region48
    $region47: #{bottleneck_forward.4} parent=5 // pred_region
      %s1004 = ssub.s32 %s9, 2
      // Predicated region
      $region49: #{bottleneck_forward.4} parent=47 // pred_check
        %p1005 = pneg %p141
      $region50: #{bottleneck_forward.4} parent=47 // pred_check_branch
        %1007 = sbr.rel (%p1005) target = $region52
      $region51: #{bottleneck_forward.4} parent=47 // pred_region
        %s1008 = smul.u32 32, %s22
        %p1009 = scmp.lt.s32.totalorder %s1008, 63
        %s1010 = scalar_select %p1009, %s1008, 63
        %p1011 = scmp.lt.s32.totalorder %s23, 0
        %s1012 = scalar_select %p1011, %s23, 0
        %s1013 = sadd.s32 %s1012, %s1010
        %s1014 = smul.addr %s1013, 4
        %s1015 = scalar_lea.vmem %s3, %s1014
      $region52: #{bottleneck_forward.4} parent=47 // pred_fallthru
        _
    $region48: #{bottleneck_forward.4} parent=5 // pred_fallthru
      _
  $region6: #{bottleneck_forward.4} parent=0 // loop_footer
    %s13 = sadd.s32 1, %s9
  $region7: #{bottleneck_forward.4} parent=0 // loop_footer_branch
    %8 = sbr.rel target = $region3
  $region8: #{bottleneck_forward.4} parent=0 // loop_exit
    _

// kernel: bottleneck_forward.7
$region0: #{bottleneck_forward.7}
  #allocation0 [shape = 'u32[]', space=smem, size = 0x4, offset = 0x4, fixed_abs, tag = 'smem constant byte address 0x4 - core index']
  #allocation1 [shape = 'u32[144,128]{1,0:T(1,128)}', space=vmem, size = 0x12000, scoped, tag = 'internal scratch']
  #allocation2 [shape = 'f32[128,128]{1,0:T(8,128)}', space=vmem, size = 0x10000, scoped, tag = 'scratch operand']
  %s0 = inlined_call_operand.vmem [shape: bf16[128,128], index: 0, kind: input, shape index: {}]
  %s1 = inlined_call_operand.vmem [shape: bf16[128,128], index: 1, kind: input, shape index: {}]
  %s2 = inlined_call_operand.vmem [shape: f32[1,128], index: 2, kind: input, shape index: {}]
  %s3 = inlined_call_operand.vmem [shape: bf16[128,128], index: 3, kind: input, shape index: {}]
  %s4 = inlined_call_operand.vmem [shape: f32[128,128], index: 4, kind: output, shape index: {}]
  %s5 = sld [smem:[#allocation0]]
  $region34: #{bottleneck_forward.7} parent=0
    _
  %s7 = ssub.s32 1, %s5
  %s8 = scalar_select 0, %s7, %s5
  // Predicated region
  $region2: #{bottleneck_forward.7} parent=0 // pred_check
    _
  $region3: #{bottleneck_forward.7} parent=0 // pred_check_branch
    %10 = sbr.rel (0) target = $region5
  $region4: #{bottleneck_forward.7} parent=0 // pred_region
    _
  $region5: #{bottleneck_forward.7} parent=0 // pred_fallthru
    _
  // Predicated region
  $region6: #{bottleneck_forward.7} parent=0 // pred_check
    _
  $region7: #{bottleneck_forward.7} parent=0 // pred_check_branch
    %12 = sbr.rel (0) target = $region9
  $region8: #{bottleneck_forward.7} parent=0 // pred_region
    _
  $region9: #{bottleneck_forward.7} parent=0 // pred_fallthru
    _
  // Predicated region
  $region10: #{bottleneck_forward.7} parent=0 // pred_check
    _
  $region11: #{bottleneck_forward.7} parent=0 // pred_check_branch
    %14 = sbr.rel (0) target = $region13
  $region12: #{bottleneck_forward.7} parent=0 // pred_region
    _
  $region13: #{bottleneck_forward.7} parent=0 // pred_fallthru
    _
  // Predicated region
  $region14: #{bottleneck_forward.7} parent=0 // pred_check
    _
  $region15: #{bottleneck_forward.7} parent=0 // pred_check_branch
    %16 = sbr.rel (0) target = $region17
  $region16: #{bottleneck_forward.7} parent=0 // pred_region
    _
  $region17: #{bottleneck_forward.7} parent=0 // pred_fallthru
    _
  %p18 = scmp.eq.s32.totalorder 0, 0
  // Predicated region
  $region18: #{bottleneck_forward.7} parent=0 // pred_check
    %p19 = pneg %p18
  $region19: #{bottleneck_forward.7} parent=0 // pred_check_branch
    %21 = sbr.rel (%p19) target = $region21
  $region20: #{bottleneck_forward.7} parent=0 // pred_region
    %v22 = vld [vmem:[%s3] sm:$0xf]
    %v23 = vld [vmem:[%s3 + $0x4] sm:$0xf]
    %v24 = vld [vmem:[%s3 + $0x8] sm:$0xf]
    %v25 = vld [vmem:[%s3 + $0xc] sm:$0xf]
    %v26 = vld [vmem:[%s3 + $0x10] sm:$0xf]
    %v27 = vld [vmem:[%s3 + $0x14] sm:$0xf]
    %v28 = vld [vmem:[%s3 + $0x18] sm:$0xf]
    %v29 = vld [vmem:[%s3 + $0x1c] sm:$0xf]
    %v30 = vld [vmem:[%s3 + $0x20] sm:$0xf]
    %v31 = vld [vmem:[%s3 + $0x24] sm:$0xf]
    %v32 = vld [vmem:[%s3 + $0x28] sm:$0xf]
    %v33 = vld [vmem:[%s3 + $0x2c] sm:$0xf]
    %v34 = vld [vmem:[%s3 + $0x30] sm:$0xf]
    %v35 = vld [vmem:[%s3 + $0x34] sm:$0xf]
    %v36 = vld [vmem:[%s3 + $0x38] sm:$0xf]
    %v37 = vld [vmem:[%s3 + $0x3c] sm:$0xf]
    %v38 = vunpack.c.l.bf16 %v22
    %v39 = vunpack.c.l.bf16 %v23
    %v40 = vunpack.c.l.bf16 %v24
    %v41 = vunpack.c.l.bf16 %v25
    %v42 = vunpack.c.l.bf16 %v26
    %v43 = vunpack.c.l.bf16 %v27
    %v44 = vunpack.c.l.bf16 %v28
    %v45 = vunpack.c.l.bf16 %v29
    %v46 = vunpack.c.l.bf16 %v30
    %v47 = vunpack.c.l.bf16 %v31
    %v48 = vunpack.c.l.bf16 %v32
    %v49 = vunpack.c.l.bf16 %v33
    %v50 = vunpack.c.l.bf16 %v34
    %v51 = vunpack.c.l.bf16 %v35
    %v52 = vunpack.c.l.bf16 %v36
    %v53 = vunpack.c.l.bf16 %v37
    %54 = vst [vmem:[#allocation2] sm:$0xff] %v38
    %55 = vst [vmem:[#allocation2 + $0x8] sm:$0xff] %v39
    %56 = vst [vmem:[#allocation2 + $0x10] sm:$0xff] %v40
    %57 = vst [vmem:[#allocation2 + $0x18] sm:$0xff] %v41
    %58 = vst [vmem:[#allocation2 + $0x20] sm:$0xff] %v42
    %59 = vst [vmem:[#allocation2 + $0x28] sm:$0xff] %v43
    %60 = vst [vmem:[#allocation2 + $0x30] sm:$0xff] %v44
    %61 = vst [vmem:[#allocation2 + $0x38] sm:$0xff] %v45
    %62 = vst [vmem:[#allocation2 + $0x40] sm:$0xff] %v46
    %63 = vst [vmem:[#allocation2 + $0x48] sm:$0xff] %v47
    %64 = vst [vmem:[#allocation2 + $0x50] sm:$0xff] %v48
    %65 = vst [vmem:[#allocation2 + $0x58] sm:$0xff] %v49
    %66 = vst [vmem:[#allocation2 + $0x60] sm:$0xff] %v50
    %67 = vst [vmem:[#allocation2 + $0x68] sm:$0xff] %v51
    %68 = vst [vmem:[#allocation2 + $0x70] sm:$0xff] %v52
    %69 = vst [vmem:[#allocation2 + $0x78] sm:$0xff] %v53
  $region21: #{bottleneck_forward.7} parent=0 // pred_fallthru
    _
  %v70 = vld [vmem:[#allocation2] sm:$0xff]
  %v71 = vld [vmem:[#allocation2 + $0x8] sm:$0xff]
  %v72 = vld [vmem:[#allocation2 + $0x10] sm:$0xff]
  %v73 = vld [vmem:[#allocation2 + $0x18] sm:$0xff]
  %v74 = vld [vmem:[#allocation2 + $0x20] sm:$0xff]
  %v75 = vld [vmem:[#allocation2 + $0x28] sm:$0xff]
  %v76 = vld [vmem:[#allocation2 + $0x30] sm:$0xff]
  %v77 = vld [vmem:[#allocation2 + $0x38] sm:$0xff]
  %v78 = vld [vmem:[#allocation2 + $0x40] sm:$0xff]
  %v79 = vld [vmem:[#allocation2 + $0x48] sm:$0xff]
  %v80 = vld [vmem:[#allocation2 + $0x50] sm:$0xff]
  %v81 = vld [vmem:[#allocation2 + $0x58] sm:$0xff]
  %v82 = vld [vmem:[#allocation2 + $0x60] sm:$0xff]
  %v83 = vld [vmem:[#allocation2 + $0x68] sm:$0xff]
  %v84 = vld [vmem:[#allocation2 + $0x70] sm:$0xff]
  %v85 = vld [vmem:[#allocation2 + $0x78] sm:$0xff]
  %v86 = vld [vmem:[%s0] sm:$0xf]
  %v87 = vld [vmem:[%s0 + $0x4] sm:$0xf]
  %v88 = vld [vmem:[%s0 + $0x8] sm:$0xf]
  %v89 = vld [vmem:[%s0 + $0xc] sm:$0xf]
  %v90 = vld [vmem:[%s0 + $0x10] sm:$0xf]
  %v91 = vld [vmem:[%s0 + $0x14] sm:$0xf]
  %v92 = vld [vmem:[%s0 + $0x18] sm:$0xf]
  %v93 = vld [vmem:[%s0 + $0x1c] sm:$0xf]
  %v94 = vld [vmem:[%s0 + $0x20] sm:$0xf]
  %v95 = vld [vmem:[%s0 + $0x24] sm:$0xf]
  %v96 = vld [vmem:[%s0 + $0x28] sm:$0xf]
  %v97 = vld [vmem:[%s0 + $0x2c] sm:$0xf]
  %v98 = vld [vmem:[%s0 + $0x30] sm:$0xf]
  %v99 = vld [vmem:[%s0 + $0x34] sm:$0xf]
  %v100 = vld [vmem:[%s0 + $0x38] sm:$0xf]
  %v101 = vld [vmem:[%s0 + $0x3c] sm:$0xf]
  %v102 = vld [vmem:[%s1] sm:$0xf]
  %v103 = vld [vmem:[%s1 + $0x4] sm:$0xf]
  %v104 = vld [vmem:[%s1 + $0x8] sm:$0xf]
  %v105 = vld [vmem:[%s1 + $0xc] sm:$0xf]
  %v106 = vld [vmem:[%s1 + $0x10] sm:$0xf]
  %v107 = vld [vmem:[%s1 + $0x14] sm:$0xf]
  %v108 = vld [vmem:[%s1 + $0x18] sm:$0xf]
  %v109 = vld [vmem:[%s1 + $0x1c] sm:$0xf]
  %v110 = vld [vmem:[%s1 + $0x20] sm:$0xf]
  %v111 = vld [vmem:[%s1 + $0x24] sm:$0xf]
  %v112 = vld [vmem:[%s1 + $0x28] sm:$0xf]
  %v113 = vld [vmem:[%s1 + $0x2c] sm:$0xf]
  %v114 = vld [vmem:[%s1 + $0x30] sm:$0xf]
  %v115 = vld [vmem:[%s1 + $0x34] sm:$0xf]
  %v116 = vld [vmem:[%s1 + $0x38] sm:$0xf]
  %v117 = vld [vmem:[%s1 + $0x3c] sm:$0xf]
  %v134 = vunpack.c.l.b16 %v86
  %v135 = vunpack.c.l.b16 %v87
  %v136 = vunpack.c.l.b16 %v88
  %v137 = vunpack.c.l.b16 %v89
  %v138 = vunpack.c.l.b16 %v90
  %v139 = vunpack.c.l.b16 %v91
  %v140 = vunpack.c.l.b16 %v92
  %v141 = vunpack.c.l.b16 %v93
  %v142 = vunpack.c.l.b16 %v94
  %v143 = vunpack.c.l.b16 %v95
  %v144 = vunpack.c.l.b16 %v96
  %v145 = vunpack.c.l.b16 %v97
  %v146 = vunpack.c.l.b16 %v98
  %v147 = vunpack.c.l.b16 %v99
  %v148 = vunpack.c.l.b16 %v100
  %v149 = vunpack.c.l.b16 %v101
  %v150 = vpack.c.b16 %v135, %v134
  %v151 = vpack.c.b16 %v137, %v136
  %v152 = vpack.c.b16 %v139, %v138
  %v153 = vpack.c.b16 %v141, %v140
  %v154 = vpack.c.b16 %v143, %v142
  %v155 = vpack.c.b16 %v145, %v144
  %v156 = vpack.c.b16 %v147, %v146
  %v157 = vpack.c.b16 %v149, %v148
  %v182 = vunpack.c.l.b16 %v102
  %v183 = vunpack.c.l.b16 %v103
  %v184 = vunpack.c.l.b16 %v104
  %v185 = vunpack.c.l.b16 %v105
  %v186 = vunpack.c.l.b16 %v106
  %v187 = vunpack.c.l.b16 %v107
  %v188 = vunpack.c.l.b16 %v108
  %v189 = vunpack.c.l.b16 %v109
  %v190 = vunpack.c.l.b16 %v110
  %v191 = vunpack.c.l.b16 %v111
  %v192 = vunpack.c.l.b16 %v112
  %v193 = vunpack.c.l.b16 %v113
  %v194 = vunpack.c.l.b16 %v114
  %v195 = vunpack.c.l.b16 %v115
  %v196 = vunpack.c.l.b16 %v116
  %v197 = vunpack.c.l.b16 %v117
  %v198 = vpack.c.b16 %v183, %v182
  %v199 = vpack.c.b16 %v185, %v184
  %v200 = vpack.c.b16 %v187, %v186
  %v201 = vpack.c.b16 %v189, %v188
  %v202 = vpack.c.b16 %v191, %v190
  %v203 = vpack.c.b16 %v193, %v192
  %v204 = vpack.c.b16 %v195, %v194
  %v205 = vpack.c.b16 %v197, %v196
  %214 = vmatprep.subr.bf16.mxu0 0
  %215 = vmatpush1.bf16.msra.mxu0 %v198
  %216 = vmatprep.subr.bf16.mxu0 0
  %217 = vmatpush1.bf16.msra.mxu0 %v199
  %218 = vmatprep.subr.bf16.mxu0 0
  %219 = vmatpush1.bf16.msra.mxu0 %v200
  %220 = vmatprep.subr.bf16.mxu0 0
  %221 = vmatpush1.bf16.msra.mxu0 %v201
  %222 = vmatprep.subr.bf16.mxu0 0
  %223 = vmatpush1.bf16.msra.mxu0 %v202
  %224 = vmatprep.subr.bf16.mxu0 0
  %225 = vmatpush1.bf16.msra.mxu0 %v203
  %226 = vmatprep.subr.bf16.mxu0 0
  %227 = vmatpush1.bf16.msra.mxu0 %v204
  %228 = vmatprep.subr.bf16.mxu0 0
  %229 = vmatpush1.bf16.msra.mxu0 %v205
  %230 = vmatprep.subr.bf16.mxu0 0
  %231 = vmatpush1.bf16.msra.mxu0 0
  %232 = vmatprep.subr.bf16.mxu0 0
  %233 = vmatpush1.bf16.msra.mxu0 0
  %234 = vmatprep.subr.bf16.mxu0 0
  %235 = vmatpush1.bf16.msra.mxu0 0
  %236 = vmatprep.subr.bf16.mxu0 0
  %237 = vmatpush1.bf16.msra.mxu0 0
  %238 = vmatprep.subr.bf16.mxu0 0
  %239 = vmatpush1.bf16.msra.mxu0 0
  %240 = vmatprep.subr.bf16.mxu0 0
  %241 = vmatpush1.bf16.msra.mxu0 0
  %242 = vmatprep.subr.bf16.mxu0 0
  %243 = vmatpush1.bf16.msra.mxu0 0
  %244 = vmatprep.subr.bf16.mxu0 0
  %245 = vmatpush1.bf16.msra.mxu0 0
  %246 = vmatprep.mubr.bf16.mxu0 0
  %247 = vmatmul.mubr.bf16.gmra.mrb[0].mxu0 %v150
  %v248 = vpop.f32.mrb[0].mxu0
  %v249 = vadd.f32 0.0, %v248
  %v250 = vpop.f32.mrb[0].mxu0
  %v251 = vpop.f32.mrb[0].mxu0
  %v252 = vadd.f32 0.0, %v251
  %v253 = vpop.f32.mrb[0].mxu0
  %254 = vmatprep.mubr.bf16.mxu0 0
  %255 = vmatmul.mubr.bf16.gmra.mrb[0].mxu0 %v151
  %v256 = vpop.f32.mrb[0].mxu0
  %v257 = vadd.f32 0.0, %v256
  %v258 = vpop.f32.mrb[0].mxu0
  %v259 = vpop.f32.mrb[0].mxu0
  %v260 = vadd.f32 0.0, %v259
  %v261 = vpop.f32.mrb[0].mxu0
  %262 = vmatprep.mubr.bf16.mxu0 0
  %263 = vmatmul.mubr.bf16.gmra.mrb[0].mxu0 %v152
  %v264 = vpop.f32.mrb[0].mxu0
  %v265 = vadd.f32 0.0, %v264
  %v266 = vpop.f32.mrb[0].mxu0
  %v267 = vpop.f32.mrb[0].mxu0
  %v268 = vadd.f32 0.0, %v267
  %v269 = vpop.f32.mrb[0].mxu0
  %270 = vmatprep.mubr.bf16.mxu0 0
  %271 = vmatmul.mubr.bf16.gmra.mrb[0].mxu0 %v153
  %v272 = vpop.f32.mrb[0].mxu0
  %v273 = vadd.f32 0.0, %v272
  %v274 = vpop.f32.mrb[0].mxu0
  %v275 = vpop.f32.mrb[0].mxu0
  %v276 = vadd.f32 0.0, %v275
  %v277 = vpop.f32.mrb[0].mxu0
  %278 = vmatprep.mubr.bf16.mxu0 0
  %279 = vmatmul.mubr.bf16.gmra.mrb[0].mxu0 %v154
  %v280 = vpop.f32.mrb[0].mxu0
  %v281 = vadd.f32 0.0, %v280
  %v282 = vpop.f32.mrb[0].mxu0
  %v283 = vpop.f32.mrb[0].mxu0
  %v284 = vadd.f32 0.0, %v283
  %v285 = vpop.f32.mrb[0].mxu0
  %286 = vmatprep.mubr.bf16.mxu0 0
  %287 = vmatmul.mubr.bf16.gmra.mrb[0].mxu0 %v155
  %v288 = vpop.f32.mrb[0].mxu0
  %v289 = vadd.f32 0.0, %v288
  %v290 = vpop.f32.mrb[0].mxu0
  %v291 = vpop.f32.mrb[0].mxu0
  %v292 = vadd.f32 0.0, %v291
  %v293 = vpop.f32.mrb[0].mxu0
  %294 = vmatprep.mubr.bf16.mxu0 0
  %295 = vmatmul.mubr.bf16.gmra.mrb[0].mxu0 %v156
  %v296 = vpop.f32.mrb[0].mxu0
  %v297 = vadd.f32 0.0, %v296
  %v298 = vpop.f32.mrb[0].mxu0
  %v299 = vpop.f32.mrb[0].mxu0
  %v300 = vadd.f32 0.0, %v299
  %v301 = vpop.f32.mrb[0].mxu0
  %302 = vmatprep.mubr.bf16.mxu0 0
  %303 = vmatmul.mubr.bf16.gmra.mrb[0].mxu0 %v157
  %v304 = vpop.f32.mrb[0].mxu0
  %v305 = vadd.f32 0.0, %v304
  %v306 = vpop.f32.mrb[0].mxu0
  %v307 = vpop.f32.mrb[0].mxu0
  %v308 = vadd.f32 0.0, %v307
  %v309 = vpop.f32.mrb[0].mxu0
  %310 = vdwg.mxu0
  %v311 = vadd.f32 %v70, %v249
  %v312 = vadd.f32 %v71, %v252
  %v313 = vadd.f32 %v72, %v257
  %v314 = vadd.f32 %v73, %v260
  %v315 = vadd.f32 %v74, %v265
  %v316 = vadd.f32 %v75, %v268
  %v317 = vadd.f32 %v76, %v273
  %v318 = vadd.f32 %v77, %v276
  %v319 = vadd.f32 %v78, %v281
  %v320 = vadd.f32 %v79, %v284
  %v321 = vadd.f32 %v80, %v289
  %v322 = vadd.f32 %v81, %v292
  %v323 = vadd.f32 %v82, %v297
  %v324 = vadd.f32 %v83, %v300
  %v325 = vadd.f32 %v84, %v305
  %v326 = vadd.f32 %v85, %v308
  %327 = vst [vmem:[#allocation2] sm:$0xff] %v311
  %328 = vst [vmem:[#allocation2 + $0x8] sm:$0xff] %v312
  %329 = vst [vmem:[#allocation2 + $0x10] sm:$0xff] %v313
  %330 = vst [vmem:[#allocation2 + $0x18] sm:$0xff] %v314
  %331 = vst [vmem:[#allocation2 + $0x20] sm:$0xff] %v315
  %332 = vst [vmem:[#allocation2 + $0x28] sm:$0xff] %v316
  %333 = vst [vmem:[#allocation2 + $0x30] sm:$0xff] %v317
  %334 = vst [vmem:[#allocation2 + $0x38] sm:$0xff] %v318
  %335 = vst [vmem:[#allocation2 + $0x40] sm:$0xff] %v319
  %336 = vst [vmem:[#allocation2 + $0x48] sm:$0xff] %v320
  %337 = vst [vmem:[#allocation2 + $0x50] sm:$0xff] %v321
  %338 = vst [vmem:[#allocation2 + $0x58] sm:$0xff] %v322
  %339 = vst [vmem:[#allocation2 + $0x60] sm:$0xff] %v323
  %340 = vst [vmem:[#allocation2 + $0x68] sm:$0xff] %v324
  %341 = vst [vmem:[#allocation2 + $0x70] sm:$0xff] %v325
  %342 = vst [vmem:[#allocation2 + $0x78] sm:$0xff] %v326
  // Predicated region
  $region22: #{bottleneck_forward.7} parent=0 // pred_check
    %p343 = pneg %p18
  $region23: #{bottleneck_forward.7} parent=0 // pred_check_branch
    %345 = sbr.rel (%p343) target = $region25
  $region24: #{bottleneck_forward.7} parent=0 // pred_region
    %v346 = vld [vmem:[#allocation2] sm:$0xff]
    %v347 = vld [vmem:[#allocation2 + $0x8] sm:$0xff]
    %v348 = vld [vmem:[#allocation2 + $0x10] sm:$0xff]
    %v349 = vld [vmem:[#allocation2 + $0x18] sm:$0xff]
    %v350 = vld [vmem:[#allocation2 + $0x20] sm:$0xff]
    %v351 = vld [vmem:[#allocation2 + $0x28] sm:$0xff]
    %v352 = vld [vmem:[#allocation2 + $0x30] sm:$0xff]
    %v353 = vld [vmem:[#allocation2 + $0x38] sm:$0xff]
    %v354 = vld [vmem:[#allocation2 + $0x40] sm:$0xff]
    %v355 = vld [vmem:[#allocation2 + $0x48] sm:$0xff]
    %v356 = vld [vmem:[#allocation2 + $0x50] sm:$0xff]
    %v357 = vld [vmem:[#allocation2 + $0x58] sm:$0xff]
    %v358 = vld [vmem:[#allocation2 + $0x60] sm:$0xff]
    %v359 = vld [vmem:[#allocation2 + $0x68] sm:$0xff]
    %v360 = vld [vmem:[#allocation2 + $0x70] sm:$0xff]
    %v361 = vld [vmem:[#allocation2 + $0x78] sm:$0xff]
    %v362 = vld [vmem:[%s2] sm:$0x1]
    %v364 = vlaneseq
    %v365 = vshrl.u32 %v364, 7
    %v366 = vsub.s32 0, %v365
    %v367 = vrot.slane %v362, %v366
    %v369 = vadd.f32 %v346, %v367
    %v370 = vadd.f32 %v347, %v367
    %v371 = vadd.f32 %v348, %v367
    %v372 = vadd.f32 %v349, %v367
    %v373 = vadd.f32 %v350, %v367
    %v374 = vadd.f32 %v351, %v367
    %v375 = vadd.f32 %v352, %v367
    %v376 = vadd.f32 %v353, %v367
    %v377 = vadd.f32 %v354, %v367
    %v378 = vadd.f32 %v355, %v367
    %v379 = vadd.f32 %v356, %v367
    %v380 = vadd.f32 %v357, %v367
    %v381 = vadd.f32 %v358, %v367
    %v382 = vadd.f32 %v359, %v367
    %v383 = vadd.f32 %v360, %v367
    %v384 = vadd.f32 %v361, %v367
    %v385 = vmax.f32 %v369, 0.0
    %v386 = vmax.f32 %v370, 0.0
    %v387 = vmax.f32 %v371, 0.0
    %v388 = vmax.f32 %v372, 0.0
    %v389 = vmax.f32 %v373, 0.0
    %v390 = vmax.f32 %v374, 0.0
    %v391 = vmax.f32 %v375, 0.0
    %v392 = vmax.f32 %v376, 0.0
    %v393 = vmax.f32 %v377, 0.0
    %v394 = vmax.f32 %v378, 0.0
    %v395 = vmax.f32 %v379, 0.0
    %v396 = vmax.f32 %v380, 0.0
    %v397 = vmax.f32 %v381, 0.0
    %v398 = vmax.f32 %v382, 0.0
    %v399 = vmax.f32 %v383, 0.0
    %v400 = vmax.f32 %v384, 0.0
    %401 = vst [vmem:[%s4] sm:$0xff] %v385
    %402 = vst [vmem:[%s4 + $0x8] sm:$0xff] %v386
    %403 = vst [vmem:[%s4 + $0x10] sm:$0xff] %v387
    %404 = vst [vmem:[%s4 + $0x18] sm:$0xff] %v388
    %405 = vst [vmem:[%s4 + $0x20] sm:$0xff] %v389
    %406 = vst [vmem:[%s4 + $0x28] sm:$0xff] %v390
    %407 = vst [vmem:[%s4 + $0x30] sm:$0xff] %v391
    %408 = vst [vmem:[%s4 + $0x38] sm:$0xff] %v392
    %409 = vst [vmem:[%s4 + $0x40] sm:$0xff] %v393
    %410 = vst [vmem:[%s4 + $0x48] sm:$0xff] %v394
    %411 = vst [vmem:[%s4 + $0x50] sm:$0xff] %v395
    %412 = vst [vmem:[%s4 + $0x58] sm:$0xff] %v396
    %413 = vst [vmem:[%s4 + $0x60] sm:$0xff] %v397
    %414 = vst [vmem:[%s4 + $0x68] sm:$0xff] %v398
    %415 = vst [vmem:[%s4 + $0x70] sm:$0xff] %v399
    %416 = vst [vmem:[%s4 + $0x78] sm:$0xff] %v400
  $region25: #{bottleneck_forward.7} parent=0 // pred_fallthru
    _
  // Predicated region
  $region26: #{bottleneck_forward.7} parent=0 // pred_check
    _
  $region27: #{bottleneck_forward.7} parent=0 // pred_check_branch
    %418 = sbr.rel (0) target = $region29
  $region28: #{bottleneck_forward.7} parent=0 // pred_region
    _
  $region29: #{bottleneck_forward.7} parent=0 // pred_fallthru
    _
  // Predicated region
  $region30: #{bottleneck_forward.7} parent=0 // pred_check
    _
  $region31: #{bottleneck_forward.7} parent=0 // pred_check_branch
    %420 = sbr.rel (0) target = $region33
  $region32: #{bottleneck_forward.7} parent=0 // pred_region
    _
  $region33: #{bottleneck_forward.7} parent=0 // pred_fallthru
    _

// kernel: bottleneck_forward.5
$region0: #{bottleneck_forward.5}
  #allocation0 [shape = 'u32[]', space=smem, size = 0x4, offset = 0x4, fixed_abs, tag = 'smem constant byte address 0x4 - core index']
  #allocation1 [shape = 'u32[144,128]{1,0:T(1,128)}', space=vmem, size = 0x12000, scoped, tag = 'internal scratch']
  %s0 = inlined_call_operand.vmem [shape: bf16[2,4,9,9,128], index: 0, kind: input, shape index: {}]
  %s1 = inlined_call_operand.vmem [shape: bf16[9,128,128], index: 1, kind: input, shape index: {}]
  %s2 = inlined_call_operand.vmem [shape: f32[1,128], index: 2, kind: input, shape index: {}]
  %s3 = inlined_call_operand.vmem [shape: bf16[2,8,8,128], index: 3, kind: output, shape index: {}]
  %s4 = sld [smem:[#allocation0]]
  $region45: #{bottleneck_forward.5} parent=0
    _
  %s6 = ssub.s32 1, %s4
  %s7 = scalar_select 0, %s6, %s4
  loop: start=0, step=1, limit=4
  $region2: #{bottleneck_forward.5} parent=0 // loop_pre_header
    _
  $region3: #{bottleneck_forward.5} parent=0 // loop_header
    %s9 = sphi 0, %s13
    %p10 = scmp.ge.s32.totalorder %s9, 4
    %s16 = sphi 0, %s28
    %s17 = sphi 0, %s24
    %s18 = sphi 0, %s16
    %s19 = sphi 0, %s17
    %s20 = sphi 0, %s18
    %s21 = sphi 0, %s19
    %s31 = sphi 0, %s33
    %s34 = sphi 0, %s31
    %s35 = sphi 0, %s34
    %s51 = sphi 0, %s35
    %s57 = sphi 0, %s59
    %s60 = sphi 0, %s57
    %s61 = sphi 0, %s60
    %s77 = sphi 0, %s61
    %s83 = sphi 0, %s85
    %s86 = sphi 0, %s83
    %s87 = sphi 0, %s86
    %s103 = sphi 0, %s87
    %s111 = sphi 0, %s113
    %s114 = sphi 0, %s111
    %s115 = sphi 0, %s114
    %s131 = sphi 0, %s115
  $region4: #{bottleneck_forward.5} parent=0 // loop_header_branch
    %12 = sbr.rel (%p10) target = $region8
  $region5: #{bottleneck_forward.5} parent=0 // loop_body
    %s14 = ssub.s32 %s9, 1
    %s15 = ssub.s32 %s9, 2
    %s22 = sadd.s32 1, %s17
    %p23 = scmp.ge.s32.totalorder %s22, 1
    %s24 = scalar_select %p23, 0, %s22
    %s25 = sadd.s32 1, %s16
    %s26 = scalar_select %p23, %s25, %s16
    %p27 = scmp.ge.s32.totalorder %s26, 2
    %s28 = scalar_select %p27, 0, %s26
    %s29 = ssub.s32 %s16, %s28
    %p30 = scmp.eq.s32.totalorder %s29, 0
    %s32 = sadd.s32 %s31, 1
    %s33 = scalar_select %p30, %s31, %s32
    %p36 = pneg %p30
    %p37 = scmp.eq.s32.totalorder %s9, 1
    %p38 = por %p36, %p37
    %p39 = scmp.ne.s32.totalorder %s31, %s34
    %p40 = scmp.eq.s32.totalorder %s9, 0
    %p41 = por %p39, %p40
    %p42 = scmp.ne.s32.totalorder %s31, %s34
    %p43 = scmp.eq.s32.totalorder %s14, 1
    %p44 = por %p42, %p43
    %p45 = scmp.ne.s32.totalorder %s34, %s35
    %p46 = scmp.eq.s32.totalorder %s14, 0
    %p47 = por %p45, %p46
    %p48 = scmp.ne.s32.totalorder %s34, %s35
    %p49 = scmp.eq.s32.totalorder %s15, 1
    %p50 = por %p48, %p49
    %p52 = scmp.ne.s32.totalorder %s35, %s51
    %p53 = scmp.eq.s32.totalorder %s15, 0
    %p54 = por %p52, %p53
    %s55 = ssub.s32 %s17, %s24
    %p56 = scmp.eq.s32.totalorder %s55, 0
    %s58 = sadd.s32 %s57, 1
    %s59 = scalar_select %p56, %s57, %s58
    %p62 = pneg %p56
    %p63 = scmp.eq.s32.totalorder %s9, 1
    %p64 = por %p62, %p63
    %p65 = scmp.ne.s32.totalorder %s57, %s60
    %p66 = scmp.eq.s32.totalorder %s9, 0
    %p67 = por %p65, %p66
    %p68 = scmp.ne.s32.totalorder %s57, %s60
    %p69 = scmp.eq.s32.totalorder %s14, 1
    %p70 = por %p68, %p69
    %p71 = scmp.ne.s32.totalorder %s60, %s61
    %p72 = scmp.eq.s32.totalorder %s14, 0
    %p73 = por %p71, %p72
    %p74 = scmp.ne.s32.totalorder %s60, %s61
    %p75 = scmp.eq.s32.totalorder %s15, 1
    %p76 = por %p74, %p75
    %p78 = scmp.ne.s32.totalorder %s61, %s77
    %p79 = scmp.eq.s32.totalorder %s15, 0
    %p80 = por %p78, %p79
    %s81 = ssub.s32 %s17, %s24
    %p82 = scmp.eq.s32.totalorder %s81, 0
    %s84 = sadd.s32 %s83, 1
    %s85 = scalar_select %p82, %s83, %s84
    %p88 = pneg %p82
    %p89 = scmp.eq.s32.totalorder %s9, 1
    %p90 = por %p88, %p89
    %p91 = scmp.ne.s32.totalorder %s83, %s86
    %p92 = scmp.eq.s32.totalorder %s9, 0
    %p93 = por %p91, %p92
    %p94 = scmp.ne.s32.totalorder %s83, %s86
    %p95 = scmp.eq.s32.totalorder %s14, 1
    %p96 = por %p94, %p95
    %p97 = scmp.ne.s32.totalorder %s86, %s87
    %p98 = scmp.eq.s32.totalorder %s14, 0
    %p99 = por %p97, %p98
    %p100 = scmp.ne.s32.totalorder %s86, %s87
    %p101 = scmp.eq.s32.totalorder %s15, 1
    %p102 = por %p100, %p101
    %p104 = scmp.ne.s32.totalorder %s87, %s103
    %p105 = scmp.eq.s32.totalorder %s15, 0
    %p106 = por %p104, %p105
    %s107 = ssub.s32 %s16, %s28
    %s108 = ssub.s32 %s17, %s24
    %s109 = sor.u32 %s107, %s108
    %p110 = scmp.eq.s32.totalorder %s109, 0
    %s112 = sadd.s32 %s111, 1
    %s113 = scalar_select %p110, %s111, %s112
    %p116 = pneg %p110
    %p117 = scmp.eq.s32.totalorder %s9, 1
    %p118 = por %p116, %p117
    %p119 = scmp.ne.s32.totalorder %s111, %s114
    %p120 = scmp.eq.s32.totalorder %s9, 0
    %p121 = por %p119, %p120
    %p122 = scmp.ne.s32.totalorder %s111, %s114
    %p123 = scmp.eq.s32.totalorder %s14, 1
    %p124 = por %p122, %p123
    %p125 = scmp.ne.s32.totalorder %s114, %s115
    %p126 = scmp.eq.s32.totalorder %s14, 0
    %p127 = por %p125, %p126
    %p128 = scmp.ne.s32.totalorder %s114, %s115
    %p129 = scmp.eq.s32.totalorder %s15, 1
    %p130 = por %p128, %p129
    %p132 = scmp.ne.s32.totalorder %s115, %s131
    %p133 = scmp.eq.s32.totalorder %s15, 0
    %p134 = por %p132, %p133
    %p135 = scmp.le.s32.totalorder 1, %s9
    %p136 = scmp.lt.s32.totalorder %s9, 3
    %p137 = pnand %p135, %p136
    %p138 = pneg %p137
    // Predicated region
    $region9: #{bottleneck_forward.5} parent=5 // pred_check
      _
    $region10: #{bottleneck_forward.5} parent=5 // pred_check_branch
      %140 = sbr.rel (%p137) target = $region12
    $region11: #{bottleneck_forward.5} parent=5 // pred_region
      %s141 = ssub.s32 %s9, 1
      // Predicated region
      $region13: #{bottleneck_forward.5} parent=11 // pred_check
        %p142 = pneg %p73
      $region14: #{bottleneck_forward.5} parent=11 // pred_check_branch
        %144 = sbr.rel (%p142) target = $region16
      $region15: #{bottleneck_forward.5} parent=11 // pred_region
        %p145 = scmp.lt.s32.totalorder %s19, 0
        %s146 = scalar_select %p145, %s19, 0
        %s147 = smul.addr %s146, 4
        %s148 = scalar_lea.vmem %s1, %s147
      $region16: #{bottleneck_forward.5} parent=11 // pred_fallthru
        _
      // Predicated region
      $region17: #{bottleneck_forward.5} parent=11 // pred_check
        %p149 = pneg %p99
      $region18: #{bottleneck_forward.5} parent=11 // pred_check_branch
        %151 = sbr.rel (%p149) target = $region20
      $region19: #{bottleneck_forward.5} parent=11 // pred_region
        %p152 = scmp.lt.s32.totalorder %s19, 0
        %s153 = scalar_select %p152, %s19, 0
        %s154 = scalar_lea.vmem %s2, %s153
      $region20: #{bottleneck_forward.5} parent=11 // pred_fallthru
        _
    $region12: #{bottleneck_forward.5} parent=5 // pred_fallthru
      _
    %p155 = scmp.lt.s32.totalorder %s9, 2
    // Predicated region
    $region21: #{bottleneck_forward.5} parent=5 // pred_check
      %p156 = pneg %p155
    $region22: #{bottleneck_forward.5} parent=5 // pred_check_branch
      %158 = sbr.rel (%p156) target = $region24
    $region23: #{bottleneck_forward.5} parent=5 // pred_region
      // Predicated region
      $region25: #{bottleneck_forward.5} parent=23 // pred_check
        %p159 = pneg %p41
      $region26: #{bottleneck_forward.5} parent=23 // pred_check_branch
        %161 = sbr.rel (%p159) target = $region28
      $region27: #{bottleneck_forward.5} parent=23 // pred_region
        %p162 = scmp.lt.s32.totalorder %s16, 1
        %s163 = scalar_select %p162, %s16, 1
        %s164 = smul.addr %s163, 72
        %s165 = smul.addr %s164, 4
        %s166 = scalar_lea.vmem %s0, %s165
      $region28: #{bottleneck_forward.5} parent=23 // pred_fallthru
        _
    $region24: #{bottleneck_forward.5} parent=5 // pred_fallthru
      _
    %p167 = scmp.le.s32.totalorder 1, %s9
    %p168 = scmp.lt.s32.totalorder %s9, 3
    %p169 = pnand %p167, %p168
    %p170 = pneg %p169
    // Predicated region
    $region29: #{bottleneck_forward.5} parent=5 // pred_check
      _
    $region30: #{bottleneck_forward.5} parent=5 // pred_check_branch
      %172 = sbr.rel (%p169) target = $region32
    $region31: #{bottleneck_forward.5} parent=5 // pred_region
      %s173 = ssub.s32 %s9, 1
      %p174 = scmp.lt.s32.totalorder %s18, 1
      %s175 = scalar_select %p174, %s18, 1
      %s176 = smul.addr %s175, 72
      %s177 = smul.addr %s176, 4
      %s178 = scalar_lea.vmem %s0, %s177
      %p179 = pneg %p47
      %p180 = pneg %p44
      %p181 = scmp.lt.s32.totalorder %s19, 0
      %s182 = scalar_select %p181, %s19, 0
      %s183 = smul.addr %s182, 4
      %s184 = scalar_lea.vmem %s1, %s183
      %p185 = pneg %p73
      %p186 = pneg %p70
      %p187 = scmp.lt.s32.totalorder %s19, 0
      %s188 = scalar_select %p187, %s19, 0
      %s189 = scalar_lea.vmem %s2, %s188
      %p190 = pneg %p99
      %p191 = pneg %p96
      %p192 = pneg %p127
      %p193 = pneg %p124
      %p194 = scmp.lt.s32.totalorder %s18, 1
      %s195 = scalar_select %p194, %s18, 1
      %p196 = scmp.lt.s32.totalorder %s19, 0
      %s197 = scalar_select %p196, %s19, 0
      %s198 = smul.addr %s195, 8
      %s199 = sadd.s32 %s197, %s198
      %s200 = smul.addr %s199, 4
      %s201 = scalar_lea.vmem %s3, %s200
      %p202 = scmp.lt.s32.totalorder %s18, 1
      %s203 = scalar_select %p202, %s18, 1
      %s204 = smul.addr %s203, 72
      %s205 = smul.addr %s204, 4
      %s206 = scalar_lea.vmem %s0, %s205
      %p207 = scmp.lt.s32.totalorder %s19, 0
      %s208 = scalar_select %p207, %s19, 0
      %s209 = smul.addr %s208, 4
      %s210 = scalar_lea.vmem %s1, %s209
      %p211 = scmp.lt.s32.totalorder %s19, 0
      %s212 = scalar_select %p211, %s19, 0
      %s213 = scalar_lea.vmem %s2, %s212
      %p214 = scmp.lt.s32.totalorder %s18, 1
      %s215 = scalar_select %p214, %s18, 1
      %p216 = scmp.lt.s32.totalorder %s19, 0
      %s217 = scalar_select %p216, %s19, 0
      %s218 = smul.addr %s215, 8
      %s219 = sadd.s32 %s217, %s218
      %s220 = smul.addr %s219, 4
      %s221 = scalar_lea.vmem %s3, %s220
      %v223 = vld [vmem:[%s206] sm:$0xf]
      %v224 = vld [vmem:[%s206 + $0x8] sm:$0xf]
      %v225 = vld [vmem:[%s206 + $0x10] sm:$0xf]
      %v226 = vld [vmem:[%s206 + $0x18] sm:$0xf]
      %v227 = vld [vmem:[%s206 + $0x20] sm:$0xf]
      %v228 = vld [vmem:[%s206 + $0x28] sm:$0xf]
      %v229 = vld [vmem:[%s206 + $0x30] sm:$0xf]
      %v230 = vld [vmem:[%s206 + $0x38] sm:$0xf]
      %v231 = vld [vmem:[%s210] sm:$0xf]
      %v232 = vld [vmem:[%s210 + $0x4] sm:$0xf]
      %v233 = vld [vmem:[%s210 + $0x8] sm:$0xf]
      %v234 = vld [vmem:[%s210 + $0xc] sm:$0xf]
      %v235 = vld [vmem:[%s210 + $0x10] sm:$0xf]
      %v236 = vld [vmem:[%s210 + $0x14] sm:$0xf]
      %v237 = vld [vmem:[%s210 + $0x18] sm:$0xf]
      %v238 = vld [vmem:[%s210 + $0x1c] sm:$0xf]
      %v239 = vld [vmem:[%s210 + $0x20] sm:$0xf]
      %v240 = vld [vmem:[%s210 + $0x24] sm:$0xf]
      %v241 = vld [vmem:[%s210 + $0x28] sm:$0xf]
      %v242 = vld [vmem:[%s210 + $0x2c] sm:$0xf]
      %v243 = vld [vmem:[%s210 + $0x30] sm:$0xf]
      %v244 = vld [vmem:[%s210 + $0x34] sm:$0xf]
      %v245 = vld [vmem:[%s210 + $0x38] sm:$0xf]
      %v246 = vld [vmem:[%s210 + $0x3c] sm:$0xf]
      %s247 = scalar_lea.vmem %s206, 72
      %v248 = vld [vmem:[%s247] sm:$0xf]
      %v249 = vld [vmem:[%s247 + $0x8] sm:$0xf]
      %v250 = vld [vmem:[%s247 + $0x10] sm:$0xf]
      %v251 = vld [vmem:[%s247 + $0x18] sm:$0xf]
      %v252 = vld [vmem:[%s247 + $0x20] sm:$0xf]
      %v253 = vld [vmem:[%s247 + $0x28] sm:$0xf]
      %v254 = vld [vmem:[%s247 + $0x30] sm:$0xf]
      %v255 = vld [vmem:[%s247 + $0x38] sm:$0xf]
      %s256 = scalar_lea.vmem %s210, 64
      %v257 = vld [vmem:[%s256] sm:$0xf]
      %v258 = vld [vmem:[%s256 + $0x4] sm:$0xf]
      %v259 = vld [vmem:[%s256 + $0x8] sm:$0xf]
      %v260 = vld [vmem:[%s256 + $0xc] sm:$0xf]
      %v261 = vld [vmem:[%s256 + $0x10] sm:$0xf]
      %v262 = vld [vmem:[%s256 + $0x14] sm:$0xf]
      %v263 = vld [vmem:[%s256 + $0x18] sm:$0xf]
      %v264 = vld [vmem:[%s256 + $0x1c] sm:$0xf]
      %v265 = vld [vmem:[%s256 + $0x20] sm:$0xf]
      %v266 = vld [vmem:[%s256 + $0x24] sm:$0xf]
      %v267 = vld [vmem:[%s256 + $0x28] sm:$0xf]
      %v268 = vld [vmem:[%s256 + $0x2c] sm:$0xf]
      %v269 = vld [vmem:[%s256 + $0x30] sm:$0xf]
      %v270 = vld [vmem:[%s256 + $0x34] sm:$0xf]
      %v271 = vld [vmem:[%s256 + $0x38] sm:$0xf]
      %v272 = vld [vmem:[%s256 + $0x3c] sm:$0xf]
      %v281 = vunpack.c.l.b16 %v248
      %v282 = vunpack.c.l.b16 %v249
      %v283 = vunpack.c.l.b16 %v250
      %v284 = vunpack.c.l.b16 %v251
      %v285 = vunpack.c.l.b16 %v252
      %v286 = vunpack.c.l.b16 %v253
      %v287 = vunpack.c.l.b16 %v254
      %v288 = vunpack.c.l.b16 %v255
      %v289 = vpack.c.b16 %v282, %v281
      %v290 = vpack.c.b16 %v284, %v283
      %v291 = vpack.c.b16 %v286, %v285
      %v292 = vpack.c.b16 %v288, %v287
      %v313 = vunpack.c.l.b16 %v257
      %v314 = vunpack.c.l.b16 %v258
      %v315 = vunpack.c.l.b16 %v259
      %v316 = vunpack.c.l.b16 %v260
      %v317 = vunpack.c.l.b16 %v261
      %v318 = vunpack.c.l.b16 %v262
      %v319 = vunpack.c.l.b16 %v263
      %v320 = vunpack.c.l.b16 %v264
      %v321 = vunpack.c.l.b16 %v265
      %v322 = vunpack.c.l.b16 %v266
      %v323 = vunpack.c.l.b16 %v267
      %v324 = vunpack.c.l.b16 %v268
      %v325 = vunpack.c.l.b16 %v269
      %v326 = vunpack.c.l.b16 %v270
      %v327 = vunpack.c.l.b16 %v271
      %v328 = vunpack.c.l.b16 %v272
      %v329 = vpack.c.b16 %v314, %v313
      %v330 = vpack.c.b16 %v316, %v315
      %v331 = vpack.c.b16 %v318, %v317
      %v332 = vpack.c.b16 %v320, %v319
      %v333 = vpack.c.b16 %v322, %v321
      %v334 = vpack.c.b16 %v324, %v323
      %v335 = vpack.c.b16 %v326, %v325
      %v336 = vpack.c.b16 %v328, %v327
      %345 = vmatprep.subr.bf16.mxu0 0
      %346 = vmatpush1.bf16.msra.mxu0 %v329
      %347 = vmatprep.subr.bf16.mxu0 0
      %348 = vmatpush1.bf16.msra.mxu0 %v330
      %349 = vmatprep.subr.bf16.mxu0 0
      %350 = vmatpush1.bf16.msra.mxu0 %v331
      %351 = vmatprep.subr.bf16.mxu0 0
      %352 = vmatpush1.bf16.msra.mxu0 %v332
      %353 = vmatprep.subr.bf16.mxu0 0
      %354 = vmatpush1.bf16.msra.mxu0 %v333
      %355 = vmatprep.subr.bf16.mxu0 0
      %356 = vmatpush1.bf16.msra.mxu0 %v334
      %357 = vmatprep.subr.bf16.mxu0 0
      %358 = vmatpush1.bf16.msra.mxu0 %v335
      %359 = vmatprep.subr.bf16.mxu0 0
      %360 = vmatpush1.bf16.msra.mxu0 %v336
      %361 = vmatprep.subr.bf16.mxu0 0
      %362 = vmatpush1.bf16.msra.mxu0 0
      %363 = vmatprep.subr.bf16.mxu0 0
      %364 = vmatpush1.bf16.msra.mxu0 0
      %365 = vmatprep.subr.bf16.mxu0 0
      %366 = vmatpush1.bf16.msra.mxu0 0
      %367 = vmatprep.subr.bf16.mxu0 0
      %368 = vmatpush1.bf16.msra.mxu0 0
      %369 = vmatprep.subr.bf16.mxu0 0
      %370 = vmatpush1.bf16.msra.mxu0 0
      %371 = vmatprep.subr.bf16.mxu0 0
      %372 = vmatpush1.bf16.msra.mxu0 0
      %373 = vmatprep.subr.bf16.mxu0 0
      %374 = vmatpush1.bf16.msra.mxu0 0
      %375 = vmatprep.subr.bf16.mxu0 0
      %376 = vmatpush1.bf16.msra.mxu0 0
      %377 = vmatprep.mubr.bf16.mxu0 0
      %378 = vmatmul.mubr.bf16.gmra.mrb[0].mxu0 %v289
      %v379 = vpop.f32.mrb[0].mxu0
      %v380 = vadd.f32 0.0, %v379
      %v381 = vpop.f32.mrb[0].mxu0
      %v382 = vpop.f32.mrb[0].mxu0
      %v383 = vadd.f32 0.0, %v382
      %v384 = vpop.f32.mrb[0].mxu0
      %385 = vmatprep.mubr.bf16.mxu0 0
      %386 = vmatmul.mubr.bf16.gmra.mrb[0].mxu0 %v290
      %v387 = vpop.f32.mrb[0].mxu0
      %v388 = vadd.f32 0.0, %v387
      %v389 = vpop.f32.mrb[0].mxu0
      %v390 = vpop.f32.mrb[0].mxu0
      %v391 = vadd.f32 0.0, %v390
      %v392 = vpop.f32.mrb[0].mxu0
      %393 = vmatprep.mubr.bf16.mxu0 0
      %394 = vmatmul.mubr.bf16.gmra.mrb[0].mxu0 %v291
      %v395 = vpop.f32.mrb[0].mxu0
      %v396 = vadd.f32 0.0, %v395
      %v397 = vpop.f32.mrb[0].mxu0
      %v398 = vpop.f32.mrb[0].mxu0
      %v399 = vadd.f32 0.0, %v398
      %v400 = vpop.f32.mrb[0].mxu0
      %401 = vmatprep.mubr.bf16.mxu0 0
      %402 = vmatmul.mubr.bf16.gmra.mrb[0].mxu0 %v292
      %v403 = vpop.f32.mrb[0].mxu0
      %v404 = vadd.f32 0.0, %v403
      %v405 = vpop.f32.mrb[0].mxu0
      %v406 = vpop.f32.mrb[0].mxu0
      %v407 = vadd.f32 0.0, %v406
      %v408 = vpop.f32.mrb[0].mxu0
      %409 = vdwg.mxu0
      %v418 = vunpack.c.l.b16 %v223
      %v419 = vunpack.c.l.b16 %v224
      %v420 = vunpack.c.l.b16 %v225
      %v421 = vunpack.c.l.b16 %v226
      %v422 = vunpack.c.l.b16 %v227
      %v423 = vunpack.c.l.b16 %v228
      %v424 = vunpack.c.l.b16 %v229
      %v425 = vunpack.c.l.b16 %v230
      %v426 = vpack.c.b16 %v419, %v418
      %v427 = vpack.c.b16 %v421, %v420
      %v428 = vpack.c.b16 %v423, %v422
      %v429 = vpack.c.b16 %v425, %v424
      %v450 = vunpack.c.l.b16 %v231
      %v451 = vunpack.c.l.b16 %v232
      %v452 = vunpack.c.l.b16 %v233
      %v453 = vunpack.c.l.b16 %v234
      %v454 = vunpack.c.l.b16 %v235
      %v455 = vunpack.c.l.b16 %v236
      %v456 = vunpack.c.l.b16 %v237
      %v457 = vunpack.c.l.b16 %v238
      %v458 = vunpack.c.l.b16 %v239
      %v459 = vunpack.c.l.b16 %v240
      %v460 = vunpack.c.l.b16 %v241
      %v461 = vunpack.c.l.b16 %v242
      %v462 = vunpack.c.l.b16 %v243
      %v463 = vunpack.c.l.b16 %v244
      %v464 = vunpack.c.l.b16 %v245
      %v465 = vunpack.c.l.b16 %v246
      %v466 = vpack.c.b16 %v451, %v450
      %v467 = vpack.c.b16 %v453, %v452
      %v468 = vpack.c.b16 %v455, %v454
      %v469 = vpack.c.b16 %v457, %v456
      %v470 = vpack.c.b16 %v459, %v458
      %v471 = vpack.c.b16 %v461, %v460
      %v472 = vpack.c.b16 %v463, %v462
      %v473 = vpack.c.b16 %v465, %v464
      %482 = vmatprep.subr.bf16.mxu0 0
      %483 = vmatpush1.bf16.msra.mxu0 %v466
      %484 = vmatprep.subr.bf16.mxu0 0
      %485 = vmatpush1.bf16.msra.mxu0 %v467
      %486 = vmatprep.subr.bf16.mxu0 0
      %487 = vmatpush1.bf16.msra.mxu0 %v468
      %488 = vmatprep.subr.bf16.mxu0 0
      %489 = vmatpush1.bf16.msra.mxu0 %v469
      %490 = vmatprep.subr.bf16.mxu0 0
      %491 = vmatpush1.bf16.msra.mxu0 %v470
      %492 = vmatprep.subr.bf16.mxu0 0
      %493 = vmatpush1.bf16.msra.mxu0 %v471
      %494 = vmatprep.subr.bf16.mxu0 0
      %495 = vmatpush1.bf16.msra.mxu0 %v472
      %496 = vmatprep.subr.bf16.mxu0 0
      %497 = vmatpush1.bf16.msra.mxu0 %v473
      %498 = vmatprep.subr.bf16.mxu0 0
      %499 = vmatpush1.bf16.msra.mxu0 0
      %500 = vmatprep.subr.bf16.mxu0 0
      %501 = vmatpush1.bf16.msra.mxu0 0
      %502 = vmatprep.subr.bf16.mxu0 0
      %503 = vmatpush1.bf16.msra.mxu0 0
      %504 = vmatprep.subr.bf16.mxu0 0
      %505 = vmatpush1.bf16.msra.mxu0 0
      %506 = vmatprep.subr.bf16.mxu0 0
      %507 = vmatpush1.bf16.msra.mxu0 0
      %508 = vmatprep.subr.bf16.mxu0 0
      %509 = vmatpush1.bf16.msra.mxu0 0
      %510 = vmatprep.subr.bf16.mxu0 0
      %511 = vmatpush1.bf16.msra.mxu0 0
      %512 = vmatprep.subr.bf16.mxu0 0
      %513 = vmatpush1.bf16.msra.mxu0 0
      %514 = vmatprep.mubr.bf16.mxu0 0
      %515 = vmatmul.mubr.bf16.gmra.mrb[0].mxu0 %v426
      %v516 = vpop.f32.mrb[0].mxu0
      %v517 = vadd.f32 %v380, %v516
      %v518 = vpop.f32.mrb[0].mxu0
      %v519 = vpop.f32.mrb[0].mxu0
      %v520 = vadd.f32 %v383, %v519
      %v521 = vpop.f32.mrb[0].mxu0
      %522 = vmatprep.mubr.bf16.mxu0 0
      %523 = vmatmul.mubr.bf16.gmra.mrb[0].mxu0 %v427
      %v524 = vpop.f32.mrb[0].mxu0
      %v525 = vadd.f32 %v388, %v524
      %v526 = vpop.f32.mrb[0].mxu0
      %v527 = vpop.f32.mrb[0].mxu0
      %v528 = vadd.f32 %v391, %v527
      %v529 = vpop.f32.mrb[0].mxu0
      %530 = vmatprep.mubr.bf16.mxu0 0
      %531 = vmatmul.mubr.bf16.gmra.mrb[0].mxu0 %v428
      %v532 = vpop.f32.mrb[0].mxu0
      %v533 = vadd.f32 %v396, %v532
      %v534 = vpop.f32.mrb[0].mxu0
      %v535 = vpop.f32.mrb[0].mxu0
      %v536 = vadd.f32 %v399, %v535
      %v537 = vpop.f32.mrb[0].mxu0
      %538 = vmatprep.mubr.bf16.mxu0 0
      %539 = vmatmul.mubr.bf16.gmra.mrb[0].mxu0 %v429
      %v540 = vpop.f32.mrb[0].mxu0
      %v541 = vadd.f32 %v404, %v540
      %v542 = vpop.f32.mrb[0].mxu0
      %v543 = vpop.f32.mrb[0].mxu0
      %v544 = vadd.f32 %v407, %v543
      %v545 = vpop.f32.mrb[0].mxu0
      %546 = vdwg.mxu0
      %v547 = vld [vmem:[%s206] sm:$0xf]
      %v548 = vld [vmem:[%s206 + $0x4] sm:$0x1]
      %v549 = vld [vmem:[%s206 + $0x8] sm:$0xf]
      %v550 = vld [vmem:[%s206 + $0xc] sm:$0x1]
      %v551 = vld [vmem:[%s206 + $0x10] sm:$0xf]
      %v552 = vld [vmem:[%s206 + $0x14] sm:$0x1]
      %v553 = vld [vmem:[%s206 + $0x18] sm:$0xf]
      %v554 = vld [vmem:[%s206 + $0x1c] sm:$0x1]
      %v555 = vld [vmem:[%s206 + $0x20] sm:$0xf]
      %v556 = vld [vmem:[%s206 + $0x24] sm:$0x1]
      %v557 = vld [vmem:[%s206 + $0x28] sm:$0xf]
      %v558 = vld [vmem:[%s206 + $0x2c] sm:$0x1]
      %v559 = vld [vmem:[%s206 + $0x30] sm:$0xf]
      %v560 = vld [vmem:[%s206 + $0x34] sm:$0x1]
      %v561 = vld [vmem:[%s206 + $0x38] sm:$0xf]
      %v562 = vld [vmem:[%s206 + $0x3c] sm:$0x1]
      %vm563 = vsmask.f32 3328
      %vm564 = vsmask.f32 7440
      %vm565 = vmor %vm563, %vm564
      %v567 = vshrl.u32 %v547, 16
      %v569 = vrot.slane %v567, 4
      %v570 = vshll.u32 %v547, 16
      %v572 = vrot.slane %v570, 5
      %v573 = vor.u32 %v569, %v572
      %v574 = vrot.slane %v573, 4
      %v576 = vshll.u32 %v548, 16
      %v578 = vrot.slane %v576, 5
      %v579 = vsel %vm565, %v574, %v578
      %v581 = vshrl.u32 %v549, 16
      %v583 = vrot.slane %v581, 4
      %v584 = vshll.u32 %v549, 16
      %v586 = vrot.slane %v584, 5
      %v587 = vor.u32 %v583, %v586
      %v588 = vrot.slane %v587, 4
      %v590 = vshll.u32 %v550, 16
      %v592 = vrot.slane %v590, 5
      %v593 = vsel %vm565, %v588, %v592
      %v595 = vshrl.u32 %v551, 16
      %v597 = vrot.slane %v595, 4
      %v598 = vshll.u32 %v551, 16
      %v600 = vrot.slane %v598, 5
      %v601 = vor.u32 %v597, %v600
      %v602 = vrot.slane %v601, 4
      %v604 = vshll.u32 %v552, 16
      %v606 = vrot.slane %v604, 5
      %v607 = vsel %vm565, %v602, %v606
      %v609 = vshrl.u32 %v553, 16
      %v611 = vrot.slane %v609, 4
      %v612 = vshll.u32 %v553, 16
      %v614 = vrot.slane %v612, 5
      %v615 = vor.u32 %v611, %v614
      %v616 = vrot.slane %v615, 4
      %v618 = vshll.u32 %v554, 16
      %v620 = vrot.slane %v618, 5
      %v621 = vsel %vm565, %v616, %v620
      %v623 = vshrl.u32 %v555, 16
      %v625 = vrot.slane %v623, 4
      %v626 = vshll.u32 %v555, 16
      %v628 = vrot.slane %v626, 5
      %v629 = vor.u32 %v625, %v628
      %v630 = vrot.slane %v629, 4
      %v632 = vshll.u32 %v556, 16
      %v634 = vrot.slane %v632, 5
      %v635 = vsel %vm565, %v630, %v634
      %v637 = vshrl.u32 %v557, 16
      %v639 = vrot.slane %v637, 4
      %v640 = vshll.u32 %v557, 16
      %v642 = vrot.slane %v640, 5
      %v643 = vor.u32 %v639, %v642
      %v644 = vrot.slane %v643, 4
      %v646 = vshll.u32 %v558, 16
      %v648 = vrot.slane %v646, 5
      %v649 = vsel %vm565, %v644, %v648
      %v651 = vshrl.u32 %v559, 16
      %v653 = vrot.slane %v651, 4
      %v654 = vshll.u32 %v559, 16
      %v656 = vrot.slane %v654, 5
      %v657 = vor.u32 %v653, %v656
      %v658 = vrot.slane %v657, 4
      %v660 = vshll.u32 %v560, 16
      %v662 = vrot.slane %v660, 5
      %v663 = vsel %vm565, %v658, %v662
      %v665 = vshrl.u32 %v561, 16
      %v667 = vrot.slane %v665, 4
      %v668 = vshll.u32 %v561, 16
      %v670 = vrot.slane %v668, 5
      %v671 = vor.u32 %v667, %v670
      %v672 = vrot.slane %v671, 4
      %v674 = vshll.u32 %v562, 16
      %v676 = vrot.slane %v674, 5
      %v677 = vsel %vm565, %v672, %v676
      %s678 = scalar_lea.vmem %s210, 128
      %v679 = vld [vmem:[%s678] sm:$0xf]
      %v680 = vld [vmem:[%s678 + $0x4] sm:$0xf]
      %v681 = vld [vmem:[%s678 + $0x8] sm:$0xf]
      %v682 = vld [vmem:[%s678 + $0xc] sm:$0xf]
      %v683 = vld [vmem:[%s678 + $0x10] sm:$0xf]
      %v684 = vld [vmem:[%s678 + $0x14] sm:$0xf]
      %v685 = vld [vmem:[%s678 + $0x18] sm:$0xf]
      %v686 = vld [vmem:[%s678 + $0x1c] sm:$0xf]
      %v687 = vld [vmem:[%s678 + $0x20] sm:$0xf]
      %v688 = vld [vmem:[%s678 + $0x24] sm:$0xf]
      %v689 = vld [vmem:[%s678 + $0x28] sm:$0xf]
      %v690 = vld [vmem:[%s678 + $0x2c] sm:$0xf]
      %v691 = vld [vmem:[%s678 + $0x30] sm:$0xf]
      %v692 = vld [vmem:[%s678 + $0x34] sm:$0xf]
      %v693 = vld [vmem:[%s678 + $0x38] sm:$0xf]
      %v694 = vld [vmem:[%s678 + $0x3c] sm:$0xf]
      %v695 = vunpack.c.l.b16 %v579
      %v696 = vunpack.c.l.b16 %v593
      %v697 = vunpack.c.l.b16 %v607
      %v698 = vunpack.c.l.b16 %v621
      %v699 = vunpack.c.l.b16 %v635
      %v700 = vunpack.c.l.b16 %v649
      %v701 = vunpack.c.l.b16 %v663
      %v702 = vunpack.c.l.b16 %v677
      %v703 = vpack.c.b16 %v696, %v695
      %v704 = vpack.c.b16 %v698, %v697
      %v705 = vpack.c.b16 %v700, %v699
      %v706 = vpack.c.b16 %v702, %v701
      %v727 = vunpack.c.l.b16 %v679
      %v728 = vunpack.c.l.b16 %v680
      %v729 = vunpack.c.l.b16 %v681
      %v730 = vunpack.c.l.b16 %v682
      %v731 = vunpack.c.l.b16 %v683
      %v732 = vunpack.c.l.b16 %v684
      %v733 = vunpack.c.l.b16 %v685
      %v734 = vunpack.c.l.b16 %v686
      %v735 = vunpack.c.l.b16 %v687
      %v736 = vunpack.c.l.b16 %v688
      %v737 = vunpack.c.l.b16 %v689
      %v738 = vunpack.c.l.b16 %v690
      %v739 = vunpack.c.l.b16 %v691
      %v740 = vunpack.c.l.b16 %v692
      %v741 = vunpack.c.l.b16 %v693
      %v742 = vunpack.c.l.b16 %v694
      %v743 = vpack.c.b16 %v728, %v727
      %v744 = vpack.c.b16 %v730, %v729
      %v745 = vpack.c.b16 %v732, %v731
      %v746 = vpack.c.b16 %v734, %v733
      %v747 = vpack.c.b16 %v736, %v735
      %v748 = vpack.c.b16 %v738, %v737
      %v749 = vpack.c.b16 %v740, %v739
      %v750 = vpack.c.b16 %v742, %v741
      %759 = vmatprep.subr.bf16.mxu0 0
      %760 = vmatpush1.bf16.msra.mxu0 %v743
      %761 = vmatprep.subr.bf16.mxu0 0
      %762 = vmatpush1.bf16.msra.mxu0 %v744
      %763 = vmatprep.subr.bf16.mxu0 0
      %764 = vmatpush1.bf16.msra.mxu0 %v745
      %765 = vmatprep.subr.bf16.mxu0 0
      %766 = vmatpush1.bf16.msra.mxu0 %v746
      %767 = vmatprep.subr.bf16.mxu0 0
      %768 = vmatpush1.bf16.msra.mxu0 %v747
      %769 = vmatprep.subr.bf16.mxu0 0
      %770 = vmatpush1.bf16.msra.mxu0 %v748
      %771 = vmatprep.subr.bf16.mxu0 0
      %772 = vmatpush1.bf16.msra.mxu0 %v749
      %773 = vmatprep.subr.bf16.mxu0 0
      %774 = vmatpush1.bf16.msra.mxu0 %v750
      %775 = vmatprep.subr.bf16.mxu0 0
      %776 = vmatpush1.bf16.msra.mxu0 0
      %777 = vmatprep.subr.bf16.mxu0 0
      %778 = vmatpush1.bf16.msra.mxu0 0
      %779 = vmatprep.subr.bf16.mxu0 0
      %780 = vmatpush1.bf16.msra.mxu0 0
      %781 = vmatprep.subr.bf16.mxu0 0
      %782 = vmatpush1.bf16.msra.mxu0 0
      %783 = vmatprep.subr.bf16.mxu0 0
      %784 = vmatpush1.bf16.msra.mxu0 0
      %785 = vmatprep.subr.bf16.mxu0 0
      %786 = vmatpush1.bf16.msra.mxu0 0
      %787 = vmatprep.subr.bf16.mxu0 0
      %788 = vmatpush1.bf16.msra.mxu0 0
      %789 = vmatprep.subr.bf16.mxu0 0
      %790 = vmatpush1.bf16.msra.mxu0 0
      %791 = vmatprep.mubr.bf16.mxu0 0
      %792 = vmatmul.mubr.bf16.gmra.mrb[0].mxu0 %v703
      %v793 = vpop.f32.mrb[0].mxu0
      %v794 = vadd.f32 0.0, %v793
      %v795 = vpop.f32.mrb[0].mxu0
      %v796 = vpop.f32.mrb[0].mxu0
      %v797 = vadd.f32 0.0, %v796
      %v798 = vpop.f32.mrb[0].mxu0
      %799 = vmatprep.mubr.bf16.mxu0 0
      %800 = vmatmul.mubr.bf16.gmra.mrb[0].mxu0 %v704
      %v801 = vpop.f32.mrb[0].mxu0
      %v802 = vadd.f32 0.0, %v801
      %v803 = vpop.f32.mrb[0].mxu0
      %v804 = vpop.f32.mrb[0].mxu0
      %v805 = vadd.f32 0.0, %v804
      %v806 = vpop.f32.mrb[0].mxu0
      %807 = vmatprep.mubr.bf16.mxu0 0
      %808 = vmatmul.mubr.bf16.gmra.mrb[0].mxu0 %v705
      %v809 = vpop.f32.mrb[0].mxu0
      %v810 = vadd.f32 0.0, %v809
      %v811 = vpop.f32.mrb[0].mxu0
      %v812 = vpop.f32.mrb[0].mxu0
      %v813 = vadd.f32 0.0, %v812
      %v814 = vpop.f32.mrb[0].mxu0
      %815 = vmatprep.mubr.bf16.mxu0 0
      %816 = vmatmul.mubr.bf16.gmra.mrb[0].mxu0 %v706
      %v817 = vpop.f32.mrb[0].mxu0
      %v818 = vadd.f32 0.0, %v817
      %v819 = vpop.f32.mrb[0].mxu0
      %v820 = vpop.f32.mrb[0].mxu0
      %v821 = vadd.f32 0.0, %v820
      %v822 = vpop.f32.mrb[0].mxu0
      %823 = vdwg.mxu0
      %v824 = vadd.f32 %v517, %v794
      %v825 = vadd.f32 %v520, %v797
      %v826 = vadd.f32 %v525, %v802
      %v827 = vadd.f32 %v528, %v805
      %v828 = vadd.f32 %v533, %v810
      %v829 = vadd.f32 %v536, %v813
      %v830 = vadd.f32 %v541, %v818
      %v831 = vadd.f32 %v544, %v821
      %s832 = scalar_lea.vmem %s206, 144
      %v833 = vld [vmem:[%s832] sm:$0xf]
      %v834 = vld [vmem:[%s832 + $0x8] sm:$0xf]
      %v835 = vld [vmem:[%s832 + $0x10] sm:$0xf]
      %v836 = vld [vmem:[%s832 + $0x18] sm:$0xf]
      %v837 = vld [vmem:[%s832 + $0x20] sm:$0xf]
      %v838 = vld [vmem:[%s832 + $0x28] sm:$0xf]
      %v839 = vld [vmem:[%s832 + $0x30] sm:$0xf]
      %v840 = vld [vmem:[%s832 + $0x38] sm:$0xf]
      %s841 = scalar_lea.vmem %s210, 192
      %v842 = vld [vmem:[%s841] sm:$0xf]
      %v843 = vld [vmem:[%s841 + $0x4] sm:$0xf]
      %v844 = vld [vmem:[%s841 + $0x8] sm:$0xf]
      %v845 = vld [vmem:[%s841 + $0xc] sm:$0xf]
      %v846 = vld [vmem:[%s841 + $0x10] sm:$0xf]
      %v847 = vld [vmem:[%s841 + $0x14] sm:$0xf]
      %v848 = vld [vmem:[%s841 + $0x18] sm:$0xf]
      %v849 = vld [vmem:[%s841 + $0x1c] sm:$0xf]
      %v850 = vld [vmem:[%s841 + $0x20] sm:$0xf]
      %v851 = vld [vmem:[%s841 + $0x24] sm:$0xf]
      %v852 = vld [vmem:[%s841 + $0x28] sm:$0xf]
      %v853 = vld [vmem:[%s841 + $0x2c] sm:$0xf]
      %v854 = vld [vmem:[%s841 + $0x30] sm:$0xf]
      %v855 = vld [vmem:[%s841 + $0x34] sm:$0xf]
      %v856 = vld [vmem:[%s841 + $0x38] sm:$0xf]
      %v857 = vld [vmem:[%s841 + $0x3c] sm:$0xf]
      %v866 = vunpack.c.l.b16 %v833
      %v867 = vunpack.c.l.b16 %v834
      %v868 = vunpack.c.l.b16 %v835
      %v869 = vunpack.c.l.b16 %v836
      %v870 = vunpack.c.l.b16 %v837
      %v871 = vunpack.c.l.b16 %v838
      %v872 = vunpack.c.l.b16 %v839
      %v873 = vunpack.c.l.b16 %v840
      %v874 = vpack.c.b16 %v867, %v866
      %v875 = vpack.c.b16 %v869, %v868
      %v876 = vpack.c.b16 %v871, %v870
      %v877 = vpack.c.b16 %v873, %v872
      %v898 = vunpack.c.l.b16 %v842
      %v899 = vunpack.c.l.b16 %v843
      %v900 = vunpack.c.l.b16 %v844
      %v901 = vunpack.c.l.b16 %v845
      %v902 = vunpack.c.l.b16 %v846
      %v903 = vunpack.c.l.b16 %v847
      %v904 = vunpack.c.l.b16 %v848
      %v905 = vunpack.c.l.b16 %v849
      %v906 = vunpack.c.l.b16 %v850
      %v907 = vunpack.c.l.b16 %v851
      %v908 = vunpack.c.l.b16 %v852
      %v909 = vunpack.c.l.b16 %v853
      %v910 = vunpack.c.l.b16 %v854
      %v911 = vunpack.c.l.b16 %v855
      %v912 = vunpack.c.l.b16 %v856
      %v913 = vunpack.c.l.b16 %v857
      %v914 = vpack.c.b16 %v899, %v898
      %v915 = vpack.c.b16 %v901, %v900
      %v916 = vpack.c.b16 %v903, %v902
      %v917 = vpack.c.b16 %v905, %v904
      %v918 = vpack.c.b16 %v907, %v906
      %v919 = vpack.c.b16 %v909, %v908
      %v920 = vpack.c.b16 %v911, %v910
      %v921 = vpack.c.b16 %v913, %v912
      %930 = vmatprep.subr.bf16.mxu0 0
      %931 = vmatpush1.bf16.msra.mxu0 %v914
      %932 = vmatprep.subr.bf16.mxu0 0
      %933 = vmatpush1.bf16.msra.mxu0 %v915
      %934 = vmatprep.subr.bf16.mxu0 0
      %935 = vmatpush1.bf16.msra.mxu0 %v916
      %936 = vmatprep.subr.bf16.mxu0 0
      %937 = vmatpush1.bf16.msra.mxu0 %v917
      %938 = vmatprep.subr.bf16.mxu0 0
      %939 = vmatpush1.bf16.msra.mxu0 %v918
      %940 = vmatprep.subr.bf16.mxu0 0
      %941 = vmatpush1.bf16.msra.mxu0 %v919
      %942 = vmatprep.subr.bf16.mxu0 0
      %943 = vmatpush1.bf16.msra.mxu0 %v920
      %944 = vmatprep.subr.bf16.mxu0 0
      %945 = vmatpush1.bf16.msra.mxu0 %v921
      %946 = vmatprep.subr.bf16.mxu0 0
      %947 = vmatpush1.bf16.msra.mxu0 0
      %948 = vmatprep.subr.bf16.mxu0 0
      %949 = vmatpush1.bf16.msra.mxu0 0
      %950 = vmatprep.subr.bf16.mxu0 0
      %951 = vmatpush1.bf16.msra.mxu0 0
      %952 = vmatprep.subr.bf16.mxu0 0
      %953 = vmatpush1.bf16.msra.mxu0 0
      %954 = vmatprep.subr.bf16.mxu0 0
      %955 = vmatpush1.bf16.msra.mxu0 0
      %956 = vmatprep.subr.bf16.mxu0 0
      %957 = vmatpush1.bf16.msra.mxu0 0
      %958 = vmatprep.subr.bf16.mxu0 0
      %959 = vmatpush1.bf16.msra.mxu0 0
      %960 = vmatprep.subr.bf16.mxu0 0
      %961 = vmatpush1.bf16.msra.mxu0 0
      %962 = vmatprep.mubr.bf16.mxu0 0
      %963 = vmatmul.mubr.bf16.gmra.mrb[0].mxu0 %v874
      %v964 = vpop.f32.mrb[0].mxu0
      %v965 = vadd.f32 0.0, %v964
      %v966 = vpop.f32.mrb[0].mxu0
      %v967 = vpop.f32.mrb[0].mxu0
      %v968 = vadd.f32 0.0, %v967
      %v969 = vpop.f32.mrb[0].mxu0
      %970 = vmatprep.mubr.bf16.mxu0 0
      %971 = vmatmul.mubr.bf16.gmra.mrb[0].mxu0 %v875
      %v972 = vpop.f32.mrb[0].mxu0
      %v973 = vadd.f32 0.0, %v972
      %v974 = vpop.f32.mrb[0].mxu0
      %v975 = vpop.f32.mrb[0].mxu0
      %v976 = vadd.f32 0.0, %v975
      %v977 = vpop.f32.mrb[0].mxu0
      %978 = vmatprep.mubr.bf16.mxu0 0
      %979 = vmatmul.mubr.bf16.gmra.mrb[0].mxu0 %v876
      %v980 = vpop.f32.mrb[0].mxu0
      %v981 = vadd.f32 0.0, %v980
      %v982 = vpop.f32.mrb[0].mxu0
      %v983 = vpop.f32.mrb[0].mxu0
      %v984 = vadd.f32 0.0, %v983
      %v985 = vpop.f32.mrb[0].mxu0
      %986 = vmatprep.mubr.bf16.mxu0 0
      %987 = vmatmul.mubr.bf16.gmra.mrb[0].mxu0 %v877
      %v988 = vpop.f32.mrb[0].mxu0
      %v989 = vadd.f32 0.0, %v988
      %v990 = vpop.f32.mrb[0].mxu0
      %v991 = vpop.f32.mrb[0].mxu0
      %v992 = vadd.f32 0.0, %v991
      %v993 = vpop.f32.mrb[0].mxu0
      %994 = vdwg.mxu0
      %v995 = vadd.f32 %v824, %v965
      %v996 = vadd.f32 %v825, %v968
      %v997 = vadd.f32 %v826, %v973
      %v998 = vadd.f32 %v827, %v976
      %v999 = vadd.f32 %v828, %v981
      %v1000 = vadd.f32 %v829, %v984
      %v1001 = vadd.f32 %v830, %v989
      %v1002 = vadd.f32 %v831, %v992
      %s1003 = scalar_lea.vmem %s206, 216
      %v1004 = vld [vmem:[%s1003] sm:$0xf]
      %v1005 = vld [vmem:[%s1003 + $0x8] sm:$0xf]
      %v1006 = vld [vmem:[%s1003 + $0x10] sm:$0xf]
      %v1007 = vld [vmem:[%s1003 + $0x18] sm:$0xf]
      %v1008 = vld [vmem:[%s1003 + $0x20] sm:$0xf]
      %v1009 = vld [vmem:[%s1003 + $0x28] sm:$0xf]
      %v1010 = vld [vmem:[%s1003 + $0x30] sm:$0xf]
      %v1011 = vld [vmem:[%s1003 + $0x38] sm:$0xf]
      %s1012 = scalar_lea.vmem %s210, 256
      %v1013 = vld [vmem:[%s1012] sm:$0xf]
      %v1014 = vld [vmem:[%s1012 + $0x4] sm:$0xf]
      %v1015 = vld [vmem:[%s1012 + $0x8] sm:$0xf]
      %v1016 = vld [vmem:[%s1012 + $0xc] sm:$0xf]
      %v1017 = vld [vmem:[%s1012 + $0x10] sm:$0xf]
      %v1018 = vld [vmem:[%s1012 + $0x14] sm:$0xf]
      %v1019 = vld [vmem:[%s1012 + $0x18] sm:$0xf]
      %v1020 = vld [vmem:[%s1012 + $0x1c] sm:$0xf]
      %v1021 = vld [vmem:[%s1012 + $0x20] sm:$0xf]
      %v1022 = vld [vmem:[%s1012 + $0x24] sm:$0xf]
      %v1023 = vld [vmem:[%s1012 + $0x28] sm:$0xf]
      %v1024 = vld [vmem:[%s1012 + $0x2c] sm:$0xf]
      %v1025 = vld [vmem:[%s1012 + $0x30] sm:$0xf]
      %v1026 = vld [vmem:[%s1012 + $0x34] sm:$0xf]
      %v1027 = vld [vmem:[%s1012 + $0x38] sm:$0xf]
      %v1028 = vld [vmem:[%s1012 + $0x3c] sm:$0xf]
      %v1037 = vunpack.c.l.b16 %v1004
      %v1038 = vunpack.c.l.b16 %v1005
      %v1039 = vunpack.c.l.b16 %v1006
      %v1040 = vunpack.c.l.b16 %v1007
      %v1041 = vunpack.c.l.b16 %v1008
      %v1042 = vunpack.c.l.b16 %v1009
      %v1043 = vunpack.c.l.b16 %v1010
      %v1044 = vunpack.c.l.b16 %v1011
      %v1045 = vpack.c.b16 %v1038, %v1037
      %v1046 = vpack.c.b16 %v1040, %v1039
      %v1047 = vpack.c.b16 %v1042, %v1041
      %v1048 = vpack.c.b16 %v1044, %v1043
      %v1069 = vunpack.c.l.b16 %v1013
      %v1070 = vunpack.c.l.b16 %v1014
      %v1071 = vunpack.c.l.b16 %v1015
      %v1072 = vunpack.c.l.b16 %v1016
      %v1073 = vunpack.c.l.b16 %v1017
      %v1074 = vunpack.c.l.b16 %v1018
      %v1075 = vunpack.c.l.b16 %v1019
      %v1076 = vunpack.c.l.b16 %v1020
      %v1077 = vunpack.c.l.b16 %v1021
      %v1078 = vunpack.c.l.b16 %v1022
      %v1079 = vunpack.c.l.b16 %v1023
      %v1080 = vunpack.c.l.b16 %v1024
      %v1081 = vunpack.c.l.b16 %v1025
      %v1082 = vunpack.c.l.b16 %v1026
      %v1083 = vunpack.c.l.b16 %v1027
      %v1084 = vunpack.c.l.b16 %v1028
      %v1085 = vpack.c.b16 %v1070, %v1069
      %v1086 = vpack.c.b16 %v1072, %v1071
      %v1087 = vpack.c.b16 %v1074, %v1073
      %v1088 = vpack.c.b16 %v1076, %v1075
      %v1089 = vpack.c.b16 %v1078, %v1077
      %v1090 = vpack.c.b16 %v1080, %v1079
      %v1091 = vpack.c.b16 %v1082, %v1081
      %v1092 = vpack.c.b16 %v1084, %v1083
      %1101 = vmatprep.subr.bf16.mxu0 0
      %1102 = vmatpush1.bf16.msra.mxu0 %v1085
      %1103 = vmatprep.subr.bf16.mxu0 0
      %1104 = vmatpush1.bf16.msra.mxu0 %v1086
      %1105 = vmatprep.subr.bf16.mxu0 0
      %1106 = vmatpush1.bf16.msra.mxu0 %v1087
      %1107 = vmatprep.subr.bf16.mxu0 0
      %1108 = vmatpush1.bf16.msra.mxu0 %v1088
      %1109 = vmatprep.subr.bf16.mxu0 0
      %1110 = vmatpush1.bf16.msra.mxu0 %v1089
      %1111 = vmatprep.subr.bf16.mxu0 0
      %1112 = vmatpush1.bf16.msra.mxu0 %v1090
      %1113 = vmatprep.subr.bf16.mxu0 0
      %1114 = vmatpush1.bf16.msra.mxu0 %v1091
      %1115 = vmatprep.subr.bf16.mxu0 0
      %1116 = vmatpush1.bf16.msra.mxu0 %v1092
      %1117 = vmatprep.subr.bf16.mxu0 0
      %1118 = vmatpush1.bf16.msra.mxu0 0
      %1119 = vmatprep.subr.bf16.mxu0 0
      %1120 = vmatpush1.bf16.msra.mxu0 0
      %1121 = vmatprep.subr.bf16.mxu0 0
      %1122 = vmatpush1.bf16.msra.mxu0 0
      %1123 = vmatprep.subr.bf16.mxu0 0
      %1124 = vmatpush1.bf16.msra.mxu0 0
      %1125 = vmatprep.subr.bf16.mxu0 0
      %1126 = vmatpush1.bf16.msra.mxu0 0
      %1127 = vmatprep.subr.bf16.mxu0 0
      %1128 = vmatpush1.bf16.msra.mxu0 0
      %1129 = vmatprep.subr.bf16.mxu0 0
      %1130 = vmatpush1.bf16.msra.mxu0 0
      %1131 = vmatprep.subr.bf16.mxu0 0
      %1132 = vmatpush1.bf16.msra.mxu0 0
      %1133 = vmatprep.mubr.bf16.mxu0 0
      %1134 = vmatmul.mubr.bf16.gmra.mrb[0].mxu0 %v1045
      %v1135 = vpop.f32.mrb[0].mxu0
      %v1136 = vadd.f32 0.0, %v1135
      %v1137 = vpop.f32.mrb[0].mxu0
      %v1138 = vpop.f32.mrb[0].mxu0
      %v1139 = vadd.f32 0.0, %v1138
      %v1140 = vpop.f32.mrb[0].mxu0
      %1141 = vmatprep.mubr.bf16.mxu0 0
      %1142 = vmatmul.mubr.bf16.gmra.mrb[0].mxu0 %v1046
      %v1143 = vpop.f32.mrb[0].mxu0
      %v1144 = vadd.f32 0.0, %v1143
      %v1145 = vpop.f32.mrb[0].mxu0
      %v1146 = vpop.f32.mrb[0].mxu0
      %v1147 = vadd.f32 0.0, %v1146
      %v1148 = vpop.f32.mrb[0].mxu0
      %1149 = vmatprep.mubr.bf16.mxu0 0
      %1150 = vmatmul.mubr.bf16.gmra.mrb[0].mxu0 %v1047
      %v1151 = vpop.f32.mrb[0].mxu0
      %v1152 = vadd.f32 0.0, %v1151
      %v1153 = vpop.f32.mrb[0].mxu0
      %v1154 = vpop.f32.mrb[0].mxu0
      %v1155 = vadd.f32 0.0, %v1154
      %v1156 = vpop.f32.mrb[0].mxu0
      %1157 = vmatprep.mubr.bf16.mxu0 0
      %1158 = vmatmul.mubr.bf16.gmra.mrb[0].mxu0 %v1048
      %v1159 = vpop.f32.mrb[0].mxu0
      %v1160 = vadd.f32 0.0, %v1159
      %v1161 = vpop.f32.mrb[0].mxu0
      %v1162 = vpop.f32.mrb[0].mxu0
      %v1163 = vadd.f32 0.0, %v1162
      %v1164 = vpop.f32.mrb[0].mxu0
      %1165 = vdwg.mxu0
      %v1166 = vadd.f32 %v995, %v1136
      %v1167 = vadd.f32 %v996, %v1139
      %v1168 = vadd.f32 %v997, %v1144
      %v1169 = vadd.f32 %v998, %v1147
      %v1170 = vadd.f32 %v999, %v1152
      %v1171 = vadd.f32 %v1000, %v1155
      %v1172 = vadd.f32 %v1001, %v1160
      %v1173 = vadd.f32 %v1002, %v1163
      %v1174 = vld [vmem:[%s832] sm:$0xf]
      %v1175 = vld [vmem:[%s832 + $0x4] sm:$0x1]
      %v1176 = vld [vmem:[%s832 + $0x8] sm:$0xf]
      %v1177 = vld [vmem:[%s832 + $0xc] sm:$0x1]
      %v1178 = vld [vmem:[%s832 + $0x10] sm:$0xf]
      %v1179 = vld [vmem:[%s832 + $0x14] sm:$0x1]
      %v1180 = vld [vmem:[%s832 + $0x18] sm:$0xf]
      %v1181 = vld [vmem:[%s832 + $0x1c] sm:$0x1]
      %v1182 = vld [vmem:[%s832 + $0x20] sm:$0xf]
      %v1183 = vld [vmem:[%s832 + $0x24] sm:$0x1]
      %v1184 = vld [vmem:[%s832 + $0x28] sm:$0xf]
      %v1185 = vld [vmem:[%s832 + $0x2c] sm:$0x1]
      %v1186 = vld [vmem:[%s832 + $0x30] sm:$0xf]
      %v1187 = vld [vmem:[%s832 + $0x34] sm:$0x1]
      %v1188 = vld [vmem:[%s832 + $0x38] sm:$0xf]
      %v1189 = vld [vmem:[%s832 + $0x3c] sm:$0x1]
      %v1191 = vshrl.u32 %v1174, 16
      %v1193 = vrot.slane %v1191, 4
      %v1194 = vshll.u32 %v1174, 16
      %v1196 = vrot.slane %v1194, 5
      %v1197 = vor.u32 %v1193, %v1196
      %v1198 = vrot.slane %v1197, 4
      %v1200 = vshll.u32 %v1175, 16
      %v1202 = vrot.slane %v1200, 5
      %v1203 = vsel %vm565, %v1198, %v1202
      %v1205 = vshrl.u32 %v1176, 16
      %v1207 = vrot.slane %v1205, 4
      %v1208 = vshll.u32 %v1176, 16
      %v1210 = vrot.slane %v1208, 5
      %v1211 = vor.u32 %v1207, %v1210
      %v1212 = vrot.slane %v1211, 4
      %v1214 = vshll.u32 %v1177, 16
      %v1216 = vrot.slane %v1214, 5
      %v1217 = vsel %vm565, %v1212, %v1216
      %v1219 = vshrl.u32 %v1178, 16
      %v1221 = vrot.slane %v1219, 4
      %v1222 = vshll.u32 %v1178, 16
      %v1224 = vrot.slane %v1222, 5
      %v1225 = vor.u32 %v1221, %v1224
      %v1226 = vrot.slane %v1225, 4
      %v1228 = vshll.u32 %v1179, 16
      %v1230 = vrot.slane %v1228, 5
      %v1231 = vsel %vm565, %v1226, %v1230
      %v1233 = vshrl.u32 %v1180, 16
      %v1235 = vrot.slane %v1233, 4
      %v1236 = vshll.u32 %v1180, 16
      %v1238 = vrot.slane %v1236, 5
      %v1239 = vor.u32 %v1235, %v1238
      %v1240 = vrot.slane %v1239, 4
      %v1242 = vshll.u32 %v1181, 16
      %v1244 = vrot.slane %v1242, 5
      %v1245 = vsel %vm565, %v1240, %v1244
      %v1247 = vshrl.u32 %v1182, 16
      %v1249 = vrot.slane %v1247, 4
      %v1250 = vshll.u32 %v1182, 16
      %v1252 = vrot.slane %v1250, 5
      %v1253 = vor.u32 %v1249, %v1252
      %v1254 = vrot.slane %v1253, 4
      %v1256 = vshll.u32 %v1183, 16
      %v1258 = vrot.slane %v1256, 5
      %v1259 = vsel %vm565, %v1254, %v1258
      %v1261 = vshrl.u32 %v1184, 16
      %v1263 = vrot.slane %v1261, 4
      %v1264 = vshll.u32 %v1184, 16
      %v1266 = vrot.slane %v1264, 5
      %v1267 = vor.u32 %v1263, %v1266
      %v1268 = vrot.slane %v1267, 4
      %v1270 = vshll.u32 %v1185, 16
      %v1272 = vrot.slane %v1270, 5
      %v1273 = vsel %vm565, %v1268, %v1272
      %v1275 = vshrl.u32 %v1186, 16
      %v1277 = vrot.slane %v1275, 4
      %v1278 = vshll.u32 %v1186, 16
      %v1280 = vrot.slane %v1278, 5
      %v1281 = vor.u32 %v1277, %v1280
      %v1282 = vrot.slane %v1281, 4
      %v1284 = vshll.u32 %v1187, 16
      %v1286 = vrot.slane %v1284, 5
      %v1287 = vsel %vm565, %v1282, %v1286
      %v1289 = vshrl.u32 %v1188, 16
      %v1291 = vrot.slane %v1289, 4
      %v1292 = vshll.u32 %v1188, 16
      %v1294 = vrot.slane %v1292, 5
      %v1295 = vor.u32 %v1291, %v1294
      %v1296 = vrot.slane %v1295, 4
      %v1298 = vshll.u32 %v1189, 16
      %v1300 = vrot.slane %v1298, 5
      %v1301 = vsel %vm565, %v1296, %v1300
      %s1302 = scalar_lea.vmem %s210, 320
      %v1303 = vld [vmem:[%s1302] sm:$0xf]
      %v1304 = vld [vmem:[%s1302 + $0x4] sm:$0xf]
      %v1305 = vld [vmem:[%s1302 + $0x8] sm:$0xf]
      %v1306 = vld [vmem:[%s1302 + $0xc] sm:$0xf]
      %v1307 = vld [vmem:[%s1302 + $0x10] sm:$0xf]
      %v1308 = vld [vmem:[%s1302 + $0x14] sm:$0xf]
      %v1309 = vld [vmem:[%s1302 + $0x18] sm:$0xf]
      %v1310 = vld [vmem:[%s1302 + $0x1c] sm:$0xf]
      %v1311 = vld [vmem:[%s1302 + $0x20] sm:$0xf]
      %v1312 = vld [vmem:[%s1302 + $0x24] sm:$0xf]
      %v1313 = vld [vmem:[%s1302 + $0x28] sm:$0xf]
      %v1314 = vld [vmem:[%s1302 + $0x2c] sm:$0xf]
      %v1315 = vld [vmem:[%s1302 + $0x30] sm:$0xf]
      %v1316 = vld [vmem:[%s1302 + $0x34] sm:$0xf]
      %v1317 = vld [vmem:[%s1302 + $0x38] sm:$0xf]
      %v1318 = vld [vmem:[%s1302 + $0x3c] sm:$0xf]
      %v1319 = vunpack.c.l.b16 %v1203
      %v1320 = vunpack.c.l.b16 %v1217
      %v1321 = vunpack.c.l.b16 %v1231
      %v1322 = vunpack.c.l.b16 %v1245
      %v1323 = vunpack.c.l.b16 %v1259
      %v1324 = vunpack.c.l.b16 %v1273
      %v1325 = vunpack.c.l.b16 %v1287
      %v1326 = vunpack.c.l.b16 %v1301
      %v1327 = vpack.c.b16 %v1320, %v1319
      %v1328 = vpack.c.b16 %v1322, %v1321
      %v1329 = vpack.c.b16 %v1324, %v1323
      %v1330 = vpack.c.b16 %v1326, %v1325
      %v1351 = vunpack.c.l.b16 %v1303
      %v1352 = vunpack.c.l.b16 %v1304
      %v1353 = vunpack.c.l.b16 %v1305
      %v1354 = vunpack.c.l.b16 %v1306
      %v1355 = vunpack.c.l.b16 %v1307
      %v1356 = vunpack.c.l.b16 %v1308
      %v1357 = vunpack.c.l.b16 %v1309
      %v1358 = vunpack.c.l.b16 %v1310
      %v1359 = vunpack.c.l.b16 %v1311
      %v1360 = vunpack.c.l.b16 %v1312
      %v1361 = vunpack.c.l.b16 %v1313
      %v1362 = vunpack.c.l.b16 %v1314
      %v1363 = vunpack.c.l.b16 %v1315
      %v1364 = vunpack.c.l.b16 %v1316
      %v1365 = vunpack.c.l.b16 %v1317
      %v1366 = vunpack.c.l.b16 %v1318
      %v1367 = vpack.c.b16 %v1352, %v1351
      %v1368 = vpack.c.b16 %v1354, %v1353
      %v1369 = vpack.c.b16 %v1356, %v1355
      %v1370 = vpack.c.b16 %v1358, %v1357
      %v1371 = vpack.c.b16 %v1360, %v1359
      %v1372 = vpack.c.b16 %v1362, %v1361
      %v1373 = vpack.c.b16 %v1364, %v1363
      %v1374 = vpack.c.b16 %v1366, %v1365
      %1383 = vmatprep.subr.bf16.mxu0 0
      %1384 = vmatpush1.bf16.msra.mxu0 %v1367
      %1385 = vmatprep.subr.bf16.mxu0 0
      %1386 = vmatpush1.bf16.msra.mxu0 %v1368
      %1387 = vmatprep.subr.bf16.mxu0 0
      %1388 = vmatpush1.bf16.msra.mxu0 %v1369
      %1389 = vmatprep.subr.bf16.mxu0 0
      %1390 = vmatpush1.bf16.msra.mxu0 %v1370
      %1391 = vmatprep.subr.bf16.mxu0 0
      %1392 = vmatpush1.bf16.msra.mxu0 %v1371
      %1393 = vmatprep.subr.bf16.mxu0 0
      %1394 = vmatpush1.bf16.msra.mxu0 %v1372
      %1395 = vmatprep.subr.bf16.mxu0 0
      %1396 = vmatpush1.bf16.msra.mxu0 %v1373
      %1397 = vmatprep.subr.bf16.mxu0 0
      %1398 = vmatpush1.bf16.msra.mxu0 %v1374
      %1399 = vmatprep.subr.bf16.mxu0 0
      %1400 = vmatpush1.bf16.msra.mxu0 0
      %1401 = vmatprep.subr.bf16.mxu0 0
      %1402 = vmatpush1.bf16.msra.mxu0 0
      %1403 = vmatprep.subr.bf16.mxu0 0
      %1404 = vmatpush1.bf16.msra.mxu0 0
      %1405 = vmatprep.subr.bf16.mxu0 0
      %1406 = vmatpush1.bf16.msra.mxu0 0
      %1407 = vmatprep.subr.bf16.mxu0 0
      %1408 = vmatpush1.bf16.msra.mxu0 0
      %1409 = vmatprep.subr.bf16.mxu0 0
      %1410 = vmatpush1.bf16.msra.mxu0 0
      %1411 = vmatprep.subr.bf16.mxu0 0
      %1412 = vmatpush1.bf16.msra.mxu0 0
      %1413 = vmatprep.subr.bf16.mxu0 0
      %1414 = vmatpush1.bf16.msra.mxu0 0
      %1415 = vmatprep.mubr.bf16.mxu0 0
      %1416 = vmatmul.mubr.bf16.gmra.mrb[0].mxu0 %v1327
      %v1417 = vpop.f32.mrb[0].mxu0
      %v1418 = vadd.f32 0.0, %v1417
      %v1419 = vpop.f32.mrb[0].mxu0
      %v1420 = vpop.f32.mrb[0].mxu0
      %v1421 = vadd.f32 0.0, %v1420
      %v1422 = vpop.f32.mrb[0].mxu0
      %1423 = vmatprep.mubr.bf16.mxu0 0
      %1424 = vmatmul.mubr.bf16.gmra.mrb[0].mxu0 %v1328
      %v1425 = vpop.f32.mrb[0].mxu0
      %v1426 = vadd.f32 0.0, %v1425
      %v1427 = vpop.f32.mrb[0].mxu0
      %v1428 = vpop.f32.mrb[0].mxu0
      %v1429 = vadd.f32 0.0, %v1428
      %v1430 = vpop.f32.mrb[0].mxu0
      %1431 = vmatprep.mubr.bf16.mxu0 0
      %1432 = vmatmul.mubr.bf16.gmra.mrb[0].mxu0 %v1329
      %v1433 = vpop.f32.mrb[0].mxu0
      %v1434 = vadd.f32 0.0, %v1433
      %v1435 = vpop.f32.mrb[0].mxu0
      %v1436 = vpop.f32.mrb[0].mxu0
      %v1437 = vadd.f32 0.0, %v1436
      %v1438 = vpop.f32.mrb[0].mxu0
      %1439 = vmatprep.mubr.bf16.mxu0 0
      %1440 = vmatmul.mubr.bf16.gmra.mrb[0].mxu0 %v1330
      %v1441 = vpop.f32.mrb[0].mxu0
      %v1442 = vadd.f32 0.0, %v1441
      %v1443 = vpop.f32.mrb[0].mxu0
      %v1444 = vpop.f32.mrb[0].mxu0
      %v1445 = vadd.f32 0.0, %v1444
      %v1446 = vpop.f32.mrb[0].mxu0
      %1447 = vdwg.mxu0
      %v1448 = vadd.f32 %v1166, %v1418
      %v1449 = vadd.f32 %v1167, %v1421
      %v1450 = vadd.f32 %v1168, %v1426
      %v1451 = vadd.f32 %v1169, %v1429
      %v1452 = vadd.f32 %v1170, %v1434
      %v1453 = vadd.f32 %v1171, %v1437
      %v1454 = vadd.f32 %v1172, %v1442
      %v1455 = vadd.f32 %v1173, %v1445
      %s1456 = scalar_lea.vmem %s206, 8
      %v1457 = vld [vmem:[%s1456] sm:$0xf]
      %v1458 = vld [vmem:[%s1456 + $0x8] sm:$0xf]
      %v1459 = vld [vmem:[%s1456 + $0x10] sm:$0xf]
      %v1460 = vld [vmem:[%s1456 + $0x18] sm:$0xf]
      %v1461 = vld [vmem:[%s1456 + $0x20] sm:$0xf]
      %v1462 = vld [vmem:[%s1456 + $0x28] sm:$0xf]
      %v1463 = vld [vmem:[%s1456 + $0x30] sm:$0xf]
      %v1464 = vld [vmem:[%s1456 + $0x38] sm:$0xf]
      %s1465 = scalar_lea.vmem %s210, 384
      %v1466 = vld [vmem:[%s1465] sm:$0xf]
      %v1467 = vld [vmem:[%s1465 + $0x4] sm:$0xf]
      %v1468 = vld [vmem:[%s1465 + $0x8] sm:$0xf]
      %v1469 = vld [vmem:[%s1465 + $0xc] sm:$0xf]
      %v1470 = vld [vmem:[%s1465 + $0x10] sm:$0xf]
      %v1471 = vld [vmem:[%s1465 + $0x14] sm:$0xf]
      %v1472 = vld [vmem:[%s1465 + $0x18] sm:$0xf]
      %v1473 = vld [vmem:[%s1465 + $0x1c] sm:$0xf]
      %v1474 = vld [vmem:[%s1465 + $0x20] sm:$0xf]
      %v1475 = vld [vmem:[%s1465 + $0x24] sm:$0xf]
      %v1476 = vld [vmem:[%s1465 + $0x28] sm:$0xf]
      %v1477 = vld [vmem:[%s1465 + $0x2c] sm:$0xf]
      %v1478 = vld [vmem:[%s1465 + $0x30] sm:$0xf]
      %v1479 = vld [vmem:[%s1465 + $0x34] sm:$0xf]
      %v1480 = vld [vmem:[%s1465 + $0x38] sm:$0xf]
      %v1481 = vld [vmem:[%s1465 + $0x3c] sm:$0xf]
      %v1490 = vunpack.c.l.b16 %v1457
      %v1491 = vunpack.c.l.b16 %v1458
      %v1492 = vunpack.c.l.b16 %v1459
      %v1493 = vunpack.c.l.b16 %v1460
      %v1494 = vunpack.c.l.b16 %v1461
      %v1495 = vunpack.c.l.b16 %v1462
      %v1496 = vunpack.c.l.b16 %v1463
      %v1497 = vunpack.c.l.b16 %v1464
      %v1498 = vpack.c.b16 %v1491, %v1490
      %v1499 = vpack.c.b16 %v1493, %v1492
      %v1500 = vpack.c.b16 %v1495, %v1494
      %v1501 = vpack.c.b16 %v1497, %v1496
      %v1522 = vunpack.c.l.b16 %v1466
      %v1523 = vunpack.c.l.b16 %v1467
      %v1524 = vunpack.c.l.b16 %v1468
      %v1525 = vunpack.c.l.b16 %v1469
      %v1526 = vunpack.c.l.b16 %v1470
      %v1527 = vunpack.c.l.b16 %v1471
      %v1528 = vunpack.c.l.b16 %v1472
      %v1529 = vunpack.c.l.b16 %v1473
      %v1530 = vunpack.c.l.b16 %v1474
      %v1531 = vunpack.c.l.b16 %v1475
      %v1532 = vunpack.c.l.b16 %v1476
      %v1533 = vunpack.c.l.b16 %v1477
      %v1534 = vunpack.c.l.b16 %v1478
      %v1535 = vunpack.c.l.b16 %v1479
      %v1536 = vunpack.c.l.b16 %v1480
      %v1537 = vunpack.c.l.b16 %v1481
      %v1538 = vpack.c.b16 %v1523, %v1522
      %v1539 = vpack.c.b16 %v1525, %v1524
      %v1540 = vpack.c.b16 %v1527, %v1526
      %v1541 = vpack.c.b16 %v1529, %v1528
      %v1542 = vpack.c.b16 %v1531, %v1530
      %v1543 = vpack.c.b16 %v1533, %v1532
      %v1544 = vpack.c.b16 %v1535, %v1534
      %v1545 = vpack.c.b16 %v1537, %v1536
      %1554 = vmatprep.subr.bf16.mxu0 0
      %1555 = vmatpush1.bf16.msra.mxu0 %v1538
      %1556 = vmatprep.subr.bf16.mxu0 0
      %1557 = vmatpush1.bf16.msra.mxu0 %v1539
      %1558 = vmatprep.subr.bf16.mxu0 0
      %1559 = vmatpush1.bf16.msra.mxu0 %v1540
      %1560 = vmatprep.subr.bf16.mxu0 0
      %1561 = vmatpush1.bf16.msra.mxu0 %v1541
      %1562 = vmatprep.subr.bf16.mxu0 0
      %1563 = vmatpush1.bf16.msra.mxu0 %v1542
      %1564 = vmatprep.subr.bf16.mxu0 0
      %1565 = vmatpush1.bf16.msra.mxu0 %v1543
      %1566 = vmatprep.subr.bf16.mxu0 0
      %1567 = vmatpush1.bf16.msra.mxu0 %v1544
      %1568 = vmatprep.subr.bf16.mxu0 0
      %1569 = vmatpush1.bf16.msra.mxu0 %v1545
      %1570 = vmatprep.subr.bf16.mxu0 0
      %1571 = vmatpush1.bf16.msra.mxu0 0
      %1572 = vmatprep.subr.bf16.mxu0 0
      %1573 = vmatpush1.bf16.msra.mxu0 0
      %1574 = vmatprep.subr.bf16.mxu0 0
      %1575 = vmatpush1.bf16.msra.mxu0 0
      %1576 = vmatprep.subr.bf16.mxu0 0
      %1577 = vmatpush1.bf16.msra.mxu0 0
      %1578 = vmatprep.subr.bf16.mxu0 0
      %1579 = vmatpush1.bf16.msra.mxu0 0
      %1580 = vmatprep.subr.bf16.mxu0 0
      %1581 = vmatpush1.bf16.msra.mxu0 0
      %1582 = vmatprep.subr.bf16.mxu0 0
      %1583 = vmatpush1.bf16.msra.mxu0 0
      %1584 = vmatprep.subr.bf16.mxu0 0
      %1585 = vmatpush1.bf16.msra.mxu0 0
      %1586 = vmatprep.mubr.bf16.mxu0 0
      %1587 = vmatmul.mubr.bf16.gmra.mrb[0].mxu0 %v1498
      %v1588 = vpop.f32.mrb[0].mxu0
      %v1589 = vadd.f32 0.0, %v1588
      %v1590 = vpop.f32.mrb[0].mxu0
      %v1591 = vpop.f32.mrb[0].mxu0
      %v1592 = vadd.f32 0.0, %v1591
      %v1593 = vpop.f32.mrb[0].mxu0
      %1594 = vmatprep.mubr.bf16.mxu0 0
      %1595 = vmatmul.mubr.bf16.gmra.mrb[0].mxu0 %v1499
      %v1596 = vpop.f32.mrb[0].mxu0
      %v1597 = vadd.f32 0.0, %v1596
      %v1598 = vpop.f32.mrb[0].mxu0
      %v1599 = vpop.f32.mrb[0].mxu0
      %v1600 = vadd.f32 0.0, %v1599
      %v1601 = vpop.f32.mrb[0].mxu0
      %1602 = vmatprep.mubr.bf16.mxu0 0
      %1603 = vmatmul.mubr.bf16.gmra.mrb[0].mxu0 %v1500
      %v1604 = vpop.f32.mrb[0].mxu0
      %v1605 = vadd.f32 0.0, %v1604
      %v1606 = vpop.f32.mrb[0].mxu0
      %v1607 = vpop.f32.mrb[0].mxu0
      %v1608 = vadd.f32 0.0, %v1607
      %v1609 = vpop.f32.mrb[0].mxu0
      %1610 = vmatprep.mubr.bf16.mxu0 0
      %1611 = vmatmul.mubr.bf16.gmra.mrb[0].mxu0 %v1501
      %v1612 = vpop.f32.mrb[0].mxu0
      %v1613 = vadd.f32 0.0, %v1612
      %v1614 = vpop.f32.mrb[0].mxu0
      %v1615 = vpop.f32.mrb[0].mxu0
      %v1616 = vadd.f32 0.0, %v1615
      %v1617 = vpop.f32.mrb[0].mxu0
      %1618 = vdwg.mxu0
      %v1619 = vadd.f32 %v1448, %v1589
      %v1620 = vadd.f32 %v1449, %v1592
      %v1621 = vadd.f32 %v1450, %v1597
      %v1622 = vadd.f32 %v1451, %v1600
      %v1623 = vadd.f32 %v1452, %v1605
      %v1624 = vadd.f32 %v1453, %v1608
      %v1625 = vadd.f32 %v1454, %v1613
      %v1626 = vadd.f32 %v1455, %v1616
      %s1627 = scalar_lea.vmem %s206, 80
      %v1628 = vld [vmem:[%s1627] sm:$0xf]
      %v1629 = vld [vmem:[%s1627 + $0x8] sm:$0xf]
      %v1630 = vld [vmem:[%s1627 + $0x10] sm:$0xf]
      %v1631 = vld [vmem:[%s1627 + $0x18] sm:$0xf]
      %v1632 = vld [vmem:[%s1627 + $0x20] sm:$0xf]
      %v1633 = vld [vmem:[%s1627 + $0x28] sm:$0xf]
      %v1634 = vld [vmem:[%s1627 + $0x30] sm:$0xf]
      %v1635 = vld [vmem:[%s1627 + $0x38] sm:$0xf]
      %s1636 = scalar_lea.vmem %s210, 448
      %v1637 = vld [vmem:[%s1636] sm:$0xf]
      %v1638 = vld [vmem:[%s1636 + $0x4] sm:$0xf]
      %v1639 = vld [vmem:[%s1636 + $0x8] sm:$0xf]
      %v1640 = vld [vmem:[%s1636 + $0xc] sm:$0xf]
      %v1641 = vld [vmem:[%s1636 + $0x10] sm:$0xf]
      %v1642 = vld [vmem:[%s1636 + $0x14] sm:$0xf]
      %v1643 = vld [vmem:[%s1636 + $0x18] sm:$0xf]
      %v1644 = vld [vmem:[%s1636 + $0x1c] sm:$0xf]
      %v1645 = vld [vmem:[%s1636 + $0x20] sm:$0xf]
      %v1646 = vld [vmem:[%s1636 + $0x24] sm:$0xf]
      %v1647 = vld [vmem:[%s1636 + $0x28] sm:$0xf]
      %v1648 = vld [vmem:[%s1636 + $0x2c] sm:$0xf]
      %v1649 = vld [vmem:[%s1636 + $0x30] sm:$0xf]
      %v1650 = vld [vmem:[%s1636 + $0x34] sm:$0xf]
      %v1651 = vld [vmem:[%s1636 + $0x38] sm:$0xf]
      %v1652 = vld [vmem:[%s1636 + $0x3c] sm:$0xf]
      %v1661 = vunpack.c.l.b16 %v1628
      %v1662 = vunpack.c.l.b16 %v1629
      %v1663 = vunpack.c.l.b16 %v1630
      %v1664 = vunpack.c.l.b16 %v1631
      %v1665 = vunpack.c.l.b16 %v1632
      %v1666 = vunpack.c.l.b16 %v1633
      %v1667 = vunpack.c.l.b16 %v1634
      %v1668 = vunpack.c.l.b16 %v1635
      %v1669 = vpack.c.b16 %v1662, %v1661
      %v1670 = vpack.c.b16 %v1664, %v1663
      %v1671 = vpack.c.b16 %v1666, %v1665
      %v1672 = vpack.c.b16 %v1668, %v1667
      %v1693 = vunpack.c.l.b16 %v1637
      %v1694 = vunpack.c.l.b16 %v1638
      %v1695 = vunpack.c.l.b16 %v1639
      %v1696 = vunpack.c.l.b16 %v1640
      %v1697 = vunpack.c.l.b16 %v1641
      %v1698 = vunpack.c.l.b16 %v1642
      %v1699 = vunpack.c.l.b16 %v1643
      %v1700 = vunpack.c.l.b16 %v1644
      %v1701 = vunpack.c.l.b16 %v1645
      %v1702 = vunpack.c.l.b16 %v1646
      %v1703 = vunpack.c.l.b16 %v1647
      %v1704 = vunpack.c.l.b16 %v1648
      %v1705 = vunpack.c.l.b16 %v1649
      %v1706 = vunpack.c.l.b16 %v1650
      %v1707 = vunpack.c.l.b16 %v1651
      %v1708 = vunpack.c.l.b16 %v1652
      %v1709 = vpack.c.b16 %v1694, %v1693
      %v1710 = vpack.c.b16 %v1696, %v1695
      %v1711 = vpack.c.b16 %v1698, %v1697
      %v1712 = vpack.c.b16 %v1700, %v1699
      %v1713 = vpack.c.b16 %v1702, %v1701
      %v1714 = vpack.c.b16 %v1704, %v1703
      %v1715 = vpack.c.b16 %v1706, %v1705
      %v1716 = vpack.c.b16 %v1708, %v1707
      %1725 = vmatprep.subr.bf16.mxu0 0
      %1726 = vmatpush1.bf16.msra.mxu0 %v1709
      %1727 = vmatprep.subr.bf16.mxu0 0
      %1728 = vmatpush1.bf16.msra.mxu0 %v1710
      %1729 = vmatprep.subr.bf16.mxu0 0
      %1730 = vmatpush1.bf16.msra.mxu0 %v1711
      %1731 = vmatprep.subr.bf16.mxu0 0
      %1732 = vmatpush1.bf16.msra.mxu0 %v1712
      %1733 = vmatprep.subr.bf16.mxu0 0
      %1734 = vmatpush1.bf16.msra.mxu0 %v1713
      %1735 = vmatprep.subr.bf16.mxu0 0
      %1736 = vmatpush1.bf16.msra.mxu0 %v1714
      %1737 = vmatprep.subr.bf16.mxu0 0
      %1738 = vmatpush1.bf16.msra.mxu0 %v1715
      %1739 = vmatprep.subr.bf16.mxu0 0
      %1740 = vmatpush1.bf16.msra.mxu0 %v1716
      %1741 = vmatprep.subr.bf16.mxu0 0
      %1742 = vmatpush1.bf16.msra.mxu0 0
      %1743 = vmatprep.subr.bf16.mxu0 0
      %1744 = vmatpush1.bf16.msra.mxu0 0
      %1745 = vmatprep.subr.bf16.mxu0 0
      %1746 = vmatpush1.bf16.msra.mxu0 0
      %1747 = vmatprep.subr.bf16.mxu0 0
      %1748 = vmatpush1.bf16.msra.mxu0 0
      %1749 = vmatprep.subr.bf16.mxu0 0
      %1750 = vmatpush1.bf16.msra.mxu0 0
      %1751 = vmatprep.subr.bf16.mxu0 0
      %1752 = vmatpush1.bf16.msra.mxu0 0
      %1753 = vmatprep.subr.bf16.mxu0 0
      %1754 = vmatpush1.bf16.msra.mxu0 0
      %1755 = vmatprep.subr.bf16.mxu0 0
      %1756 = vmatpush1.bf16.msra.mxu0 0
      %1757 = vmatprep.mubr.bf16.mxu0 0
      %1758 = vmatmul.mubr.bf16.gmra.mrb[0].mxu0 %v1669
      %v1759 = vpop.f32.mrb[0].mxu0
      %v1760 = vadd.f32 0.0, %v1759
      %v1761 = vpop.f32.mrb[0].mxu0
      %v1762 = vpop.f32.mrb[0].mxu0
      %v1763 = vadd.f32 0.0, %v1762
      %v1764 = vpop.f32.mrb[0].mxu0
      %1765 = vmatprep.mubr.bf16.mxu0 0
      %1766 = vmatmul.mubr.bf16.gmra.mrb[0].mxu0 %v1670
      %v1767 = vpop.f32.mrb[0].mxu0
      %v1768 = vadd.f32 0.0, %v1767
      %v1769 = vpop.f32.mrb[0].mxu0
      %v1770 = vpop.f32.mrb[0].mxu0
      %v1771 = vadd.f32 0.0, %v1770
      %v1772 = vpop.f32.mrb[0].mxu0
      %1773 = vmatprep.mubr.bf16.mxu0 0
      %1774 = vmatmul.mubr.bf16.gmra.mrb[0].mxu0 %v1671
      %v1775 = vpop.f32.mrb[0].mxu0
      %v1776 = vadd.f32 0.0, %v1775
      %v1777 = vpop.f32.mrb[0].mxu0
      %v1778 = vpop.f32.mrb[0].mxu0
      %v1779 = vadd.f32 0.0, %v1778
      %v1780 = vpop.f32.mrb[0].mxu0
      %1781 = vmatprep.mubr.bf16.mxu0 0
      %1782 = vmatmul.mubr.bf16.gmra.mrb[0].mxu0 %v1672
      %v1783 = vpop.f32.mrb[0].mxu0
      %v1784 = vadd.f32 0.0, %v1783
      %v1785 = vpop.f32.mrb[0].mxu0
      %v1786 = vpop.f32.mrb[0].mxu0
      %v1787 = vadd.f32 0.0, %v1786
      %v1788 = vpop.f32.mrb[0].mxu0
      %1789 = vdwg.mxu0
      %v1790 = vadd.f32 %v1619, %v1760
      %v1791 = vadd.f32 %v1620, %v1763
      %v1792 = vadd.f32 %v1621, %v1768
      %v1793 = vadd.f32 %v1622, %v1771
      %v1794 = vadd.f32 %v1623, %v1776
      %v1795 = vadd.f32 %v1624, %v1779
      %v1796 = vadd.f32 %v1625, %v1784
      %v1797 = vadd.f32 %v1626, %v1787
      %v1798 = vld [vmem:[%s1456] sm:$0xf]
      %v1799 = vld [vmem:[%s1456 + $0x4] sm:$0x1]
      %v1800 = vld [vmem:[%s1456 + $0x8] sm:$0xf]
      %v1801 = vld [vmem:[%s1456 + $0xc] sm:$0x1]
      %v1802 = vld [vmem:[%s1456 + $0x10] sm:$0xf]
      %v1803 = vld [vmem:[%s1456 + $0x14] sm:$0x1]
      %v1804 = vld [vmem:[%s1456 + $0x18] sm:$0xf]
      %v1805 = vld [vmem:[%s1456 + $0x1c] sm:$0x1]
      %v1806 = vld [vmem:[%s1456 + $0x20] sm:$0xf]
      %v1807 = vld [vmem:[%s1456 + $0x24] sm:$0x1]
      %v1808 = vld [vmem:[%s1456 + $0x28] sm:$0xf]
      %v1809 = vld [vmem:[%s1456 + $0x2c] sm:$0x1]
      %v1810 = vld [vmem:[%s1456 + $0x30] sm:$0xf]
      %v1811 = vld [vmem:[%s1456 + $0x34] sm:$0x1]
      %v1812 = vld [vmem:[%s1456 + $0x38] sm:$0xf]
      %v1813 = vld [vmem:[%s1456 + $0x3c] sm:$0x1]
      %v1815 = vshrl.u32 %v1798, 16
      %v1817 = vrot.slane %v1815, 4
      %v1818 = vshll.u32 %v1798, 16
      %v1820 = vrot.slane %v1818, 5
      %v1821 = vor.u32 %v1817, %v1820
      %v1822 = vrot.slane %v1821, 4
      %v1824 = vshll.u32 %v1799, 16
      %v1826 = vrot.slane %v1824, 5
      %v1827 = vsel %vm565, %v1822, %v1826
      %v1829 = vshrl.u32 %v1800, 16
      %v1831 = vrot.slane %v1829, 4
      %v1832 = vshll.u32 %v1800, 16
      %v1834 = vrot.slane %v1832, 5
      %v1835 = vor.u32 %v1831, %v1834
      %v1836 = vrot.slane %v1835, 4
      %v1838 = vshll.u32 %v1801, 16
      %v1840 = vrot.slane %v1838, 5
      %v1841 = vsel %vm565, %v1836, %v1840
      %v1843 = vshrl.u32 %v1802, 16
      %v1845 = vrot.slane %v1843, 4
      %v1846 = vshll.u32 %v1802, 16
      %v1848 = vrot.slane %v1846, 5
      %v1849 = vor.u32 %v1845, %v1848
      %v1850 = vrot.slane %v1849, 4
      %v1852 = vshll.u32 %v1803, 16
      %v1854 = vrot.slane %v1852, 5
      %v1855 = vsel %vm565, %v1850, %v1854
      %v1857 = vshrl.u32 %v1804, 16
      %v1859 = vrot.slane %v1857, 4
      %v1860 = vshll.u32 %v1804, 16
      %v1862 = vrot.slane %v1860, 5
      %v1863 = vor.u32 %v1859, %v1862
      %v1864 = vrot.slane %v1863, 4
      %v1866 = vshll.u32 %v1805, 16
      %v1868 = vrot.slane %v1866, 5
      %v1869 = vsel %vm565, %v1864, %v1868
      %v1871 = vshrl.u32 %v1806, 16
      %v1873 = vrot.slane %v1871, 4
      %v1874 = vshll.u32 %v1806, 16
      %v1876 = vrot.slane %v1874, 5
      %v1877 = vor.u32 %v1873, %v1876
      %v1878 = vrot.slane %v1877, 4
      %v1880 = vshll.u32 %v1807, 16
      %v1882 = vrot.slane %v1880, 5
      %v1883 = vsel %vm565, %v1878, %v1882
      %v1885 = vshrl.u32 %v1808, 16
      %v1887 = vrot.slane %v1885, 4
      %v1888 = vshll.u32 %v1808, 16
      %v1890 = vrot.slane %v1888, 5
      %v1891 = vor.u32 %v1887, %v1890
      %v1892 = vrot.slane %v1891, 4
      %v1894 = vshll.u32 %v1809, 16
      %v1896 = vrot.slane %v1894, 5
      %v1897 = vsel %vm565, %v1892, %v1896
      %v1899 = vshrl.u32 %v1810, 16
      %v1901 = vrot.slane %v1899, 4
      %v1902 = vshll.u32 %v1810, 16
      %v1904 = vrot.slane %v1902, 5
      %v1905 = vor.u32 %v1901, %v1904
      %v1906 = vrot.slane %v1905, 4
      %v1908 = vshll.u32 %v1811, 16
      %v1910 = vrot.slane %v1908, 5
      %v1911 = vsel %vm565, %v1906, %v1910
      %v1913 = vshrl.u32 %v1812, 16
      %v1915 = vrot.slane %v1913, 4
      %v1916 = vshll.u32 %v1812, 16
      %v1918 = vrot.slane %v1916, 5
      %v1919 = vor.u32 %v1915, %v1918
      %v1920 = vrot.slane %v1919, 4
      %v1922 = vshll.u32 %v1813, 16
      %v1924 = vrot.slane %v1922, 5
      %v1925 = vsel %vm565, %v1920, %v1924
      %s1926 = scalar_lea.vmem %s210, 512
      %v1927 = vld [vmem:[%s1926] sm:$0xf]
      %v1928 = vld [vmem:[%s1926 + $0x4] sm:$0xf]
      %v1929 = vld [vmem:[%s1926 + $0x8] sm:$0xf]
      %v1930 = vld [vmem:[%s1926 + $0xc] sm:$0xf]
      %v1931 = vld [vmem:[%s1926 + $0x10] sm:$0xf]
      %v1932 = vld [vmem:[%s1926 + $0x14] sm:$0xf]
      %v1933 = vld [vmem:[%s1926 + $0x18] sm:$0xf]
      %v1934 = vld [vmem:[%s1926 + $0x1c] sm:$0xf]
      %v1935 = vld [vmem:[%s1926 + $0x20] sm:$0xf]
      %v1936 = vld [vmem:[%s1926 + $0x24] sm:$0xf]
      %v1937 = vld [vmem:[%s1926 + $0x28] sm:$0xf]
      %v1938 = vld [vmem:[%s1926 + $0x2c] sm:$0xf]
      %v1939 = vld [vmem:[%s1926 + $0x30] sm:$0xf]
      %v1940 = vld [vmem:[%s1926 + $0x34] sm:$0xf]
      %v1941 = vld [vmem:[%s1926 + $0x38] sm:$0xf]
      %v1942 = vld [vmem:[%s1926 + $0x3c] sm:$0xf]
      %v1943 = vunpack.c.l.b16 %v1827
      %v1944 = vunpack.c.l.b16 %v1841
      %v1945 = vunpack.c.l.b16 %v1855
      %v1946 = vunpack.c.l.b16 %v1869
      %v1947 = vunpack.c.l.b16 %v1883
      %v1948 = vunpack.c.l.b16 %v1897
      %v1949 = vunpack.c.l.b16 %v1911
      %v1950 = vunpack.c.l.b16 %v1925
      %v1951 = vpack.c.b16 %v1944, %v1943
      %v1952 = vpack.c.b16 %v1946, %v1945
      %v1953 = vpack.c.b16 %v1948, %v1947
      %v1954 = vpack.c.b16 %v1950, %v1949
      %v1975 = vunpack.c.l.b16 %v1927
      %v1976 = vunpack.c.l.b16 %v1928
      %v1977 = vunpack.c.l.b16 %v1929
      %v1978 = vunpack.c.l.b16 %v1930
      %v1979 = vunpack.c.l.b16 %v1931
      %v1980 = vunpack.c.l.b16 %v1932
      %v1981 = vunpack.c.l.b16 %v1933
      %v1982 = vunpack.c.l.b16 %v1934
      %v1983 = vunpack.c.l.b16 %v1935
      %v1984 = vunpack.c.l.b16 %v1936
      %v1985 = vunpack.c.l.b16 %v1937
      %v1986 = vunpack.c.l.b16 %v1938
      %v1987 = vunpack.c.l.b16 %v1939
      %v1988 = vunpack.c.l.b16 %v1940
      %v1989 = vunpack.c.l.b16 %v1941
      %v1990 = vunpack.c.l.b16 %v1942
      %v1991 = vpack.c.b16 %v1976, %v1975
      %v1992 = vpack.c.b16 %v1978, %v1977
      %v1993 = vpack.c.b16 %v1980, %v1979
      %v1994 = vpack.c.b16 %v1982, %v1981
      %v1995 = vpack.c.b16 %v1984, %v1983
      %v1996 = vpack.c.b16 %v1986, %v1985
      %v1997 = vpack.c.b16 %v1988, %v1987
      %v1998 = vpack.c.b16 %v1990, %v1989
      %2007 = vmatprep.subr.bf16.mxu0 0
      %2008 = vmatpush1.bf16.msra.mxu0 %v1991
      %2009 = vmatprep.subr.bf16.mxu0 0
      %2010 = vmatpush1.bf16.msra.mxu0 %v1992
      %2011 = vmatprep.subr.bf16.mxu0 0
      %2012 = vmatpush1.bf16.msra.mxu0 %v1993
      %2013 = vmatprep.subr.bf16.mxu0 0
      %2014 = vmatpush1.bf16.msra.mxu0 %v1994
      %2015 = vmatprep.subr.bf16.mxu0 0
      %2016 = vmatpush1.bf16.msra.mxu0 %v1995
      %2017 = vmatprep.subr.bf16.mxu0 0
      %2018 = vmatpush1.bf16.msra.mxu0 %v1996
      %2019 = vmatprep.subr.bf16.mxu0 0
      %2020 = vmatpush1.bf16.msra.mxu0 %v1997
      %2021 = vmatprep.subr.bf16.mxu0 0
      %2022 = vmatpush1.bf16.msra.mxu0 %v1998
      %2023 = vmatprep.subr.bf16.mxu0 0
      %2024 = vmatpush1.bf16.msra.mxu0 0
      %2025 = vmatprep.subr.bf16.mxu0 0
      %2026 = vmatpush1.bf16.msra.mxu0 0
      %2027 = vmatprep.subr.bf16.mxu0 0
      %2028 = vmatpush1.bf16.msra.mxu0 0
      %2029 = vmatprep.subr.bf16.mxu0 0
      %2030 = vmatpush1.bf16.msra.mxu0 0
      %2031 = vmatprep.subr.bf16.mxu0 0
      %2032 = vmatpush1.bf16.msra.mxu0 0
      %2033 = vmatprep.subr.bf16.mxu0 0
      %2034 = vmatpush1.bf16.msra.mxu0 0
      %2035 = vmatprep.subr.bf16.mxu0 0
      %2036 = vmatpush1.bf16.msra.mxu0 0
      %2037 = vmatprep.subr.bf16.mxu0 0
      %2038 = vmatpush1.bf16.msra.mxu0 0
      %2039 = vmatprep.mubr.bf16.mxu0 0
      %2040 = vmatmul.mubr.bf16.gmra.mrb[0].mxu0 %v1951
      %v2041 = vpop.f32.mrb[0].mxu0
      %v2042 = vadd.f32 0.0, %v2041
      %v2043 = vpop.f32.mrb[0].mxu0
      %v2044 = vpop.f32.mrb[0].mxu0
      %v2045 = vadd.f32 0.0, %v2044
      %v2046 = vpop.f32.mrb[0].mxu0
      %2047 = vmatprep.mubr.bf16.mxu0 0
      %2048 = vmatmul.mubr.bf16.gmra.mrb[0].mxu0 %v1952
      %v2049 = vpop.f32.mrb[0].mxu0
      %v2050 = vadd.f32 0.0, %v2049
      %v2051 = vpop.f32.mrb[0].mxu0
      %v2052 = vpop.f32.mrb[0].mxu0
      %v2053 = vadd.f32 0.0, %v2052
      %v2054 = vpop.f32.mrb[0].mxu0
      %2055 = vmatprep.mubr.bf16.mxu0 0
      %2056 = vmatmul.mubr.bf16.gmra.mrb[0].mxu0 %v1953
      %v2057 = vpop.f32.mrb[0].mxu0
      %v2058 = vadd.f32 0.0, %v2057
      %v2059 = vpop.f32.mrb[0].mxu0
      %v2060 = vpop.f32.mrb[0].mxu0
      %v2061 = vadd.f32 0.0, %v2060
      %v2062 = vpop.f32.mrb[0].mxu0
      %2063 = vmatprep.mubr.bf16.mxu0 0
      %2064 = vmatmul.mubr.bf16.gmra.mrb[0].mxu0 %v1954
      %v2065 = vpop.f32.mrb[0].mxu0
      %v2066 = vadd.f32 0.0, %v2065
      %v2067 = vpop.f32.mrb[0].mxu0
      %v2068 = vpop.f32.mrb[0].mxu0
      %v2069 = vadd.f32 0.0, %v2068
      %v2070 = vpop.f32.mrb[0].mxu0
      %2071 = vdwg.mxu0
      %v2072 = vadd.f32 %v1790, %v2042
      %v2073 = vadd.f32 %v1791, %v2045
      %v2074 = vadd.f32 %v1792, %v2050
      %v2075 = vadd.f32 %v1793, %v2053
      %v2076 = vadd.f32 %v1794, %v2058
      %v2077 = vadd.f32 %v1795, %v2061
      %v2078 = vadd.f32 %v1796, %v2066
      %v2079 = vadd.f32 %v1797, %v2069
      %v2080 = vld [vmem:[%s213] sm:$0x1]
      %v2082 = vlaneseq
      %v2083 = vshrl.u32 %v2082, 7
      %v2084 = vsub.s32 0, %v2083
      %v2085 = vrot.slane %v2080, %v2084
      %v2087 = vadd.f32 %v2072, %v2085
      %v2088 = vadd.f32 %v2073, %v2085
      %v2089 = vadd.f32 %v2074, %v2085
      %v2090 = vadd.f32 %v2075, %v2085
      %v2091 = vadd.f32 %v2076, %v2085
      %v2092 = vadd.f32 %v2077, %v2085
      %v2093 = vadd.f32 %v2078, %v2085
      %v2094 = vadd.f32 %v2079, %v2085
      %v2095 = vmax.f32 %v2087, 0.0
      %v2096 = vmax.f32 %v2088, 0.0
      %v2097 = vmax.f32 %v2089, 0.0
      %v2098 = vmax.f32 %v2090, 0.0
      %v2099 = vmax.f32 %v2091, 0.0
      %v2100 = vmax.f32 %v2092, 0.0
      %v2101 = vmax.f32 %v2093, 0.0
      %v2102 = vmax.f32 %v2094, 0.0
      %v2103 = vpack.c.bf16 %v2095, %v2095
      %v2104 = vpack.c.bf16 %v2096, %v2096
      %v2105 = vpack.c.bf16 %v2097, %v2097
      %v2106 = vpack.c.bf16 %v2098, %v2098
      %v2107 = vpack.c.bf16 %v2099, %v2099
      %v2108 = vpack.c.bf16 %v2100, %v2100
      %v2109 = vpack.c.bf16 %v2101, %v2101
      %v2110 = vpack.c.bf16 %v2102, %v2102
      %2111 = vst [vmem:[%s221] sm:$0xf] %v2103
      %2112 = vst [vmem:[%s221 + $0x4] sm:$0xf] %v2104
      %2113 = vst [vmem:[%s221 + $0x8] sm:$0xf] %v2105
      %2114 = vst [vmem:[%s221 + $0xc] sm:$0xf] %v2106
      %2115 = vst [vmem:[%s221 + $0x10] sm:$0xf] %v2107
      %2116 = vst [vmem:[%s221 + $0x14] sm:$0xf] %v2108
      %2117 = vst [vmem:[%s221 + $0x18] sm:$0xf] %v2109
      %2118 = vst [vmem:[%s221 + $0x1c] sm:$0xf] %v2110
      %p2119 = scmp.lt.s32.totalorder %s18, 1
      %s2120 = scalar_select %p2119, %s18, 1
      %p2121 = scmp.lt.s32.totalorder %s19, 0
      %s2122 = scalar_select %p2121, %s19, 0
      %s2123 = smul.addr %s2120, 8
      %s2124 = sadd.s32 %s2122, %s2123
      %s2125 = smul.addr %s2124, 4
      %s2126 = scalar_lea.vmem %s3, %s2125
      // Predicated region
      $region33: #{bottleneck_forward.5} parent=31 // pred_check
        %p2127 = pneg %p124
      $region34: #{bottleneck_forward.5} parent=31 // pred_check_branch
        %2129 = sbr.rel (%p2127) target = $region36
      $region35: #{bottleneck_forward.5} parent=31 // pred_region
        _
      $region36: #{bottleneck_forward.5} parent=31 // pred_fallthru
        _
    $region32: #{bottleneck_forward.5} parent=5 // pred_fallthru
      _
    %p2130 = scmp.le.s32.totalorder 2, %s9
    // Predicated region
    $region37: #{bottleneck_forward.5} parent=5 // pred_check
      %p2131 = pneg %p2130
    $region38: #{bottleneck_forward.5} parent=5 // pred_check_branch
      %2133 = sbr.rel (%p2131) target = $region40
    $region39: #{bottleneck_forward.5} parent=5 // pred_region
      %s2134 = ssub.s32 %s9, 2
      // Predicated region
      $region41: #{bottleneck_forward.5} parent=39 // pred_check
        %p2135 = pneg %p130
      $region42: #{bottleneck_forward.5} parent=39 // pred_check_branch
        %2137 = sbr.rel (%p2135) target = $region44
      $region43: #{bottleneck_forward.5} parent=39 // pred_region
        %p2138 = scmp.lt.s32.totalorder %s20, 1
        %s2139 = scalar_select %p2138, %s20, 1
        %p2140 = scmp.lt.s32.totalorder %s21, 0
        %s2141 = scalar_select %p2140, %s21, 0
        %s2142 = smul.addr %s2139, 8
        %s2143 = sadd.s32 %s2141, %s2142
        %s2144 = smul.addr %s2143, 4
        %s2145 = scalar_lea.vmem %s3, %s2144
      $region44: #{bottleneck_forward.5} parent=39 // pred_fallthru
        _
    $region40: #{bottleneck_forward.5} parent=5 // pred_fallthru
      _
  $region6: #{bottleneck_forward.5} parent=0 // loop_footer
    %s13 = sadd.s32 1, %s9
  $region7: #{bottleneck_forward.5} parent=0 // loop_footer_branch
    %8 = sbr.rel target = $region3
  $region8: #{bottleneck_forward.5} parent=0 // loop_exit
    _

</llo_original>
